<compile_context>
chip_gen: v5e
topology: v5e:2x2
jax: 0.10.0
libtpu: 0.0.40
codegen_flags: <defaults>
</compile_context>

<pallas_src>
import functools

import jax
import jax.numpy as jnp
from jax import lax
from jax.experimental import pallas as pl
from jax.experimental.pallas import tpu as pltpu


_CONTRACT_LAST = (((1,), (1,)), ((), ()))   # x @ W.T without an in-kernel transpose


def _dotT(x, w):
    """x @ w.T contracting last/last, f32 accumulation (operands pre-cast in wrappers)."""
    return lax.dot_general(x, w, _CONTRACT_LAST, preferred_element_type=jnp.float32)


def _sigmoid(x):
    # numerically stable sigmoid on the EUP (no exp overflow for large |x|)
    return 0.5 * (jnp.tanh(0.5 * x) + 1.0)


# ----------------------------------------------------------------------------
# Kernel 1: GSM topic model.  grid = (batch_blocks, 2 phases, V tiles).
#   phase 0: enc1_acc += bow_tile @ w1_tile.T ; blog tile cached; online beta max/sum
#   phase 1 (v==0): enc1->enc2->fused mean/logvar->theta ; KLD seeds nlkld output
#   phase 1: beta tile from cache, recon tile, NL accumulation into nlkld output
# ----------------------------------------------------------------------------
def gsm_kernel(bow_ref, w1_ref, b1_ref, w2_ref, b2_ref, wml_ref, bml_ref,
               wd_ref, bd_ref, tvec_ref, wvec_ref,
               theta_ref, nlkld_ref,
               enc1_acc, bmax_s, bsum_s, blog_cache,
               *, num_topic, v_valid):
    phase = pl.program_id(1)
    v = pl.program_id(2)
    K = num_topic
    vt = blog_cache.shape[-1]

    @pl.when(jnp.logical_and(phase == 0, v == 0))
    def _init():
        enc1_acc[...] = jnp.zeros_like(enc1_acc)
        bmax_s[...] = jnp.full_like(bmax_s, -jnp.inf)
        bsum_s[...] = jnp.zeros_like(bsum_s)

    @pl.when(phase == 0)
    def _stream():
        # enc1 pre-activation accumulation (bf16 streams, f32 accumulator)
        enc1_acc[...] += _dotT(bow_ref[...], w1_ref[...])
        # beta logits tile: topic_vec @ word_vec_tile.T ; mask padded vocab lanes
        blog = _dotT(tvec_ref[...], wvec_ref[...])                       # (K, vt)
        lane = lax.broadcasted_iota(jnp.int32, blog.shape, 1) + v * vt
        blog = jnp.where(lane < v_valid, blog, jnp.float32(-1e30))
        blog_cache[v] = blog                                             # reused in phase 1
        m_old = bmax_s[...]
        m_new = jnp.maximum(m_old, jnp.max(blog, axis=-1, keepdims=True))
        bsum_s[...] = (bsum_s[...] * jnp.exp(m_old - m_new)
                       + jnp.sum(jnp.exp(blog - m_new), axis=-1, keepdims=True))
        bmax_s[...] = m_new

    @pl.when(jnp.logical_and(phase == 1, v == 0))
    def _heads():
        enc1 = jnp.tanh(enc1_acc[...] + b1_ref[...])
        enc2 = jnp.tanh(_dotT(enc1, w2_ref[...]) + b2_ref[...])
        ml = _dotT(enc2, wml_ref[...]) + bml_ref[...]                    # (B, 2K) mean|logvar
        mean = ml[:, :K]
        logvar = ml[:, K:]
        # eval mode: z = posterior_mean; theta = softmax(decoder(z), -1) (exact division)
        logits = _dotT(mean, wd_ref[...]) + bd_ref[...]
        logits = logits - jnp.max(logits, axis=-1, keepdims=True)
        e = jnp.exp(logits)
        theta_ref[...] = e / jnp.sum(e, axis=-1, keepdims=True)
        # seed the per-example accumulator with KLD; NL tiles added below
        nlkld_ref[...] = -0.5 * jnp.sum(1.0 - mean * mean + logvar - jnp.exp(logvar),
                                        axis=1, keepdims=True)

    @pl.when(phase == 1)
    def _recon():
        blog = blog_cache[v]
        beta = jnp.exp(blog - bmax_s[...]) / bsum_s[...]                 # (K, vt)
        recon = jnp.dot(theta_ref[...], beta, preferred_element_type=jnp.float32)
        bow = bow_ref[...].astype(jnp.float32)
        nlkld_ref[...] += -jnp.sum(bow * jnp.log(recon + 1e-10), axis=1, keepdims=True)


def gsm_forward(bow, params, *, v_block=1024, b_block=None):
    B, V = bow.shape
    E2 = params["w1"].shape[0]          # 2 * enc_nh
    Eh = params["w2"].shape[0]          # enc_nh
    K, ni = params["topic_vec"].shape

    # V tiling: vt is a multiple of 128, V zero-padded to a multiple of vt; padded
    # lanes masked in the kernel (bow/w1 padded columns are zero anyway).
    vt = min(v_block, pl.cdiv(V, 128) * 128)
    V_pad = pl.cdiv(V, vt) * vt
    nvt = V_pad // vt
    pad_v = V_pad - V

    # batch blocking: gives the GSM grid a "parallel" axis (v7x 2nd TensorCore);
    # single block for small batches.
    if b_block is None:
        b_block = B // 2 if (B >= 16 and B % 2 == 0) else B
    tb = b_block
    nb = B // tb

    # hot streamed operands: pad + pre-cast to bf16 once in the wrapper
    bow_b = jnp.pad(bow, ((0, 0), (0, pad_v))).astype(jnp.bfloat16)
    w1_b = jnp.pad(params["w1"], ((0, 0), (0, pad_v))).astype(jnp.bfloat16)
    wvec_b = jnp.pad(params["word_vec"], ((0, pad_v), (0, 0))).astype(jnp.bfloat16)
    tvec_b = params["topic_vec"].astype(jnp.bfloat16)

    # fused mean/logvar head + (1, N) biases (small heads stay f32)
    w_ml = jnp.concatenate([params["wm"], params["wl"]], axis=0)       # (2K, Eh)
    b_ml = jnp.concatenate([params["bm"], params["bl"]])[None, :]      # (1, 2K)
    b1 = params["b1"][None, :]
    b2 = params["b2"][None, :]
    bd = params["bd"][None, :]

    # TODO(synk): at realistic vocab sizes raise vmem_limit_bytes (blog cache is
    # nvt*K*vt*4 bytes) and cap v_block at ~1024 on v7x (64 MiB VMEM).
    theta, nlkld = pl.pallas_call(
        functools.partial(gsm_kernel, num_topic=K, v_valid=V),
        out_shape=(jax.ShapeDtypeStruct((B, K), jnp.float32),
                   jax.ShapeDtypeStruct((B, 1), jnp.float32)),
        grid_spec=pltpu.PrefetchScalarGridSpec(
            num_scalar_prefetch=0,
            grid=(nb, 2, nvt),                                   # (batch blk, phase, V tile)
            in_specs=[
                pl.BlockSpec((tb, vt), lambda b, p, v: (b, v)),                 # bow (both phases)
                pl.BlockSpec((E2, vt), lambda b, p, v: (0, v * (1 - p))),       # w1 (phase 0 only)
                pl.BlockSpec((1, E2), lambda b, p, v: (0, 0)),                  # b1
                pl.BlockSpec((Eh, E2), lambda b, p, v: (0, 0)),                 # w2
                pl.BlockSpec((1, Eh), lambda b, p, v: (0, 0)),                  # b2
                pl.BlockSpec((2 * K, Eh), lambda b, p, v: (0, 0)),              # fused wm|wl
                pl.BlockSpec((1, 2 * K), lambda b, p, v: (0, 0)),               # fused bm|bl
                pl.BlockSpec((K, K), lambda b, p, v: (0, 0)),                   # wd
                pl.BlockSpec((1, K), lambda b, p, v: (0, 0)),                   # bd
                pl.BlockSpec((K, ni), lambda b, p, v: (0, 0)),                  # topic_vec (bf16)
                pl.BlockSpec((vt, ni), lambda b, p, v: (v * (1 - p), 0)),       # word_vec (phase 0)
            ],
            out_specs=(pl.BlockSpec((tb, K), lambda b, p, v: (b, 0)),   # theta (resident)
                       pl.BlockSpec((tb, 1), lambda b, p, v: (b, 0))),  # NL+KLD per example
            scratch_shapes=[
                pltpu.VMEM((tb, E2), jnp.float32),       # enc1 pre-activation accumulator
                pltpu.VMEM((K, 1), jnp.float32),         # beta running max
                pltpu.VMEM((K, 1), jnp.float32),         # beta running sum
                pltpu.VMEM((nvt, K, vt), jnp.float32),   # blog cache (phase0 -> phase1)
            ]),
        compiler_params=pltpu.CompilerParams(
            dimension_semantics=("parallel", "arbitrary", "arbitrary")),
    )(bow_b, w1_b, b1, params["w2"], b2, w_ml, b_ml,
      params["wd"], bd, tvec_b, wvec_b)
    return theta, nlkld


# ----------------------------------------------------------------------------
# Kernel 2: fused LSTM input projection (both directions in one (8H, E) matmul),
# emitting the forward / reverse bf16 streams as two outputs (no wrapper lane split).
# ----------------------------------------------------------------------------
def lstm_inproj_kernel(x_ref, w_ref, b_ref, of_ref, ob_ref, *, h4):
    y = _dotT(x_ref[...], w_ref[...]) + b_ref[...]            # (tm, 8H) f32
    of_ref[...] = y[:, :h4].astype(of_ref.dtype)
    ob_ref[...] = y[:, h4:].astype(ob_ref.dtype)


def lstm_input_proj(x, w_ih, b_ih, h4, *, block_m=512):
    M, E = x.shape
    tm = min(block_m, M)
    M_pad = pl.cdiv(M, tm) * tm
    if M_pad != M:
        x = jnp.pad(x, ((0, M_pad - M), (0, 0)))
    of, ob = pl.pallas_call(
        functools.partial(lstm_inproj_kernel, h4=h4),
        out_shape=(jax.ShapeDtypeStruct((M_pad, h4), jnp.bfloat16),
                   jax.ShapeDtypeStruct((M_pad, h4), jnp.bfloat16)),
        grid_spec=pltpu.PrefetchScalarGridSpec(
            num_scalar_prefetch=0,
            grid=(M_pad // tm,),
            in_specs=[pl.BlockSpec((tm, E), lambda i: (i, 0)),
                      pl.BlockSpec((2 * h4, E), lambda i: (0, 0)),
                      pl.BlockSpec((1, 2 * h4), lambda i: (0, 0))],
            out_specs=(pl.BlockSpec((tm, h4), lambda i: (i, 0)),
                       pl.BlockSpec((tm, h4), lambda i: (i, 0)))),
        compiler_params=pltpu.CompilerParams(dimension_semantics=("parallel",)),
    )(x, w_ih, b_ih)
    if M_pad != M:
        of, ob = of[:M], ob[:M]
    return of, ob


# ----------------------------------------------------------------------------
# Kernel 3: bidirectional LSTM recurrence (PyTorch gate order i, f, g, o).
# T_BLK timesteps per grid step (unrolled fori_loop), h/c + w_hh resident in VMEM,
# recurrent matmul in bf16 with f32 gate math.  The reverse direction is fed and
# written through time-reversed BlockSpec index maps (no wrapper flips/transposes).
# ----------------------------------------------------------------------------
def lstm_rec_kernel(xf_ref, xr_ref, whf_ref, whr_ref, hf_out_ref, hb_out_ref,
                    hf_s, cf_s, hb_s, cb_s, *, hidden, t_blk):
    tb = pl.program_id(0)

    @pl.when(tb == 0)
    def _init():
        hf_s[...] = jnp.zeros_like(hf_s)
        cf_s[...] = jnp.zeros_like(cf_s)
        hb_s[...] = jnp.zeros_like(hb_s)
        cb_s[...] = jnp.zeros_like(cb_s)

    whf = whf_ref[...]           # (4H, H) bf16, resident per grid step
    whr = whr_ref[...]

    def cell(x_t, wh, h, c):
        gates = x_t.astype(jnp.float32) + _dotT(h.astype(jnp.bfloat16), wh)
        i = _sigmoid(gates[:, 0 * hidden:1 * hidden])
        f = _sigmoid(gates[:, 1 * hidden:2 * hidden])
        g = jnp.tanh(gates[:, 2 * hidden:3 * hidden])
        o = _sigmoid(gates[:, 3 * hidden:4 * hidden])
        c_new = f * c + i * g
        h_new = o * jnp.tanh(c_new)
        return h_new, c_new

    def body(j, carry):
        hf, cf, hb, cb = carry
        hf, cf = cell(xf_ref[j], whf, hf, cf)        # forward: local time ascending
        hf_out_ref[j] = hf
        jr = t_blk - 1 - j                           # backward: local time descending
        hb, cb = cell(xr_ref[jr], whr, hb, cb)
        hb_out_ref[jr] = hb
        return hf, cf, hb, cb

    hf, cf, hb, cb = lax.fori_loop(
        0, t_blk, body, (hf_s[...], cf_s[...], hb_s[...], cb_s[...]), unroll=True)
    hf_s[...] = hf
    cf_s[...] = cf
    hb_s[...] = hb
    cb_s[...] = cb


def bilstm_forward(emb_sbe, p, hidden):
    """emb_sbe: (S, B, E) time-major bf16 embeddings. Returns time-major (S,B,H) x2."""
    S, B, E = emb_sbe.shape
    H4 = 4 * hidden

    w_ih = jnp.concatenate([p["w_ih_f"], p["w_ih_r"]], axis=0).astype(jnp.bfloat16)  # (8H, E)
    b_ih = jnp.concatenate([p["b_ih_f"] + p["b_hh_f"],
                            p["b_ih_r"] + p["b_hh_r"]])[None, :]                     # (1, 8H)

    xf, xr = lstm_input_proj(emb_sbe.reshape(S * B, E), w_ih, b_ih, H4)
    xf = xf.reshape(S, B, H4)          # forward-direction projected inputs (time-major)
    xr = xr.reshape(S, B, H4)          # reverse-direction projected inputs (original order)

    t_blk = next(t for t in (16, 8, 4, 2, 1) if S % t == 0)
    n_tblk = S // t_blk

    whf = p["w_hh_f"].astype(jnp.bfloat16)
    whr = p["w_hh_r"].astype(jnp.bfloat16)

    hf, hb = pl.pallas_call(
        functools.partial(lstm_rec_kernel, hidden=hidden, t_blk=t_blk),
        out_shape=(jax.ShapeDtypeStruct((S, B, hidden), jnp.float32),
                   jax.ShapeDtypeStruct((S, B, hidden), jnp.float32)),
        grid_spec=pltpu.PrefetchScalarGridSpec(
            num_scalar_prefetch=0,
            grid=(n_tblk,),
            in_specs=[pl.BlockSpec((t_blk, B, H4), lambda t: (t, 0, 0)),
                      pl.BlockSpec((t_blk, B, H4), lambda t: (n_tblk - 1 - t, 0, 0)),
                      pl.BlockSpec((H4, hidden), lambda t: (0, 0)),
                      pl.BlockSpec((H4, hidden), lambda t: (0, 0))],
            out_specs=(pl.BlockSpec((t_blk, B, hidden), lambda t: (t, 0, 0)),
                       pl.BlockSpec((t_blk, B, hidden), lambda t: (n_tblk - 1 - t, 0, 0))),
            scratch_shapes=[pltpu.VMEM((B, hidden), jnp.float32)] * 4),
        compiler_params=pltpu.CompilerParams(dimension_semantics=("arbitrary",)),
    )(xf, xr, whf, whr)
    return hf, hb


# ----------------------------------------------------------------------------
# Kernel 4: topic attention pooling, batch-blocked ("parallel" over batch blocks).
# h1 for the whole block is one big bf16 matmul; per batch row the (K, S) scores keep
# the sequence in lanes (lane-dense softmax) and the pooling is two MXU matmuls.
# Consumes the time-major LSTM outputs directly (no wrapper transposes / concat).
# ----------------------------------------------------------------------------
def att_pool_kernel(vf_ref, vb_ref, wf_ref, wb_ref, batt_ref, tvec_ref, theta_ref,
                    out_ref, *, bt, hidden):
    S = vf_ref.shape[0]
    ni = wf_ref.shape[0]
    vf = vf_ref[...]                                               # (S, bt, H) f32
    vb = vb_ref[...]
    vf_flat = vf.astype(jnp.bfloat16).reshape(S * bt, hidden)
    vb_flat = vb.astype(jnp.bfloat16).reshape(S * bt, hidden)
    h1 = jnp.tanh(_dotT(vf_flat, wf_ref[...]) + _dotT(vb_flat, wb_ref[...])
                  + batt_ref[...])                                 # (S*bt, ni) f32
    h1 = h1.reshape(S, bt, ni).astype(jnp.bfloat16)
    tvec = tvec_ref[...]                                           # (K, ni) bf16
    theta_full = theta_ref[...]                                    # (bt, K) f32
    for b in range(bt):
        scores = _dotT(tvec, h1[:, b, :])                          # (K, S) lane-dense
        m = jnp.max(scores, axis=-1, keepdims=True)
        e = jnp.exp(scores - m)
        attn = e / jnp.sum(e, axis=-1, keepdims=True)
        th = theta_full[b:b + 1, :]                                # (1, K)
        ta = jnp.dot(th, attn, preferred_element_type=jnp.float32)     # (1, S)
        out_ref[b:b + 1, 0:hidden] = jnp.dot(ta, vf[:, b, :],
                                             preferred_element_type=jnp.float32)
        out_ref[b:b + 1, hidden:2 * hidden] = jnp.dot(ta, vb[:, b, :],
                                                      preferred_element_type=jnp.float32)


def att_pool(hf, hb, watt, batt, topic_vec, theta):
    S, B, H = hf.shape
    ni = watt.shape[0]
    K = topic_vec.shape[0]
    bt = B if B <= 8 else (8 if B % 8 == 0 else B)

    watt_f = watt[:, :H].astype(jnp.bfloat16)          # fc_att weight split per direction
    watt_b = watt[:, H:].astype(jnp.bfloat16)
    tvec = topic_vec.astype(jnp.bfloat16)
    batt2 = batt[None, :]

    return pl.pallas_call(
        functools.partial(att_pool_kernel, bt=bt, hidden=H),
        out_shape=jax.ShapeDtypeStruct((B, 2 * H), jnp.float32),
        grid_spec=pltpu.PrefetchScalarGridSpec(
            num_scalar_prefetch=0,
            grid=(B // bt,),
            in_specs=[pl.BlockSpec((S, bt, H), lambda i: (0, i, 0)),   # forward states
                      pl.BlockSpec((S, bt, H), lambda i: (0, i, 0)),   # backward states
                      pl.BlockSpec((ni, H), lambda i: (0, 0)),
                      pl.BlockSpec((ni, H), lambda i: (0, 0)),
                      pl.BlockSpec((1, ni), lambda i: (0, 0)),
                      pl.BlockSpec((K, ni), lambda i: (0, 0)),
                      pl.BlockSpec((bt, K), lambda i: (i, 0))],
            out_specs=pl.BlockSpec((bt, 2 * H), lambda i: (i, 0))),
        compiler_params=pltpu.CompilerParams(dimension_semantics=("parallel",)),
    )(hf, hb, watt_f, watt_b, batt2, tvec, theta)


# ----------------------------------------------------------------------------
# Kernel 5: classifier head + sigmoid + BCE + topic_loss reduction (fused scalar path).
# TODO(synk): could be fused into the last att_pool grid step to also save the (B, 2H)
#             atten_out round trip; kept separate for generality over batch blocks.
# ----------------------------------------------------------------------------
def att_head_kernel(aout_ref, wfc_ref, bfc_ref, target_ref, nlkld_ref,
                    logit_ref, loss_ref):
    out = _dotT(aout_ref[...], wfc_ref[...]) + bfc_ref[...]        # (B, L)
    logit = _sigmoid(out)
    logit_ref[...] = logit
    t = target_ref[...]
    p = jnp.clip(logit, 1e-12, 1.0 - 1e-12)
    bce = -jnp.mean(t * jnp.log(p) + (1.0 - t) * jnp.log(1.0 - p))
    topic_loss = jnp.mean(nlkld_ref[...])                          # (NL + KLD).mean()
    loss_ref[...] = jnp.broadcast_to(topic_loss + bce, (1, 1))


def att_head(atten_out, wfc, bfc2d, target, nlkld):
    B = atten_out.shape[0]
    L = wfc.shape[0]
    return pl.pallas_call(
        att_head_kernel,
        out_shape=(jax.ShapeDtypeStruct((B, L), jnp.float32),
                   jax.ShapeDtypeStruct((1, 1), jnp.float32)),
        in_specs=[pl.BlockSpec(memory_space=pltpu.MemorySpace.VMEM)] * 5,
        out_specs=(pl.BlockSpec(memory_space=pltpu.MemorySpace.VMEM),
                   pl.BlockSpec(memory_space=pltpu.MemorySpace.VMEM)),
    )(atten_out, wfc, bfc2d, target, nlkld)


# ----------------------------------------------------------------------------
# Full Topic_Att forward (eval-mode semantics)
# ----------------------------------------------------------------------------
def topic_att_forward(x_tokens, text_bow, target, params, hidden):
    p = params
    # embedding lookup (gather) — XLA glue; time-major + bf16 so no LSTM-side relayouts
    emb = p["word_vec"].astype(jnp.bfloat16)[x_tokens.T]           # (S, B, ni)

    hf, hb = bilstm_forward(emb, p, hidden)                        # (S, B, H) x 2
    theta, nlkld = gsm_forward(text_bow, p)                        # (B, K), (B, 1) NL+KLD
    atten_out = att_pool(hf, hb, p["watt"], p["batt"], p["topic_vec"], theta)
    logit, loss = att_head(atten_out, p["wfc"], p["bfc"][None, :], target, nlkld)
    return logit, loss


if __name__ == "__main__":
    # args-equivalent config (small shapes)
    V = 32            # vocab_size
    ni = 16           # topic / word embedding dim == args.embed
    K = 8             # num_topic
    enc_nh = 16
    embed = ni
    hidden = 16       # hidden_size
    num_labels = 8
    B, S = 2, 8       # batch, padded sequence length

    keys = iter(jax.random.split(jax.random.PRNGKey(0), 40))

    def nrm(shape, std=0.1):
        return (std * jax.random.normal(next(keys), shape)).astype(jnp.float32)

    params = {
        # GSM params
        "word_vec": nrm((V, ni), 0.01),
        "topic_vec": nrm((K, ni), 1.0),
        "w1": nrm((2 * enc_nh, V)), "b1": nrm((2 * enc_nh,)),
        "w2": nrm((enc_nh, 2 * enc_nh)), "b2": nrm((enc_nh,)),
        "wm": nrm((K, enc_nh)), "bm": nrm((K,)),
        # logvar_fc zero-initialised (reset_parameters)
        "wl": jnp.zeros((K, enc_nh), jnp.float32), "bl": jnp.zeros((K,), jnp.float32),
        "wd": jax.random.uniform(next(keys), (K, K), jnp.float32, 0.0, 0.1),
        "bd": nrm((K,)),
        # attention / classifier
        "watt": nrm((ni, 2 * hidden)), "batt": nrm((ni,)),
        "wfc": nrm((num_labels, 2 * hidden)), "bfc": nrm((num_labels,)),
        # bidirectional LSTM (1 layer)
        "w_ih_f": nrm((4 * hidden, embed)), "w_hh_f": nrm((4 * hidden, hidden)),
        "b_ih_f": nrm((4 * hidden,)), "b_hh_f": nrm((4 * hidden,)),
        "w_ih_r": nrm((4 * hidden, embed)), "w_hh_r": nrm((4 * hidden, hidden)),
        "b_ih_r": nrm((4 * hidden,)), "b_hh_r": nrm((4 * hidden,)),
    }

    # TODO(synk): get_batch_idx / to_BOW scatter / mlb.transform are data-dependent
    # host-side preprocessing; their outputs (padded token ids, BoW matrix,
    # multi-hot targets) are synthesised directly here.
    x_tokens = jax.random.randint(next(keys), (B, S), 0, V)
    bow_mask = (jax.random.uniform(next(keys), (B, V)) > 0.5).astype(jnp.float32)
    text_bow = (jax.random.uniform(next(keys), (B, V)) * 3.0 * bow_mask).astype(jnp.float32)
    target = (jax.random.uniform(next(keys), (B, num_labels)) > 0.5).astype(jnp.float32)

    fwd = jax.jit(topic_att_forward, static_argnames=("hidden",))
    logit, loss = fwd(x_tokens, text_bow, target, params, hidden=hidden)
    jax.block_until_ready((logit, loss))
    assert logit.shape == (B, num_labels) and loss.shape == (1, 1)
    assert bool(jnp.isfinite(loss).all()) and bool(jnp.isfinite(logit).all())
    print("KERNEL_OK")
</pallas_src>

<mosaic_0001>
module attributes {stable_mosaic.version = 11 : i64} {
  func.func @lstm_inproj_kernel(%arg0: i32, %arg1: memref<16x16xbf16, #tpu.memory_space<vmem>>, %arg2: memref<128x16xbf16, #tpu.memory_space<vmem>>, %arg3: memref<1x128xf32, #tpu.memory_space<vmem>>, %arg4: memref<16x64xbf16, #tpu.memory_space<vmem>>, %arg5: memref<16x64xbf16, #tpu.memory_space<vmem>>) attributes {dimension_semantics = [#tpu.dimension_semantics<parallel>], iteration_bounds = array<i64: 1>, scalar_prefetch = 0 : i64, scratch_operands = 0 : i64, tpu.core_type = #tpu.core_type<tc>, window_params = [{transform_indices = @transform_0, window_bounds = array<i64: 16, 16>}, {pipeline_mode = #tpu.pipeline_mode<synchronous>, transform_indices = @transform_1, window_bounds = array<i64: 128, 16>}, {pipeline_mode = #tpu.pipeline_mode<synchronous>, transform_indices = @transform_2, window_bounds = array<i64: 1, 128>}, {transform_indices = @transform_3, window_bounds = array<i64: 16, 64>}, {transform_indices = @transform_4, window_bounds = array<i64: 16, 64>}]} {
    %c0 = arith.constant 0 : index
    %c0_0 = arith.constant 0 : index
    %0 = vector.load %arg1[%c0, %c0_0] : memref<16x16xbf16, #tpu.memory_space<vmem>>, vector<16x16xbf16>
    %c0_1 = arith.constant 0 : index
    %c0_2 = arith.constant 0 : index
    %1 = vector.load %arg2[%c0_1, %c0_2] : memref<128x16xbf16, #tpu.memory_space<vmem>>, vector<128x16xbf16>
    %cst = arith.constant dense<0.000000e+00> : vector<16x128xf32>
    %2 = tpu.matmul %0, %1, %cst {dimension_numbers = #tpu.dot_dimension_numbers<[1], [1], [0], [0], [0, 0, 1, 0], [], []>} : vector<16x16xbf16>, vector<128x16xbf16>, vector<16x128xf32> -> vector<16x128xf32>
    %c0_3 = arith.constant 0 : index
    %c0_4 = arith.constant 0 : index
    %3 = vector.load %arg3[%c0_3, %c0_4] : memref<1x128xf32, #tpu.memory_space<vmem>>, vector<1x128xf32>
    %4 = vector.broadcast %3 : vector<1x128xf32> to vector<16x128xf32>
    %5 = arith.addf %2, %4 : vector<16x128xf32>
    %6 = vector.extract_strided_slice %5 {offsets = [0, 0], sizes = [16, 64], strides = [1, 1]} : vector<16x128xf32> to vector<16x64xf32>
    %7 = arith.truncf %6 : vector<16x64xf32> to vector<16x64xbf16>
    %c0_5 = arith.constant 0 : index
    %c0_6 = arith.constant 0 : index
    %8 = vector.load %arg4[%c0_5, %c0_6] : memref<16x64xbf16, #tpu.memory_space<vmem>>, vector<16x64xbf16>
    tpu.vector_store %arg4[%c0_5, %c0_6], %7 {strides = array<i32>} : memref<16x64xbf16, #tpu.memory_space<vmem>>, vector<16x64xbf16>,
    %9 = vector.extract_strided_slice %5 {offsets = [0, 64], sizes = [16, 64], strides = [1, 1]} : vector<16x128xf32> to vector<16x64xf32>
    %10 = arith.truncf %9 : vector<16x64xf32> to vector<16x64xbf16>
    %c0_7 = arith.constant 0 : index
    %c0_8 = arith.constant 0 : index
    %11 = vector.load %arg5[%c0_7, %c0_8] : memref<16x64xbf16, #tpu.memory_space<vmem>>, vector<16x64xbf16>
    tpu.vector_store %arg5[%c0_7, %c0_8], %10 {strides = array<i32>} : memref<16x64xbf16, #tpu.memory_space<vmem>>, vector<16x64xbf16>,
    return
  }
  func.func @transform_0(%arg0: i32) -> (i32, i32) {
    %c0_i32 = arith.constant 0 : i32
    %c0_i32_0 = arith.constant 0 : i32
    return %arg0, %c0_i32 : i32, i32
  }
  func.func @transform_1(%arg0: i32) -> (i32, i32) {
    %c0_i32 = arith.constant 0 : i32
    %c0_i32_0 = arith.constant 0 : i32
    %c0_i32_1 = arith.constant 0 : i32
    return %c0_i32, %c0_i32_0 : i32, i32
  }
  func.func @transform_2(%arg0: i32) -> (i32, i32) {
    %c0_i32 = arith.constant 0 : i32
    %c0_i32_0 = arith.constant 0 : i32
    %c0_i32_1 = arith.constant 0 : i32
    return %c0_i32, %c0_i32_0 : i32, i32
  }
  func.func @transform_3(%arg0: i32) -> (i32, i32) {
    %c0_i32 = arith.constant 0 : i32
    %c0_i32_0 = arith.constant 0 : i32
    return %arg0, %c0_i32 : i32, i32
  }
  func.func @transform_4(%arg0: i32) -> (i32, i32) {
    %c0_i32 = arith.constant 0 : i32
    %c0_i32_0 = arith.constant 0 : i32
    return %arg0, %c0_i32 : i32, i32
  }
}

module attributes {stable_mosaic.version = 11 : i64} {
  func.func @lstm_rec_kernel(%arg0: i32, %arg1: memref<8x2x64xbf16, #tpu.memory_space<vmem>>, %arg2: memref<8x2x64xbf16, #tpu.memory_space<vmem>>, %arg3: memref<64x16xbf16, #tpu.memory_space<vmem>>, %arg4: memref<64x16xbf16, #tpu.memory_space<vmem>>, %arg5: memref<8x2x16xf32, #tpu.memory_space<vmem>>, %arg6: memref<8x2x16xf32, #tpu.memory_space<vmem>>, %arg7: memref<2x16xf32, #tpu.memory_space<vmem>>, %arg8: memref<2x16xf32, #tpu.memory_space<vmem>>, %arg9: memref<2x16xf32, #tpu.memory_space<vmem>>, %arg10: memref<2x16xf32, #tpu.memory_space<vmem>>) attributes {dimension_semantics = [#tpu.dimension_semantics<arbitrary>], iteration_bounds = array<i64: 1>, scalar_prefetch = 0 : i64, scratch_operands = 4 : i64, tpu.core_type = #tpu.core_type<tc>, window_params = [{transform_indices = @transform_0, window_bounds = array<i64: 8, 2, 64>}, {transform_indices = @transform_1, window_bounds = array<i64: 8, 2, 64>}, {pipeline_mode = #tpu.pipeline_mode<synchronous>, transform_indices = @transform_2, window_bounds = array<i64: 64, 16>}, {pipeline_mode = #tpu.pipeline_mode<synchronous>, transform_indices = @transform_3, window_bounds = array<i64: 64, 16>}, {transform_indices = @transform_4, window_bounds = array<i64: 8, 2, 16>}, {transform_indices = @transform_5, window_bounds = array<i64: 8, 2, 16>}]} {
    %c0_i32 = arith.constant 0 : i32
    %0 = arith.cmpi eq, %arg0, %c0_i32 : i32
    %1 = arith.extui %0 : i1 to i32
    %c0_i32_0 = arith.constant 0 : i32
    %2 = arith.cmpi ne, %1, %c0_i32_0 : i32
    scf.if %2 {
      %cst_252 = arith.constant 0.000000e+00 : f32
      %693 = vector.broadcast %cst_252 : f32 to vector<2x16xf32>
      %c0_253 = arith.constant 0 : index
      %c0_254 = arith.constant 0 : index
      %694 = vector.load %arg7[%c0_253, %c0_254] : memref<2x16xf32, #tpu.memory_space<vmem>>, vector<2x16xf32>
      tpu.vector_store %arg7[%c0_253, %c0_254], %693 {strides = array<i32>} : memref<2x16xf32, #tpu.memory_space<vmem>>, vector<2x16xf32>,
      %cst_255 = arith.constant 0.000000e+00 : f32
      %695 = vector.broadcast %cst_255 : f32 to vector<2x16xf32>
      %c0_256 = arith.constant 0 : index
      %c0_257 = arith.constant 0 : index
      %696 = vector.load %arg8[%c0_256, %c0_257] : memref<2x16xf32, #tpu.memory_space<vmem>>, vector<2x16xf32>
      tpu.vector_store %arg8[%c0_256, %c0_257], %695 {strides = array<i32>} : memref<2x16xf32, #tpu.memory_space<vmem>>, vector<2x16xf32>,
      %cst_258 = arith.constant 0.000000e+00 : f32
      %697 = vector.broadcast %cst_258 : f32 to vector<2x16xf32>
      %c0_259 = arith.constant 0 : index
      %c0_260 = arith.constant 0 : index
      %698 = vector.load %arg9[%c0_259, %c0_260] : memref<2x16xf32, #tpu.memory_space<vmem>>, vector<2x16xf32>
      tpu.vector_store %arg9[%c0_259, %c0_260], %697 {strides = array<i32>} : memref<2x16xf32, #tpu.memory_space<vmem>>, vector<2x16xf32>,
      %cst_261 = arith.constant 0.000000e+00 : f32
      %699 = vector.broadcast %cst_261 : f32 to vector<2x16xf32>
      %c0_262 = arith.constant 0 : index
      %c0_263 = arith.constant 0 : index
      %700 = vector.load %arg10[%c0_262, %c0_263] : memref<2x16xf32, #tpu.memory_space<vmem>>, vector<2x16xf32>
      tpu.vector_store %arg10[%c0_262, %c0_263], %699 {strides = array<i32>} : memref<2x16xf32, #tpu.memory_space<vmem>>, vector<2x16xf32>,
    } else {
    }
    %c0 = arith.constant 0 : index
    %c0_1 = arith.constant 0 : index
    %3 = vector.load %arg3[%c0, %c0_1] : memref<64x16xbf16, #tpu.memory_space<vmem>>, vector<64x16xbf16>
    %c0_2 = arith.constant 0 : index
    %c0_3 = arith.constant 0 : index
    %4 = vector.load %arg4[%c0_2, %c0_3] : memref<64x16xbf16, #tpu.memory_space<vmem>>, vector<64x16xbf16>
    %c0_4 = arith.constant 0 : index
    %c0_5 = arith.constant 0 : index
    %5 = vector.load %arg7[%c0_4, %c0_5] : memref<2x16xf32, #tpu.memory_space<vmem>>, vector<2x16xf32>
    %c0_6 = arith.constant 0 : index
    %c0_7 = arith.constant 0 : index
    %6 = vector.load %arg8[%c0_6, %c0_7] : memref<2x16xf32, #tpu.memory_space<vmem>>, vector<2x16xf32>
    %c0_8 = arith.constant 0 : index
    %c0_9 = arith.constant 0 : index
    %7 = vector.load %arg9[%c0_8, %c0_9] : memref<2x16xf32, #tpu.memory_space<vmem>>, vector<2x16xf32>
    %c0_10 = arith.constant 0 : index
    %c0_11 = arith.constant 0 : index
    %8 = vector.load %arg10[%c0_10, %c0_11] : memref<2x16xf32, #tpu.memory_space<vmem>>, vector<2x16xf32>
    %c0_i32_12 = arith.constant 0 : i32
    %9 = arith.index_cast %c0_i32_12 : i32 to index
    %c0_13 = arith.constant 0 : index
    %c0_14 = arith.constant 0 : index
    %10 = vector.load %arg1[%9, %c0_13, %c0_14] : memref<8x2x64xbf16, #tpu.memory_space<vmem>>, vector<1x2x64xbf16>
    %11 = vector.shape_cast %10 : vector<1x2x64xbf16> to vector<2x64xbf16>
    %12 = arith.extf %11 : vector<2x64xbf16> to vector<2x64xf32>
    %13 = arith.truncf %5 : vector<2x16xf32> to vector<2x16xbf16>
    %cst = arith.constant dense<0.000000e+00> : vector<2x64xf32>
    %14 = tpu.matmul %13, %3, %cst {dimension_numbers = #tpu.dot_dimension_numbers<[1], [1], [0], [0], [0, 0, 1, 0], [], []>} : vector<2x16xbf16>, vector<64x16xbf16>, vector<2x64xf32> -> vector<2x64xf32>
    %15 = arith.addf %12, %14 : vector<2x64xf32>
    %16 = vector.extract_strided_slice %15 {offsets = [0, 0], sizes = [2, 16], strides = [1, 1]} : vector<2x64xf32> to vector<2x16xf32>
    %cst_15 = arith.constant 5.000000e-01 : f32
    %17 = vector.broadcast %cst_15 : f32 to vector<2x16xf32>
    %18 = arith.mulf %17, %16 : vector<2x16xf32>
    %19 = math.tanh %18 : vector<2x16xf32>
    %cst_16 = arith.constant 1.000000e+00 : f32
    %20 = vector.broadcast %cst_16 : f32 to vector<2x16xf32>
    %21 = arith.addf %19, %20 : vector<2x16xf32>
    %cst_17 = arith.constant 5.000000e-01 : f32
    %22 = vector.broadcast %cst_17 : f32 to vector<2x16xf32>
    %23 = arith.mulf %22, %21 : vector<2x16xf32>
    %24 = vector.extract_strided_slice %15 {offsets = [0, 16], sizes = [2, 16], strides = [1, 1]} : vector<2x64xf32> to vector<2x16xf32>
    %cst_18 = arith.constant 5.000000e-01 : f32
    %25 = vector.broadcast %cst_18 : f32 to vector<2x16xf32>
    %26 = arith.mulf %25, %24 : vector<2x16xf32>
    %27 = math.tanh %26 : vector<2x16xf32>
    %cst_19 = arith.constant 1.000000e+00 : f32
    %28 = vector.broadcast %cst_19 : f32 to vector<2x16xf32>
    %29 = arith.addf %27, %28 : vector<2x16xf32>
    %cst_20 = arith.constant 5.000000e-01 : f32
    %30 = vector.broadcast %cst_20 : f32 to vector<2x16xf32>
    %31 = arith.mulf %30, %29 : vector<2x16xf32>
    %32 = vector.extract_strided_slice %15 {offsets = [0, 32], sizes = [2, 16], strides = [1, 1]} : vector<2x64xf32> to vector<2x16xf32>
    %33 = math.tanh %32 : vector<2x16xf32>
    %34 = vector.extract_strided_slice %15 {offsets = [0, 48], sizes = [2, 16], strides = [1, 1]} : vector<2x64xf32> to vector<2x16xf32>
    %cst_21 = arith.constant 5.000000e-01 : f32
    %35 = vector.broadcast %cst_21 : f32 to vector<2x16xf32>
    %36 = arith.mulf %35, %34 : vector<2x16xf32>
    %37 = math.tanh %36 : vector<2x16xf32>
    %cst_22 = arith.constant 1.000000e+00 : f32
    %38 = vector.broadcast %cst_22 : f32 to vector<2x16xf32>
    %39 = arith.addf %37, %38 : vector<2x16xf32>
    %cst_23 = arith.constant 5.000000e-01 : f32
    %40 = vector.broadcast %cst_23 : f32 to vector<2x16xf32>
    %41 = arith.mulf %40, %39 : vector<2x16xf32>
    %42 = arith.mulf %31, %6 : vector<2x16xf32>
    %43 = arith.mulf %23, %33 : vector<2x16xf32>
    %44 = arith.addf %42, %43 : vector<2x16xf32>
    %45 = math.tanh %44 : vector<2x16xf32>
    %46 = arith.mulf %41, %45 : vector<2x16xf32>
    %47 = arith.index_cast %c0_i32_12 : i32 to index
    %c0_24 = arith.constant 0 : index
    %c0_25 = arith.constant 0 : index
    %48 = vector.load %arg5[%47, %c0_24, %c0_25] : memref<8x2x16xf32, #tpu.memory_space<vmem>>, vector<1x2x16xf32>
    %49 = vector.shape_cast %48 : vector<1x2x16xf32> to vector<2x16xf32>
    %50 = vector.shape_cast %46 : vector<2x16xf32> to vector<1x2x16xf32>
    tpu.vector_store %arg5[%47, %c0_24, %c0_25], %50 {strides = array<i32>} : memref<8x2x16xf32, #tpu.memory_space<vmem>>, vector<1x2x16xf32>,
    %c7_i32 = arith.constant 7 : i32
    %51 = arith.subi %c7_i32, %c0_i32_12 : i32
    %52 = arith.index_cast %51 : i32 to index
    %c0_26 = arith.constant 0 : index
    %c0_27 = arith.constant 0 : index
    %53 = vector.load %arg2[%52, %c0_26, %c0_27] : memref<8x2x64xbf16, #tpu.memory_space<vmem>>, vector<1x2x64xbf16>
    %54 = vector.shape_cast %53 : vector<1x2x64xbf16> to vector<2x64xbf16>
    %55 = arith.extf %54 : vector<2x64xbf16> to vector<2x64xf32>
    %56 = arith.truncf %7 : vector<2x16xf32> to vector<2x16xbf16>
    %cst_28 = arith.constant dense<0.000000e+00> : vector<2x64xf32>
    %57 = tpu.matmul %56, %4, %cst_28 {dimension_numbers = #tpu.dot_dimension_numbers<[1], [1], [0], [0], [0, 0, 1, 0], [], []>} : vector<2x16xbf16>, vector<64x16xbf16>, vector<2x64xf32> -> vector<2x64xf32>
    %58 = arith.addf %55, %57 : vector<2x64xf32>
    %59 = vector.extract_strided_slice %58 {offsets = [0, 0], sizes = [2, 16], strides = [1, 1]} : vector<2x64xf32> to vector<2x16xf32>
    %cst_29 = arith.constant 5.000000e-01 : f32
    %60 = vector.broadcast %cst_29 : f32 to vector<2x16xf32>
    %61 = arith.mulf %60, %59 : vector<2x16xf32>
    %62 = math.tanh %61 : vector<2x16xf32>
    %cst_30 = arith.constant 1.000000e+00 : f32
    %63 = vector.broadcast %cst_30 : f32 to vector<2x16xf32>
    %64 = arith.addf %62, %63 : vector<2x16xf32>
    %cst_31 = arith.constant 5.000000e-01 : f32
    %65 = vector.broadcast %cst_31 : f32 to vector<2x16xf32>
    %66 = arith.mulf %65, %64 : vector<2x16xf32>
    %67 = vector.extract_strided_slice %58 {offsets = [0, 16], sizes = [2, 16], strides = [1, 1]} : vector<2x64xf32> to vector<2x16xf32>
    %cst_32 = arith.constant 5.000000e-01 : f32
    %68 = vector.broadcast %cst_32 : f32 to vector<2x16xf32>
    %69 = arith.mulf %68, %67 : vector<2x16xf32>
    %70 = math.tanh %69 : vector<2x16xf32>
    %cst_33 = arith.constant 1.000000e+00 : f32
    %71 = vector.broadcast %cst_33 : f32 to vector<2x16xf32>
    %72 = arith.addf %70, %71 : vector<2x16xf32>
    %cst_34 = arith.constant 5.000000e-01 : f32
    %73 = vector.broadcast %cst_34 : f32 to vector<2x16xf32>
    %74 = arith.mulf %73, %72 : vector<2x16xf32>
    %75 = vector.extract_strided_slice %58 {offsets = [0, 32], sizes = [2, 16], strides = [1, 1]} : vector<2x64xf32> to vector<2x16xf32>
    %76 = math.tanh %75 : vector<2x16xf32>
    %77 = vector.extract_strided_slice %58 {offsets = [0, 48], sizes = [2, 16], strides = [1, 1]} : vector<2x64xf32> to vector<2x16xf32>
    %cst_35 = arith.constant 5.000000e-01 : f32
    %78 = vector.broadcast %cst_35 : f32 to vector<2x16xf32>
    %79 = arith.mulf %78, %77 : vector<2x16xf32>
    %80 = math.tanh %79 : vector<2x16xf32>
    %cst_36 = arith.constant 1.000000e+00 : f32
    %81 = vector.broadcast %cst_36 : f32 to vector<2x16xf32>
    %82 = arith.addf %80, %81 : vector<2x16xf32>
    %cst_37 = arith.constant 5.000000e-01 : f32
    %83 = vector.broadcast %cst_37 : f32 to vector<2x16xf32>
    %84 = arith.mulf %83, %82 : vector<2x16xf32>
    %85 = arith.mulf %74, %8 : vector<2x16xf32>
    %86 = arith.mulf %66, %76 : vector<2x16xf32>
    %87 = arith.addf %85, %86 : vector<2x16xf32>
    %88 = math.tanh %87 : vector<2x16xf32>
    %89 = arith.mulf %84, %88 : vector<2x16xf32>
    %90 = arith.index_cast %51 : i32 to index
    %c0_38 = arith.constant 0 : index
    %c0_39 = arith.constant 0 : index
    %91 = vector.load %arg6[%90, %c0_38, %c0_39] : memref<8x2x16xf32, #tpu.memory_space<vmem>>, vector<1x2x16xf32>
    %92 = vector.shape_cast %91 : vector<1x2x16xf32> to vector<2x16xf32>
    %93 = vector.shape_cast %89 : vector<2x16xf32> to vector<1x2x16xf32>
    tpu.vector_store %arg6[%90, %c0_38, %c0_39], %93 {strides = array<i32>} : memref<8x2x16xf32, #tpu.memory_space<vmem>>, vector<1x2x16xf32>,
    %c1_i32 = arith.constant 1 : i32
    %94 = arith.index_cast %c1_i32 : i32 to index
    %c0_40 = arith.constant 0 : index
    %c0_41 = arith.constant 0 : index
    %95 = vector.load %arg1[%94, %c0_40, %c0_41] : memref<8x2x64xbf16, #tpu.memory_space<vmem>>, vector<1x2x64xbf16>
    %96 = vector.shape_cast %95 : vector<1x2x64xbf16> to vector<2x64xbf16>
    %97 = arith.extf %96 : vector<2x64xbf16> to vector<2x64xf32>
    %98 = arith.truncf %46 : vector<2x16xf32> to vector<2x16xbf16>
    %cst_42 = arith.constant dense<0.000000e+00> : vector<2x64xf32>
    %99 = tpu.matmul %98, %3, %cst_42 {dimension_numbers = #tpu.dot_dimension_numbers<[1], [1], [0], [0], [0, 0, 1, 0], [], []>} : vector<2x16xbf16>, vector<64x16xbf16>, vector<2x64xf32> -> vector<2x64xf32>
    %100 = arith.addf %97, %99 : vector<2x64xf32>
    %101 = vector.extract_strided_slice %100 {offsets = [0, 0], sizes = [2, 16], strides = [1, 1]} : vector<2x64xf32> to vector<2x16xf32>
    %cst_43 = arith.constant 5.000000e-01 : f32
    %102 = vector.broadcast %cst_43 : f32 to vector<2x16xf32>
    %103 = arith.mulf %102, %101 : vector<2x16xf32>
    %104 = math.tanh %103 : vector<2x16xf32>
    %cst_44 = arith.constant 1.000000e+00 : f32
    %105 = vector.broadcast %cst_44 : f32 to vector<2x16xf32>
    %106 = arith.addf %104, %105 : vector<2x16xf32>
    %cst_45 = arith.constant 5.000000e-01 : f32
    %107 = vector.broadcast %cst_45 : f32 to vector<2x16xf32>
    %108 = arith.mulf %107, %106 : vector<2x16xf32>
    %109 = vector.extract_strided_slice %100 {offsets = [0, 16], sizes = [2, 16], strides = [1, 1]} : vector<2x64xf32> to vector<2x16xf32>
    %cst_46 = arith.constant 5.000000e-01 : f32
    %110 = vector.broadcast %cst_46 : f32 to vector<2x16xf32>
    %111 = arith.mulf %110, %109 : vector<2x16xf32>
    %112 = math.tanh %111 : vector<2x16xf32>
    %cst_47 = arith.constant 1.000000e+00 : f32
    %113 = vector.broadcast %cst_47 : f32 to vector<2x16xf32>
    %114 = arith.addf %112, %113 : vector<2x16xf32>
    %cst_48 = arith.constant 5.000000e-01 : f32
    %115 = vector.broadcast %cst_48 : f32 to vector<2x16xf32>
    %116 = arith.mulf %115, %114 : vector<2x16xf32>
    %117 = vector.extract_strided_slice %100 {offsets = [0, 32], sizes = [2, 16], strides = [1, 1]} : vector<2x64xf32> to vector<2x16xf32>
    %118 = math.tanh %117 : vector<2x16xf32>
    %119 = vector.extract_strided_slice %100 {offsets = [0, 48], sizes = [2, 16], strides = [1, 1]} : vector<2x64xf32> to vector<2x16xf32>
    %cst_49 = arith.constant 5.000000e-01 : f32
    %120 = vector.broadcast %cst_49 : f32 to vector<2x16xf32>
    %121 = arith.mulf %120, %119 : vector<2x16xf32>
    %122 = math.tanh %121 : vector<2x16xf32>
    %cst_50 = arith.constant 1.000000e+00 : f32
    %123 = vector.broadcast %cst_50 : f32 to vector<2x16xf32>
    %124 = arith.addf %122, %123 : vector<2x16xf32>
    %cst_51 = arith.constant 5.000000e-01 : f32
    %125 = vector.broadcast %cst_51 : f32 to vector<2x16xf32>
    %126 = arith.mulf %125, %124 : vector<2x16xf32>
    %127 = arith.mulf %116, %44 : vector<2x16xf32>
    %128 = arith.mulf %108, %118 : vector<2x16xf32>
    %129 = arith.addf %127, %128 : vector<2x16xf32>
    %130 = math.tanh %129 : vector<2x16xf32>
    %131 = arith.mulf %126, %130 : vector<2x16xf32>
    %132 = arith.index_cast %c1_i32 : i32 to index
    %c0_52 = arith.constant 0 : index
    %c0_53 = arith.constant 0 : index
    %133 = vector.load %arg5[%132, %c0_52, %c0_53] : memref<8x2x16xf32, #tpu.memory_space<vmem>>, vector<1x2x16xf32>
    %134 = vector.shape_cast %133 : vector<1x2x16xf32> to vector<2x16xf32>
    %135 = vector.shape_cast %131 : vector<2x16xf32> to vector<1x2x16xf32>
    tpu.vector_store %arg5[%132, %c0_52, %c0_53], %135 {strides = array<i32>} : memref<8x2x16xf32, #tpu.memory_space<vmem>>, vector<1x2x16xf32>,
    %c7_i32_54 = arith.constant 7 : i32
    %136 = arith.subi %c7_i32_54, %c1_i32 : i32
    %137 = arith.index_cast %136 : i32 to index
    %c0_55 = arith.constant 0 : index
    %c0_56 = arith.constant 0 : index
    %138 = vector.load %arg2[%137, %c0_55, %c0_56] : memref<8x2x64xbf16, #tpu.memory_space<vmem>>, vector<1x2x64xbf16>
    %139 = vector.shape_cast %138 : vector<1x2x64xbf16> to vector<2x64xbf16>
    %140 = arith.extf %139 : vector<2x64xbf16> to vector<2x64xf32>
    %141 = arith.truncf %89 : vector<2x16xf32> to vector<2x16xbf16>
    %cst_57 = arith.constant dense<0.000000e+00> : vector<2x64xf32>
    %142 = tpu.matmul %141, %4, %cst_57 {dimension_numbers = #tpu.dot_dimension_numbers<[1], [1], [0], [0], [0, 0, 1, 0], [], []>} : vector<2x16xbf16>, vector<64x16xbf16>, vector<2x64xf32> -> vector<2x64xf32>
    %143 = arith.addf %140, %142 : vector<2x64xf32>
    %144 = vector.extract_strided_slice %143 {offsets = [0, 0], sizes = [2, 16], strides = [1, 1]} : vector<2x64xf32> to vector<2x16xf32>
    %cst_58 = arith.constant 5.000000e-01 : f32
    %145 = vector.broadcast %cst_58 : f32 to vector<2x16xf32>
    %146 = arith.mulf %145, %144 : vector<2x16xf32>
    %147 = math.tanh %146 : vector<2x16xf32>
    %cst_59 = arith.constant 1.000000e+00 : f32
    %148 = vector.broadcast %cst_59 : f32 to vector<2x16xf32>
    %149 = arith.addf %147, %148 : vector<2x16xf32>
    %cst_60 = arith.constant 5.000000e-01 : f32
    %150 = vector.broadcast %cst_60 : f32 to vector<2x16xf32>
    %151 = arith.mulf %150, %149 : vector<2x16xf32>
    %152 = vector.extract_strided_slice %143 {offsets = [0, 16], sizes = [2, 16], strides = [1, 1]} : vector<2x64xf32> to vector<2x16xf32>
    %cst_61 = arith.constant 5.000000e-01 : f32
    %153 = vector.broadcast %cst_61 : f32 to vector<2x16xf32>
    %154 = arith.mulf %153, %152 : vector<2x16xf32>
    %155 = math.tanh %154 : vector<2x16xf32>
    %cst_62 = arith.constant 1.000000e+00 : f32
    %156 = vector.broadcast %cst_62 : f32 to vector<2x16xf32>
    %157 = arith.addf %155, %156 : vector<2x16xf32>
    %cst_63 = arith.constant 5.000000e-01 : f32
    %158 = vector.broadcast %cst_63 : f32 to vector<2x16xf32>
    %159 = arith.mulf %158, %157 : vector<2x16xf32>
    %160 = vector.extract_strided_slice %143 {offsets = [0, 32], sizes = [2, 16], strides = [1, 1]} : vector<2x64xf32> to vector<2x16xf32>
    %161 = math.tanh %160 : vector<2x16xf32>
    %162 = vector.extract_strided_slice %143 {offsets = [0, 48], sizes = [2, 16], strides = [1, 1]} : vector<2x64xf32> to vector<2x16xf32>
    %cst_64 = arith.constant 5.000000e-01 : f32
    %163 = vector.broadcast %cst_64 : f32 to vector<2x16xf32>
    %164 = arith.mulf %163, %162 : vector<2x16xf32>
    %165 = math.tanh %164 : vector<2x16xf32>
    %cst_65 = arith.constant 1.000000e+00 : f32
    %166 = vector.broadcast %cst_65 : f32 to vector<2x16xf32>
    %167 = arith.addf %165, %166 : vector<2x16xf32>
    %cst_66 = arith.constant 5.000000e-01 : f32
    %168 = vector.broadcast %cst_66 : f32 to vector<2x16xf32>
    %169 = arith.mulf %168, %167 : vector<2x16xf32>
    %170 = arith.mulf %159, %87 : vector<2x16xf32>
    %171 = arith.mulf %151, %161 : vector<2x16xf32>
    %172 = arith.addf %170, %171 : vector<2x16xf32>
    %173 = math.tanh %172 : vector<2x16xf32>
    %174 = arith.mulf %169, %173 : vector<2x16xf32>
    %175 = arith.index_cast %136 : i32 to index
    %c0_67 = arith.constant 0 : index
    %c0_68 = arith.constant 0 : index
    %176 = vector.load %arg6[%175, %c0_67, %c0_68] : memref<8x2x16xf32, #tpu.memory_space<vmem>>, vector<1x2x16xf32>
    %177 = vector.shape_cast %176 : vector<1x2x16xf32> to vector<2x16xf32>
    %178 = vector.shape_cast %174 : vector<2x16xf32> to vector<1x2x16xf32>
    tpu.vector_store %arg6[%175, %c0_67, %c0_68], %178 {strides = array<i32>} : memref<8x2x16xf32, #tpu.memory_space<vmem>>, vector<1x2x16xf32>,
    %c2_i32 = arith.constant 2 : i32
    %179 = arith.index_cast %c2_i32 : i32 to index
    %c0_69 = arith.constant 0 : index
    %c0_70 = arith.constant 0 : index
    %180 = vector.load %arg1[%179, %c0_69, %c0_70] : memref<8x2x64xbf16, #tpu.memory_space<vmem>>, vector<1x2x64xbf16>
    %181 = vector.shape_cast %180 : vector<1x2x64xbf16> to vector<2x64xbf16>
    %182 = arith.extf %181 : vector<2x64xbf16> to vector<2x64xf32>
    %183 = arith.truncf %131 : vector<2x16xf32> to vector<2x16xbf16>
    %cst_71 = arith.constant dense<0.000000e+00> : vector<2x64xf32>
    %184 = tpu.matmul %183, %3, %cst_71 {dimension_numbers = #tpu.dot_dimension_numbers<[1], [1], [0], [0], [0, 0, 1, 0], [], []>} : vector<2x16xbf16>, vector<64x16xbf16>, vector<2x64xf32> -> vector<2x64xf32>
    %185 = arith.addf %182, %184 : vector<2x64xf32>
    %186 = vector.extract_strided_slice %185 {offsets = [0, 0], sizes = [2, 16], strides = [1, 1]} : vector<2x64xf32> to vector<2x16xf32>
    %cst_72 = arith.constant 5.000000e-01 : f32
    %187 = vector.broadcast %cst_72 : f32 to vector<2x16xf32>
    %188 = arith.mulf %187, %186 : vector<2x16xf32>
    %189 = math.tanh %188 : vector<2x16xf32>
    %cst_73 = arith.constant 1.000000e+00 : f32
    %190 = vector.broadcast %cst_73 : f32 to vector<2x16xf32>
    %191 = arith.addf %189, %190 : vector<2x16xf32>
    %cst_74 = arith.constant 5.000000e-01 : f32
    %192 = vector.broadcast %cst_74 : f32 to vector<2x16xf32>
    %193 = arith.mulf %192, %191 : vector<2x16xf32>
    %194 = vector.extract_strided_slice %185 {offsets = [0, 16], sizes = [2, 16], strides = [1, 1]} : vector<2x64xf32> to vector<2x16xf32>
    %cst_75 = arith.constant 5.000000e-01 : f32
    %195 = vector.broadcast %cst_75 : f32 to vector<2x16xf32>
    %196 = arith.mulf %195, %194 : vector<2x16xf32>
    %197 = math.tanh %196 : vector<2x16xf32>
    %cst_76 = arith.constant 1.000000e+00 : f32
    %198 = vector.broadcast %cst_76 : f32 to vector<2x16xf32>
    %199 = arith.addf %197, %198 : vector<2x16xf32>
    %cst_77 = arith.constant 5.000000e-01 : f32
    %200 = vector.broadcast %cst_77 : f32 to vector<2x16xf32>
    %201 = arith.mulf %200, %199 : vector<2x16xf32>
    %202 = vector.extract_strided_slice %185 {offsets = [0, 32], sizes = [2, 16], strides = [1, 1]} : vector<2x64xf32> to vector<2x16xf32>
    %203 = math.tanh %202 : vector<2x16xf32>
    %204 = vector.extract_strided_slice %185 {offsets = [0, 48], sizes = [2, 16], strides = [1, 1]} : vector<2x64xf32> to vector<2x16xf32>
    %cst_78 = arith.constant 5.000000e-01 : f32
    %205 = vector.broadcast %cst_78 : f32 to vector<2x16xf32>
    %206 = arith.mulf %205, %204 : vector<2x16xf32>
    %207 = math.tanh %206 : vector<2x16xf32>
    %cst_79 = arith.constant 1.000000e+00 : f32
    %208 = vector.broadcast %cst_79 : f32 to vector<2x16xf32>
    %209 = arith.addf %207, %208 : vector<2x16xf32>
    %cst_80 = arith.constant 5.000000e-01 : f32
    %210 = vector.broadcast %cst_80 : f32 to vector<2x16xf32>
    %211 = arith.mulf %210, %209 : vector<2x16xf32>
    %212 = arith.mulf %201, %129 : vector<2x16xf32>
    %213 = arith.mulf %193, %203 : vector<2x16xf32>
    %214 = arith.addf %212, %213 : vector<2x16xf32>
    %215 = math.tanh %214 : vector<2x16xf32>
    %216 = arith.mulf %211, %215 : vector<2x16xf32>
    %217 = arith.index_cast %c2_i32 : i32 to index
    %c0_81 = arith.constant 0 : index
    %c0_82 = arith.constant 0 : index
    %218 = vector.load %arg5[%217, %c0_81, %c0_82] : memref<8x2x16xf32, #tpu.memory_space<vmem>>, vector<1x2x16xf32>
    %219 = vector.shape_cast %218 : vector<1x2x16xf32> to vector<2x16xf32>
    %220 = vector.shape_cast %216 : vector<2x16xf32> to vector<1x2x16xf32>
    tpu.vector_store %arg5[%217, %c0_81, %c0_82], %220 {strides = array<i32>} : memref<8x2x16xf32, #tpu.memory_space<vmem>>, vector<1x2x16xf32>,
    %c7_i32_83 = arith.constant 7 : i32
    %221 = arith.subi %c7_i32_83, %c2_i32 : i32
    %222 = arith.index_cast %221 : i32 to index
    %c0_84 = arith.constant 0 : index
    %c0_85 = arith.constant 0 : index
    %223 = vector.load %arg2[%222, %c0_84, %c0_85] : memref<8x2x64xbf16, #tpu.memory_space<vmem>>, vector<1x2x64xbf16>
    %224 = vector.shape_cast %223 : vector<1x2x64xbf16> to vector<2x64xbf16>
    %225 = arith.extf %224 : vector<2x64xbf16> to vector<2x64xf32>
    %226 = arith.truncf %174 : vector<2x16xf32> to vector<2x16xbf16>
    %cst_86 = arith.constant dense<0.000000e+00> : vector<2x64xf32>
    %227 = tpu.matmul %226, %4, %cst_86 {dimension_numbers = #tpu.dot_dimension_numbers<[1], [1], [0], [0], [0, 0, 1, 0], [], []>} : vector<2x16xbf16>, vector<64x16xbf16>, vector<2x64xf32> -> vector<2x64xf32>
    %228 = arith.addf %225, %227 : vector<2x64xf32>
    %229 = vector.extract_strided_slice %228 {offsets = [0, 0], sizes = [2, 16], strides = [1, 1]} : vector<2x64xf32> to vector<2x16xf32>
    %cst_87 = arith.constant 5.000000e-01 : f32
    %230 = vector.broadcast %cst_87 : f32 to vector<2x16xf32>
    %231 = arith.mulf %230, %229 : vector<2x16xf32>
    %232 = math.tanh %231 : vector<2x16xf32>
    %cst_88 = arith.constant 1.000000e+00 : f32
    %233 = vector.broadcast %cst_88 : f32 to vector<2x16xf32>
    %234 = arith.addf %232, %233 : vector<2x16xf32>
    %cst_89 = arith.constant 5.000000e-01 : f32
    %235 = vector.broadcast %cst_89 : f32 to vector<2x16xf32>
    %236 = arith.mulf %235, %234 : vector<2x16xf32>
    %237 = vector.extract_strided_slice %228 {offsets = [0, 16], sizes = [2, 16], strides = [1, 1]} : vector<2x64xf32> to vector<2x16xf32>
    %cst_90 = arith.constant 5.000000e-01 : f32
    %238 = vector.broadcast %cst_90 : f32 to vector<2x16xf32>
    %239 = arith.mulf %238, %237 : vector<2x16xf32>
    %240 = math.tanh %239 : vector<2x16xf32>
    %cst_91 = arith.constant 1.000000e+00 : f32
    %241 = vector.broadcast %cst_91 : f32 to vector<2x16xf32>
    %242 = arith.addf %240, %241 : vector<2x16xf32>
    %cst_92 = arith.constant 5.000000e-01 : f32
    %243 = vector.broadcast %cst_92 : f32 to vector<2x16xf32>
    %244 = arith.mulf %243, %242 : vector<2x16xf32>
    %245 = vector.extract_strided_slice %228 {offsets = [0, 32], sizes = [2, 16], strides = [1, 1]} : vector<2x64xf32> to vector<2x16xf32>
    %246 = math.tanh %245 : vector<2x16xf32>
    %247 = vector.extract_strided_slice %228 {offsets = [0, 48], sizes = [2, 16], strides = [1, 1]} : vector<2x64xf32> to vector<2x16xf32>
    %cst_93 = arith.constant 5.000000e-01 : f32
    %248 = vector.broadcast %cst_93 : f32 to vector<2x16xf32>
    %249 = arith.mulf %248, %247 : vector<2x16xf32>
    %250 = math.tanh %249 : vector<2x16xf32>
    %cst_94 = arith.constant 1.000000e+00 : f32
    %251 = vector.broadcast %cst_94 : f32 to vector<2x16xf32>
    %252 = arith.addf %250, %251 : vector<2x16xf32>
    %cst_95 = arith.constant 5.000000e-01 : f32
    %253 = vector.broadcast %cst_95 : f32 to vector<2x16xf32>
    %254 = arith.mulf %253, %252 : vector<2x16xf32>
    %255 = arith.mulf %244, %172 : vector<2x16xf32>
    %256 = arith.mulf %236, %246 : vector<2x16xf32>
    %257 = arith.addf %255, %256 : vector<2x16xf32>
    %258 = math.tanh %257 : vector<2x16xf32>
    %259 = arith.mulf %254, %258 : vector<2x16xf32>
    %260 = arith.index_cast %221 : i32 to index
    %c0_96 = arith.constant 0 : index
    %c0_97 = arith.constant 0 : index
    %261 = vector.load %arg6[%260, %c0_96, %c0_97] : memref<8x2x16xf32, #tpu.memory_space<vmem>>, vector<1x2x16xf32>
    %262 = vector.shape_cast %261 : vector<1x2x16xf32> to vector<2x16xf32>
    %263 = vector.shape_cast %259 : vector<2x16xf32> to vector<1x2x16xf32>
    tpu.vector_store %arg6[%260, %c0_96, %c0_97], %263 {strides = array<i32>} : memref<8x2x16xf32, #tpu.memory_space<vmem>>, vector<1x2x16xf32>,
    %c3_i32 = arith.constant 3 : i32
    %264 = arith.index_cast %c3_i32 : i32 to index
    %c0_98 = arith.constant 0 : index
    %c0_99 = arith.constant 0 : index
    %265 = vector.load %arg1[%264, %c0_98, %c0_99] : memref<8x2x64xbf16, #tpu.memory_space<vmem>>, vector<1x2x64xbf16>
    %266 = vector.shape_cast %265 : vector<1x2x64xbf16> to vector<2x64xbf16>
    %267 = arith.extf %266 : vector<2x64xbf16> to vector<2x64xf32>
    %268 = arith.truncf %216 : vector<2x16xf32> to vector<2x16xbf16>
    %cst_100 = arith.constant dense<0.000000e+00> : vector<2x64xf32>
    %269 = tpu.matmul %268, %3, %cst_100 {dimension_numbers = #tpu.dot_dimension_numbers<[1], [1], [0], [0], [0, 0, 1, 0], [], []>} : vector<2x16xbf16>, vector<64x16xbf16>, vector<2x64xf32> -> vector<2x64xf32>
    %270 = arith.addf %267, %269 : vector<2x64xf32>
    %271 = vector.extract_strided_slice %270 {offsets = [0, 0], sizes = [2, 16], strides = [1, 1]} : vector<2x64xf32> to vector<2x16xf32>
    %cst_101 = arith.constant 5.000000e-01 : f32
    %272 = vector.broadcast %cst_101 : f32 to vector<2x16xf32>
    %273 = arith.mulf %272, %271 : vector<2x16xf32>
    %274 = math.tanh %273 : vector<2x16xf32>
    %cst_102 = arith.constant 1.000000e+00 : f32
    %275 = vector.broadcast %cst_102 : f32 to vector<2x16xf32>
    %276 = arith.addf %274, %275 : vector<2x16xf32>
    %cst_103 = arith.constant 5.000000e-01 : f32
    %277 = vector.broadcast %cst_103 : f32 to vector<2x16xf32>
    %278 = arith.mulf %277, %276 : vector<2x16xf32>
    %279 = vector.extract_strided_slice %270 {offsets = [0, 16], sizes = [2, 16], strides = [1, 1]} : vector<2x64xf32> to vector<2x16xf32>
    %cst_104 = arith.constant 5.000000e-01 : f32
    %280 = vector.broadcast %cst_104 : f32 to vector<2x16xf32>
    %281 = arith.mulf %280, %279 : vector<2x16xf32>
    %282 = math.tanh %281 : vector<2x16xf32>
    %cst_105 = arith.constant 1.000000e+00 : f32
    %283 = vector.broadcast %cst_105 : f32 to vector<2x16xf32>
    %284 = arith.addf %282, %283 : vector<2x16xf32>
    %cst_106 = arith.constant 5.000000e-01 : f32
    %285 = vector.broadcast %cst_106 : f32 to vector<2x16xf32>
    %286 = arith.mulf %285, %284 : vector<2x16xf32>
    %287 = vector.extract_strided_slice %270 {offsets = [0, 32], sizes = [2, 16], strides = [1, 1]} : vector<2x64xf32> to vector<2x16xf32>
    %288 = math.tanh %287 : vector<2x16xf32>
    %289 = vector.extract_strided_slice %270 {offsets = [0, 48], sizes = [2, 16], strides = [1, 1]} : vector<2x64xf32> to vector<2x16xf32>
    %cst_107 = arith.constant 5.000000e-01 : f32
    %290 = vector.broadcast %cst_107 : f32 to vector<2x16xf32>
    %291 = arith.mulf %290, %289 : vector<2x16xf32>
    %292 = math.tanh %291 : vector<2x16xf32>
    %cst_108 = arith.constant 1.000000e+00 : f32
    %293 = vector.broadcast %cst_108 : f32 to vector<2x16xf32>
    %294 = arith.addf %292, %293 : vector<2x16xf32>
    %cst_109 = arith.constant 5.000000e-01 : f32
    %295 = vector.broadcast %cst_109 : f32 to vector<2x16xf32>
    %296 = arith.mulf %295, %294 : vector<2x16xf32>
    %297 = arith.mulf %286, %214 : vector<2x16xf32>
    %298 = arith.mulf %278, %288 : vector<2x16xf32>
    %299 = arith.addf %297, %298 : vector<2x16xf32>
    %300 = math.tanh %299 : vector<2x16xf32>
    %301 = arith.mulf %296, %300 : vector<2x16xf32>
    %302 = arith.index_cast %c3_i32 : i32 to index
    %c0_110 = arith.constant 0 : index
    %c0_111 = arith.constant 0 : index
    %303 = vector.load %arg5[%302, %c0_110, %c0_111] : memref<8x2x16xf32, #tpu.memory_space<vmem>>, vector<1x2x16xf32>
    %304 = vector.shape_cast %303 : vector<1x2x16xf32> to vector<2x16xf32>
    %305 = vector.shape_cast %301 : vector<2x16xf32> to vector<1x2x16xf32>
    tpu.vector_store %arg5[%302, %c0_110, %c0_111], %305 {strides = array<i32>} : memref<8x2x16xf32, #tpu.memory_space<vmem>>, vector<1x2x16xf32>,
    %c7_i32_112 = arith.constant 7 : i32
    %306 = arith.subi %c7_i32_112, %c3_i32 : i32
    %307 = arith.index_cast %306 : i32 to index
    %c0_113 = arith.constant 0 : index
    %c0_114 = arith.constant 0 : index
    %308 = vector.load %arg2[%307, %c0_113, %c0_114] : memref<8x2x64xbf16, #tpu.memory_space<vmem>>, vector<1x2x64xbf16>
    %309 = vector.shape_cast %308 : vector<1x2x64xbf16> to vector<2x64xbf16>
    %310 = arith.extf %309 : vector<2x64xbf16> to vector<2x64xf32>
    %311 = arith.truncf %259 : vector<2x16xf32> to vector<2x16xbf16>
    %cst_115 = arith.constant dense<0.000000e+00> : vector<2x64xf32>
    %312 = tpu.matmul %311, %4, %cst_115 {dimension_numbers = #tpu.dot_dimension_numbers<[1], [1], [0], [0], [0, 0, 1, 0], [], []>} : vector<2x16xbf16>, vector<64x16xbf16>, vector<2x64xf32> -> vector<2x64xf32>
    %313 = arith.addf %310, %312 : vector<2x64xf32>
    %314 = vector.extract_strided_slice %313 {offsets = [0, 0], sizes = [2, 16], strides = [1, 1]} : vector<2x64xf32> to vector<2x16xf32>
    %cst_116 = arith.constant 5.000000e-01 : f32
    %315 = vector.broadcast %cst_116 : f32 to vector<2x16xf32>
    %316 = arith.mulf %315, %314 : vector<2x16xf32>
    %317 = math.tanh %316 : vector<2x16xf32>
    %cst_117 = arith.constant 1.000000e+00 : f32
    %318 = vector.broadcast %cst_117 : f32 to vector<2x16xf32>
    %319 = arith.addf %317, %318 : vector<2x16xf32>
    %cst_118 = arith.constant 5.000000e-01 : f32
    %320 = vector.broadcast %cst_118 : f32 to vector<2x16xf32>
    %321 = arith.mulf %320, %319 : vector<2x16xf32>
    %322 = vector.extract_strided_slice %313 {offsets = [0, 16], sizes = [2, 16], strides = [1, 1]} : vector<2x64xf32> to vector<2x16xf32>
    %cst_119 = arith.constant 5.000000e-01 : f32
    %323 = vector.broadcast %cst_119 : f32 to vector<2x16xf32>
    %324 = arith.mulf %323, %322 : vector<2x16xf32>
    %325 = math.tanh %324 : vector<2x16xf32>
    %cst_120 = arith.constant 1.000000e+00 : f32
    %326 = vector.broadcast %cst_120 : f32 to vector<2x16xf32>
    %327 = arith.addf %325, %326 : vector<2x16xf32>
    %cst_121 = arith.constant 5.000000e-01 : f32
    %328 = vector.broadcast %cst_121 : f32 to vector<2x16xf32>
    %329 = arith.mulf %328, %327 : vector<2x16xf32>
    %330 = vector.extract_strided_slice %313 {offsets = [0, 32], sizes = [2, 16], strides = [1, 1]} : vector<2x64xf32> to vector<2x16xf32>
    %331 = math.tanh %330 : vector<2x16xf32>
    %332 = vector.extract_strided_slice %313 {offsets = [0, 48], sizes = [2, 16], strides = [1, 1]} : vector<2x64xf32> to vector<2x16xf32>
    %cst_122 = arith.constant 5.000000e-01 : f32
    %333 = vector.broadcast %cst_122 : f32 to vector<2x16xf32>
    %334 = arith.mulf %333, %332 : vector<2x16xf32>
    %335 = math.tanh %334 : vector<2x16xf32>
    %cst_123 = arith.constant 1.000000e+00 : f32
    %336 = vector.broadcast %cst_123 : f32 to vector<2x16xf32>
    %337 = arith.addf %335, %336 : vector<2x16xf32>
    %cst_124 = arith.constant 5.000000e-01 : f32
    %338 = vector.broadcast %cst_124 : f32 to vector<2x16xf32>
    %339 = arith.mulf %338, %337 : vector<2x16xf32>
    %340 = arith.mulf %329, %257 : vector<2x16xf32>
    %341 = arith.mulf %321, %331 : vector<2x16xf32>
    %342 = arith.addf %340, %341 : vector<2x16xf32>
    %343 = math.tanh %342 : vector<2x16xf32>
    %344 = arith.mulf %339, %343 : vector<2x16xf32>
    %345 = arith.index_cast %306 : i32 to index
    %c0_125 = arith.constant 0 : index
    %c0_126 = arith.constant 0 : index
    %346 = vector.load %arg6[%345, %c0_125, %c0_126] : memref<8x2x16xf32, #tpu.memory_space<vmem>>, vector<1x2x16xf32>
    %347 = vector.shape_cast %346 : vector<1x2x16xf32> to vector<2x16xf32>
    %348 = vector.shape_cast %344 : vector<2x16xf32> to vector<1x2x16xf32>
    tpu.vector_store %arg6[%345, %c0_125, %c0_126], %348 {strides = array<i32>} : memref<8x2x16xf32, #tpu.memory_space<vmem>>, vector<1x2x16xf32>,
    %c4_i32 = arith.constant 4 : i32
    %349 = arith.index_cast %c4_i32 : i32 to index
    %c0_127 = arith.constant 0 : index
    %c0_128 = arith.constant 0 : index
    %350 = vector.load %arg1[%349, %c0_127, %c0_128] : memref<8x2x64xbf16, #tpu.memory_space<vmem>>, vector<1x2x64xbf16>
    %351 = vector.shape_cast %350 : vector<1x2x64xbf16> to vector<2x64xbf16>
    %352 = arith.extf %351 : vector<2x64xbf16> to vector<2x64xf32>
    %353 = arith.truncf %301 : vector<2x16xf32> to vector<2x16xbf16>
    %cst_129 = arith.constant dense<0.000000e+00> : vector<2x64xf32>
    %354 = tpu.matmul %353, %3, %cst_129 {dimension_numbers = #tpu.dot_dimension_numbers<[1], [1], [0], [0], [0, 0, 1, 0], [], []>} : vector<2x16xbf16>, vector<64x16xbf16>, vector<2x64xf32> -> vector<2x64xf32>
    %355 = arith.addf %352, %354 : vector<2x64xf32>
    %356 = vector.extract_strided_slice %355 {offsets = [0, 0], sizes = [2, 16], strides = [1, 1]} : vector<2x64xf32> to vector<2x16xf32>
    %cst_130 = arith.constant 5.000000e-01 : f32
    %357 = vector.broadcast %cst_130 : f32 to vector<2x16xf32>
    %358 = arith.mulf %357, %356 : vector<2x16xf32>
    %359 = math.tanh %358 : vector<2x16xf32>
    %cst_131 = arith.constant 1.000000e+00 : f32
    %360 = vector.broadcast %cst_131 : f32 to vector<2x16xf32>
    %361 = arith.addf %359, %360 : vector<2x16xf32>
    %cst_132 = arith.constant 5.000000e-01 : f32
    %362 = vector.broadcast %cst_132 : f32 to vector<2x16xf32>
    %363 = arith.mulf %362, %361 : vector<2x16xf32>
    %364 = vector.extract_strided_slice %355 {offsets = [0, 16], sizes = [2, 16], strides = [1, 1]} : vector<2x64xf32> to vector<2x16xf32>
    %cst_133 = arith.constant 5.000000e-01 : f32
    %365 = vector.broadcast %cst_133 : f32 to vector<2x16xf32>
    %366 = arith.mulf %365, %364 : vector<2x16xf32>
    %367 = math.tanh %366 : vector<2x16xf32>
    %cst_134 = arith.constant 1.000000e+00 : f32
    %368 = vector.broadcast %cst_134 : f32 to vector<2x16xf32>
    %369 = arith.addf %367, %368 : vector<2x16xf32>
    %cst_135 = arith.constant 5.000000e-01 : f32
    %370 = vector.broadcast %cst_135 : f32 to vector<2x16xf32>
    %371 = arith.mulf %370, %369 : vector<2x16xf32>
    %372 = vector.extract_strided_slice %355 {offsets = [0, 32], sizes = [2, 16], strides = [1, 1]} : vector<2x64xf32> to vector<2x16xf32>
    %373 = math.tanh %372 : vector<2x16xf32>
    %374 = vector.extract_strided_slice %355 {offsets = [0, 48], sizes = [2, 16], strides = [1, 1]} : vector<2x64xf32> to vector<2x16xf32>
    %cst_136 = arith.constant 5.000000e-01 : f32
    %375 = vector.broadcast %cst_136 : f32 to vector<2x16xf32>
    %376 = arith.mulf %375, %374 : vector<2x16xf32>
    %377 = math.tanh %376 : vector<2x16xf32>
    %cst_137 = arith.constant 1.000000e+00 : f32
    %378 = vector.broadcast %cst_137 : f32 to vector<2x16xf32>
    %379 = arith.addf %377, %378 : vector<2x16xf32>
    %cst_138 = arith.constant 5.000000e-01 : f32
    %380 = vector.broadcast %cst_138 : f32 to vector<2x16xf32>
    %381 = arith.mulf %380, %379 : vector<2x16xf32>
    %382 = arith.mulf %371, %299 : vector<2x16xf32>
    %383 = arith.mulf %363, %373 : vector<2x16xf32>
    %384 = arith.addf %382, %383 : vector<2x16xf32>
    %385 = math.tanh %384 : vector<2x16xf32>
    %386 = arith.mulf %381, %385 : vector<2x16xf32>
    %387 = arith.index_cast %c4_i32 : i32 to index
    %c0_139 = arith.constant 0 : index
    %c0_140 = arith.constant 0 : index
    %388 = vector.load %arg5[%387, %c0_139, %c0_140] : memref<8x2x16xf32, #tpu.memory_space<vmem>>, vector<1x2x16xf32>
    %389 = vector.shape_cast %388 : vector<1x2x16xf32> to vector<2x16xf32>
    %390 = vector.shape_cast %386 : vector<2x16xf32> to vector<1x2x16xf32>
    tpu.vector_store %arg5[%387, %c0_139, %c0_140], %390 {strides = array<i32>} : memref<8x2x16xf32, #tpu.memory_space<vmem>>, vector<1x2x16xf32>,
    %c7_i32_141 = arith.constant 7 : i32
    %391 = arith.subi %c7_i32_141, %c4_i32 : i32
    %392 = arith.index_cast %391 : i32 to index
    %c0_142 = arith.constant 0 : index
    %c0_143 = arith.constant 0 : index
    %393 = vector.load %arg2[%392, %c0_142, %c0_143] : memref<8x2x64xbf16, #tpu.memory_space<vmem>>, vector<1x2x64xbf16>
    %394 = vector.shape_cast %393 : vector<1x2x64xbf16> to vector<2x64xbf16>
    %395 = arith.extf %394 : vector<2x64xbf16> to vector<2x64xf32>
    %396 = arith.truncf %344 : vector<2x16xf32> to vector<2x16xbf16>
    %cst_144 = arith.constant dense<0.000000e+00> : vector<2x64xf32>
    %397 = tpu.matmul %396, %4, %cst_144 {dimension_numbers = #tpu.dot_dimension_numbers<[1], [1], [0], [0], [0, 0, 1, 0], [], []>} : vector<2x16xbf16>, vector<64x16xbf16>, vector<2x64xf32> -> vector<2x64xf32>
    %398 = arith.addf %395, %397 : vector<2x64xf32>
    %399 = vector.extract_strided_slice %398 {offsets = [0, 0], sizes = [2, 16], strides = [1, 1]} : vector<2x64xf32> to vector<2x16xf32>
    %cst_145 = arith.constant 5.000000e-01 : f32
    %400 = vector.broadcast %cst_145 : f32 to vector<2x16xf32>
    %401 = arith.mulf %400, %399 : vector<2x16xf32>
    %402 = math.tanh %401 : vector<2x16xf32>
    %cst_146 = arith.constant 1.000000e+00 : f32
    %403 = vector.broadcast %cst_146 : f32 to vector<2x16xf32>
    %404 = arith.addf %402, %403 : vector<2x16xf32>
    %cst_147 = arith.constant 5.000000e-01 : f32
    %405 = vector.broadcast %cst_147 : f32 to vector<2x16xf32>
    %406 = arith.mulf %405, %404 : vector<2x16xf32>
    %407 = vector.extract_strided_slice %398 {offsets = [0, 16], sizes = [2, 16], strides = [1, 1]} : vector<2x64xf32> to vector<2x16xf32>
    %cst_148 = arith.constant 5.000000e-01 : f32
    %408 = vector.broadcast %cst_148 : f32 to vector<2x16xf32>
    %409 = arith.mulf %408, %407 : vector<2x16xf32>
    %410 = math.tanh %409 : vector<2x16xf32>
    %cst_149 = arith.constant 1.000000e+00 : f32
    %411 = vector.broadcast %cst_149 : f32 to vector<2x16xf32>
    %412 = arith.addf %410, %411 : vector<2x16xf32>
    %cst_150 = arith.constant 5.000000e-01 : f32
    %413 = vector.broadcast %cst_150 : f32 to vector<2x16xf32>
    %414 = arith.mulf %413, %412 : vector<2x16xf32>
    %415 = vector.extract_strided_slice %398 {offsets = [0, 32], sizes = [2, 16], strides = [1, 1]} : vector<2x64xf32> to vector<2x16xf32>
    %416 = math.tanh %415 : vector<2x16xf32>
    %417 = vector.extract_strided_slice %398 {offsets = [0, 48], sizes = [2, 16], strides = [1, 1]} : vector<2x64xf32> to vector<2x16xf32>
    %cst_151 = arith.constant 5.000000e-01 : f32
    %418 = vector.broadcast %cst_151 : f32 to vector<2x16xf32>
    %419 = arith.mulf %418, %417 : vector<2x16xf32>
    %420 = math.tanh %419 : vector<2x16xf32>
    %cst_152 = arith.constant 1.000000e+00 : f32
    %421 = vector.broadcast %cst_152 : f32 to vector<2x16xf32>
    %422 = arith.addf %420, %421 : vector<2x16xf32>
    %cst_153 = arith.constant 5.000000e-01 : f32
    %423 = vector.broadcast %cst_153 : f32 to vector<2x16xf32>
    %424 = arith.mulf %423, %422 : vector<2x16xf32>
    %425 = arith.mulf %414, %342 : vector<2x16xf32>
    %426 = arith.mulf %406, %416 : vector<2x16xf32>
    %427 = arith.addf %425, %426 : vector<2x16xf32>
    %428 = math.tanh %427 : vector<2x16xf32>
    %429 = arith.mulf %424, %428 : vector<2x16xf32>
    %430 = arith.index_cast %391 : i32 to index
    %c0_154 = arith.constant 0 : index
    %c0_155 = arith.constant 0 : index
    %431 = vector.load %arg6[%430, %c0_154, %c0_155] : memref<8x2x16xf32, #tpu.memory_space<vmem>>, vector<1x2x16xf32>
    %432 = vector.shape_cast %431 : vector<1x2x16xf32> to vector<2x16xf32>
    %433 = vector.shape_cast %429 : vector<2x16xf32> to vector<1x2x16xf32>
    tpu.vector_store %arg6[%430, %c0_154, %c0_155], %433 {strides = array<i32>} : memref<8x2x16xf32, #tpu.memory_space<vmem>>, vector<1x2x16xf32>,
    %c5_i32 = arith.constant 5 : i32
    %434 = arith.index_cast %c5_i32 : i32 to index
    %c0_156 = arith.constant 0 : index
    %c0_157 = arith.constant 0 : index
    %435 = vector.load %arg1[%434, %c0_156, %c0_157] : memref<8x2x64xbf16, #tpu.memory_space<vmem>>, vector<1x2x64xbf16>
    %436 = vector.shape_cast %435 : vector<1x2x64xbf16> to vector<2x64xbf16>
    %437 = arith.extf %436 : vector<2x64xbf16> to vector<2x64xf32>
    %438 = arith.truncf %386 : vector<2x16xf32> to vector<2x16xbf16>
    %cst_158 = arith.constant dense<0.000000e+00> : vector<2x64xf32>
    %439 = tpu.matmul %438, %3, %cst_158 {dimension_numbers = #tpu.dot_dimension_numbers<[1], [1], [0], [0], [0, 0, 1, 0], [], []>} : vector<2x16xbf16>, vector<64x16xbf16>, vector<2x64xf32> -> vector<2x64xf32>
    %440 = arith.addf %437, %439 : vector<2x64xf32>
    %441 = vector.extract_strided_slice %440 {offsets = [0, 0], sizes = [2, 16], strides = [1, 1]} : vector<2x64xf32> to vector<2x16xf32>
    %cst_159 = arith.constant 5.000000e-01 : f32
    %442 = vector.broadcast %cst_159 : f32 to vector<2x16xf32>
    %443 = arith.mulf %442, %441 : vector<2x16xf32>
    %444 = math.tanh %443 : vector<2x16xf32>
    %cst_160 = arith.constant 1.000000e+00 : f32
    %445 = vector.broadcast %cst_160 : f32 to vector<2x16xf32>
    %446 = arith.addf %444, %445 : vector<2x16xf32>
    %cst_161 = arith.constant 5.000000e-01 : f32
    %447 = vector.broadcast %cst_161 : f32 to vector<2x16xf32>
    %448 = arith.mulf %447, %446 : vector<2x16xf32>
    %449 = vector.extract_strided_slice %440 {offsets = [0, 16], sizes = [2, 16], strides = [1, 1]} : vector<2x64xf32> to vector<2x16xf32>
    %cst_162 = arith.constant 5.000000e-01 : f32
    %450 = vector.broadcast %cst_162 : f32 to vector<2x16xf32>
    %451 = arith.mulf %450, %449 : vector<2x16xf32>
    %452 = math.tanh %451 : vector<2x16xf32>
    %cst_163 = arith.constant 1.000000e+00 : f32
    %453 = vector.broadcast %cst_163 : f32 to vector<2x16xf32>
    %454 = arith.addf %452, %453 : vector<2x16xf32>
    %cst_164 = arith.constant 5.000000e-01 : f32
    %455 = vector.broadcast %cst_164 : f32 to vector<2x16xf32>
    %456 = arith.mulf %455, %454 : vector<2x16xf32>
    %457 = vector.extract_strided_slice %440 {offsets = [0, 32], sizes = [2, 16], strides = [1, 1]} : vector<2x64xf32> to vector<2x16xf32>
    %458 = math.tanh %457 : vector<2x16xf32>
    %459 = vector.extract_strided_slice %440 {offsets = [0, 48], sizes = [2, 16], strides = [1, 1]} : vector<2x64xf32> to vector<2x16xf32>
    %cst_165 = arith.constant 5.000000e-01 : f32
    %460 = vector.broadcast %cst_165 : f32 to vector<2x16xf32>
    %461 = arith.mulf %460, %459 : vector<2x16xf32>
    %462 = math.tanh %461 : vector<2x16xf32>
    %cst_166 = arith.constant 1.000000e+00 : f32
    %463 = vector.broadcast %cst_166 : f32 to vector<2x16xf32>
    %464 = arith.addf %462, %463 : vector<2x16xf32>
    %cst_167 = arith.constant 5.000000e-01 : f32
    %465 = vector.broadcast %cst_167 : f32 to vector<2x16xf32>
    %466 = arith.mulf %465, %464 : vector<2x16xf32>
    %467 = arith.mulf %456, %384 : vector<2x16xf32>
    %468 = arith.mulf %448, %458 : vector<2x16xf32>
    %469 = arith.addf %467, %468 : vector<2x16xf32>
    %470 = math.tanh %469 : vector<2x16xf32>
    %471 = arith.mulf %466, %470 : vector<2x16xf32>
    %472 = arith.index_cast %c5_i32 : i32 to index
    %c0_168 = arith.constant 0 : index
    %c0_169 = arith.constant 0 : index
    %473 = vector.load %arg5[%472, %c0_168, %c0_169] : memref<8x2x16xf32, #tpu.memory_space<vmem>>, vector<1x2x16xf32>
    %474 = vector.shape_cast %473 : vector<1x2x16xf32> to vector<2x16xf32>
    %475 = vector.shape_cast %471 : vector<2x16xf32> to vector<1x2x16xf32>
    tpu.vector_store %arg5[%472, %c0_168, %c0_169], %475 {strides = array<i32>} : memref<8x2x16xf32, #tpu.memory_space<vmem>>, vector<1x2x16xf32>,
    %c7_i32_170 = arith.constant 7 : i32
    %476 = arith.subi %c7_i32_170, %c5_i32 : i32
    %477 = arith.index_cast %476 : i32 to index
    %c0_171 = arith.constant 0 : index
    %c0_172 = arith.constant 0 : index
    %478 = vector.load %arg2[%477, %c0_171, %c0_172] : memref<8x2x64xbf16, #tpu.memory_space<vmem>>, vector<1x2x64xbf16>
    %479 = vector.shape_cast %478 : vector<1x2x64xbf16> to vector<2x64xbf16>
    %480 = arith.extf %479 : vector<2x64xbf16> to vector<2x64xf32>
    %481 = arith.truncf %429 : vector<2x16xf32> to vector<2x16xbf16>
    %cst_173 = arith.constant dense<0.000000e+00> : vector<2x64xf32>
    %482 = tpu.matmul %481, %4, %cst_173 {dimension_numbers = #tpu.dot_dimension_numbers<[1], [1], [0], [0], [0, 0, 1, 0], [], []>} : vector<2x16xbf16>, vector<64x16xbf16>, vector<2x64xf32> -> vector<2x64xf32>
    %483 = arith.addf %480, %482 : vector<2x64xf32>
    %484 = vector.extract_strided_slice %483 {offsets = [0, 0], sizes = [2, 16], strides = [1, 1]} : vector<2x64xf32> to vector<2x16xf32>
    %cst_174 = arith.constant 5.000000e-01 : f32
    %485 = vector.broadcast %cst_174 : f32 to vector<2x16xf32>
    %486 = arith.mulf %485, %484 : vector<2x16xf32>
    %487 = math.tanh %486 : vector<2x16xf32>
    %cst_175 = arith.constant 1.000000e+00 : f32
    %488 = vector.broadcast %cst_175 : f32 to vector<2x16xf32>
    %489 = arith.addf %487, %488 : vector<2x16xf32>
    %cst_176 = arith.constant 5.000000e-01 : f32
    %490 = vector.broadcast %cst_176 : f32 to vector<2x16xf32>
    %491 = arith.mulf %490, %489 : vector<2x16xf32>
    %492 = vector.extract_strided_slice %483 {offsets = [0, 16], sizes = [2, 16], strides = [1, 1]} : vector<2x64xf32> to vector<2x16xf32>
    %cst_177 = arith.constant 5.000000e-01 : f32
    %493 = vector.broadcast %cst_177 : f32 to vector<2x16xf32>
    %494 = arith.mulf %493, %492 : vector<2x16xf32>
    %495 = math.tanh %494 : vector<2x16xf32>
    %cst_178 = arith.constant 1.000000e+00 : f32
    %496 = vector.broadcast %cst_178 : f32 to vector<2x16xf32>
    %497 = arith.addf %495, %496 : vector<2x16xf32>
    %cst_179 = arith.constant 5.000000e-01 : f32
    %498 = vector.broadcast %cst_179 : f32 to vector<2x16xf32>
    %499 = arith.mulf %498, %497 : vector<2x16xf32>
    %500 = vector.extract_strided_slice %483 {offsets = [0, 32], sizes = [2, 16], strides = [1, 1]} : vector<2x64xf32> to vector<2x16xf32>
    %501 = math.tanh %500 : vector<2x16xf32>
    %502 = vector.extract_strided_slice %483 {offsets = [0, 48], sizes = [2, 16], strides = [1, 1]} : vector<2x64xf32> to vector<2x16xf32>
    %cst_180 = arith.constant 5.000000e-01 : f32
    %503 = vector.broadcast %cst_180 : f32 to vector<2x16xf32>
    %504 = arith.mulf %503, %502 : vector<2x16xf32>
    %505 = math.tanh %504 : vector<2x16xf32>
    %cst_181 = arith.constant 1.000000e+00 : f32
    %506 = vector.broadcast %cst_181 : f32 to vector<2x16xf32>
    %507 = arith.addf %505, %506 : vector<2x16xf32>
    %cst_182 = arith.constant 5.000000e-01 : f32
    %508 = vector.broadcast %cst_182 : f32 to vector<2x16xf32>
    %509 = arith.mulf %508, %507 : vector<2x16xf32>
    %510 = arith.mulf %499, %427 : vector<2x16xf32>
    %511 = arith.mulf %491, %501 : vector<2x16xf32>
    %512 = arith.addf %510, %511 : vector<2x16xf32>
    %513 = math.tanh %512 : vector<2x16xf32>
    %514 = arith.mulf %509, %513 : vector<2x16xf32>
    %515 = arith.index_cast %476 : i32 to index
    %c0_183 = arith.constant 0 : index
    %c0_184 = arith.constant 0 : index
    %516 = vector.load %arg6[%515, %c0_183, %c0_184] : memref<8x2x16xf32, #tpu.memory_space<vmem>>, vector<1x2x16xf32>
    %517 = vector.shape_cast %516 : vector<1x2x16xf32> to vector<2x16xf32>
    %518 = vector.shape_cast %514 : vector<2x16xf32> to vector<1x2x16xf32>
    tpu.vector_store %arg6[%515, %c0_183, %c0_184], %518 {strides = array<i32>} : memref<8x2x16xf32, #tpu.memory_space<vmem>>, vector<1x2x16xf32>,
    %c6_i32 = arith.constant 6 : i32
    %519 = arith.index_cast %c6_i32 : i32 to index
    %c0_185 = arith.constant 0 : index
    %c0_186 = arith.constant 0 : index
    %520 = vector.load %arg1[%519, %c0_185, %c0_186] : memref<8x2x64xbf16, #tpu.memory_space<vmem>>, vector<1x2x64xbf16>
    %521 = vector.shape_cast %520 : vector<1x2x64xbf16> to vector<2x64xbf16>
    %522 = arith.extf %521 : vector<2x64xbf16> to vector<2x64xf32>
    %523 = arith.truncf %471 : vector<2x16xf32> to vector<2x16xbf16>
    %cst_187 = arith.constant dense<0.000000e+00> : vector<2x64xf32>
    %524 = tpu.matmul %523, %3, %cst_187 {dimension_numbers = #tpu.dot_dimension_numbers<[1], [1], [0], [0], [0, 0, 1, 0], [], []>} : vector<2x16xbf16>, vector<64x16xbf16>, vector<2x64xf32> -> vector<2x64xf32>
    %525 = arith.addf %522, %524 : vector<2x64xf32>
    %526 = vector.extract_strided_slice %525 {offsets = [0, 0], sizes = [2, 16], strides = [1, 1]} : vector<2x64xf32> to vector<2x16xf32>
    %cst_188 = arith.constant 5.000000e-01 : f32
    %527 = vector.broadcast %cst_188 : f32 to vector<2x16xf32>
    %528 = arith.mulf %527, %526 : vector<2x16xf32>
    %529 = math.tanh %528 : vector<2x16xf32>
    %cst_189 = arith.constant 1.000000e+00 : f32
    %530 = vector.broadcast %cst_189 : f32 to vector<2x16xf32>
    %531 = arith.addf %529, %530 : vector<2x16xf32>
    %cst_190 = arith.constant 5.000000e-01 : f32
    %532 = vector.broadcast %cst_190 : f32 to vector<2x16xf32>
    %533 = arith.mulf %532, %531 : vector<2x16xf32>
    %534 = vector.extract_strided_slice %525 {offsets = [0, 16], sizes = [2, 16], strides = [1, 1]} : vector<2x64xf32> to vector<2x16xf32>
    %cst_191 = arith.constant 5.000000e-01 : f32
    %535 = vector.broadcast %cst_191 : f32 to vector<2x16xf32>
    %536 = arith.mulf %535, %534 : vector<2x16xf32>
    %537 = math.tanh %536 : vector<2x16xf32>
    %cst_192 = arith.constant 1.000000e+00 : f32
    %538 = vector.broadcast %cst_192 : f32 to vector<2x16xf32>
    %539 = arith.addf %537, %538 : vector<2x16xf32>
    %cst_193 = arith.constant 5.000000e-01 : f32
    %540 = vector.broadcast %cst_193 : f32 to vector<2x16xf32>
    %541 = arith.mulf %540, %539 : vector<2x16xf32>
    %542 = vector.extract_strided_slice %525 {offsets = [0, 32], sizes = [2, 16], strides = [1, 1]} : vector<2x64xf32> to vector<2x16xf32>
    %543 = math.tanh %542 : vector<2x16xf32>
    %544 = vector.extract_strided_slice %525 {offsets = [0, 48], sizes = [2, 16], strides = [1, 1]} : vector<2x64xf32> to vector<2x16xf32>
    %cst_194 = arith.constant 5.000000e-01 : f32
    %545 = vector.broadcast %cst_194 : f32 to vector<2x16xf32>
    %546 = arith.mulf %545, %544 : vector<2x16xf32>
    %547 = math.tanh %546 : vector<2x16xf32>
    %cst_195 = arith.constant 1.000000e+00 : f32
    %548 = vector.broadcast %cst_195 : f32 to vector<2x16xf32>
    %549 = arith.addf %547, %548 : vector<2x16xf32>
    %cst_196 = arith.constant 5.000000e-01 : f32
    %550 = vector.broadcast %cst_196 : f32 to vector<2x16xf32>
    %551 = arith.mulf %550, %549 : vector<2x16xf32>
    %552 = arith.mulf %541, %469 : vector<2x16xf32>
    %553 = arith.mulf %533, %543 : vector<2x16xf32>
    %554 = arith.addf %552, %553 : vector<2x16xf32>
    %555 = math.tanh %554 : vector<2x16xf32>
    %556 = arith.mulf %551, %555 : vector<2x16xf32>
    %557 = arith.index_cast %c6_i32 : i32 to index
    %c0_197 = arith.constant 0 : index
    %c0_198 = arith.constant 0 : index
    %558 = vector.load %arg5[%557, %c0_197, %c0_198] : memref<8x2x16xf32, #tpu.memory_space<vmem>>, vector<1x2x16xf32>
    %559 = vector.shape_cast %558 : vector<1x2x16xf32> to vector<2x16xf32>
    %560 = vector.shape_cast %556 : vector<2x16xf32> to vector<1x2x16xf32>
    tpu.vector_store %arg5[%557, %c0_197, %c0_198], %560 {strides = array<i32>} : memref<8x2x16xf32, #tpu.memory_space<vmem>>, vector<1x2x16xf32>,
    %c7_i32_199 = arith.constant 7 : i32
    %561 = arith.subi %c7_i32_199, %c6_i32 : i32
    %562 = arith.index_cast %561 : i32 to index
    %c0_200 = arith.constant 0 : index
    %c0_201 = arith.constant 0 : index
    %563 = vector.load %arg2[%562, %c0_200, %c0_201] : memref<8x2x64xbf16, #tpu.memory_space<vmem>>, vector<1x2x64xbf16>
    %564 = vector.shape_cast %563 : vector<1x2x64xbf16> to vector<2x64xbf16>
    %565 = arith.extf %564 : vector<2x64xbf16> to vector<2x64xf32>
    %566 = arith.truncf %514 : vector<2x16xf32> to vector<2x16xbf16>
    %cst_202 = arith.constant dense<0.000000e+00> : vector<2x64xf32>
    %567 = tpu.matmul %566, %4, %cst_202 {dimension_numbers = #tpu.dot_dimension_numbers<[1], [1], [0], [0], [0, 0, 1, 0], [], []>} : vector<2x16xbf16>, vector<64x16xbf16>, vector<2x64xf32> -> vector<2x64xf32>
    %568 = arith.addf %565, %567 : vector<2x64xf32>
    %569 = vector.extract_strided_slice %568 {offsets = [0, 0], sizes = [2, 16], strides = [1, 1]} : vector<2x64xf32> to vector<2x16xf32>
    %cst_203 = arith.constant 5.000000e-01 : f32
    %570 = vector.broadcast %cst_203 : f32 to vector<2x16xf32>
    %571 = arith.mulf %570, %569 : vector<2x16xf32>
    %572 = math.tanh %571 : vector<2x16xf32>
    %cst_204 = arith.constant 1.000000e+00 : f32
    %573 = vector.broadcast %cst_204 : f32 to vector<2x16xf32>
    %574 = arith.addf %572, %573 : vector<2x16xf32>
    %cst_205 = arith.constant 5.000000e-01 : f32
    %575 = vector.broadcast %cst_205 : f32 to vector<2x16xf32>
    %576 = arith.mulf %575, %574 : vector<2x16xf32>
    %577 = vector.extract_strided_slice %568 {offsets = [0, 16], sizes = [2, 16], strides = [1, 1]} : vector<2x64xf32> to vector<2x16xf32>
    %cst_206 = arith.constant 5.000000e-01 : f32
    %578 = vector.broadcast %cst_206 : f32 to vector<2x16xf32>
    %579 = arith.mulf %578, %577 : vector<2x16xf32>
    %580 = math.tanh %579 : vector<2x16xf32>
    %cst_207 = arith.constant 1.000000e+00 : f32
    %581 = vector.broadcast %cst_207 : f32 to vector<2x16xf32>
    %582 = arith.addf %580, %581 : vector<2x16xf32>
    %cst_208 = arith.constant 5.000000e-01 : f32
    %583 = vector.broadcast %cst_208 : f32 to vector<2x16xf32>
    %584 = arith.mulf %583, %582 : vector<2x16xf32>
    %585 = vector.extract_strided_slice %568 {offsets = [0, 32], sizes = [2, 16], strides = [1, 1]} : vector<2x64xf32> to vector<2x16xf32>
    %586 = math.tanh %585 : vector<2x16xf32>
    %587 = vector.extract_strided_slice %568 {offsets = [0, 48], sizes = [2, 16], strides = [1, 1]} : vector<2x64xf32> to vector<2x16xf32>
    %cst_209 = arith.constant 5.000000e-01 : f32
    %588 = vector.broadcast %cst_209 : f32 to vector<2x16xf32>
    %589 = arith.mulf %588, %587 : vector<2x16xf32>
    %590 = math.tanh %589 : vector<2x16xf32>
    %cst_210 = arith.constant 1.000000e+00 : f32
    %591 = vector.broadcast %cst_210 : f32 to vector<2x16xf32>
    %592 = arith.addf %590, %591 : vector<2x16xf32>
    %cst_211 = arith.constant 5.000000e-01 : f32
    %593 = vector.broadcast %cst_211 : f32 to vector<2x16xf32>
    %594 = arith.mulf %593, %592 : vector<2x16xf32>
    %595 = arith.mulf %584, %512 : vector<2x16xf32>
    %596 = arith.mulf %576, %586 : vector<2x16xf32>
    %597 = arith.addf %595, %596 : vector<2x16xf32>
    %598 = math.tanh %597 : vector<2x16xf32>
    %599 = arith.mulf %594, %598 : vector<2x16xf32>
    %600 = arith.index_cast %561 : i32 to index
    %c0_212 = arith.constant 0 : index
    %c0_213 = arith.constant 0 : index
    %601 = vector.load %arg6[%600, %c0_212, %c0_213] : memref<8x2x16xf32, #tpu.memory_space<vmem>>, vector<1x2x16xf32>
    %602 = vector.shape_cast %601 : vector<1x2x16xf32> to vector<2x16xf32>
    %603 = vector.shape_cast %599 : vector<2x16xf32> to vector<1x2x16xf32>
    tpu.vector_store %arg6[%600, %c0_212, %c0_213], %603 {strides = array<i32>} : memref<8x2x16xf32, #tpu.memory_space<vmem>>, vector<1x2x16xf32>,
    %c7_i32_214 = arith.constant 7 : i32
    %604 = arith.index_cast %c7_i32_214 : i32 to index
    %c0_215 = arith.constant 0 : index
    %c0_216 = arith.constant 0 : index
    %605 = vector.load %arg1[%604, %c0_215, %c0_216] : memref<8x2x64xbf16, #tpu.memory_space<vmem>>, vector<1x2x64xbf16>
    %606 = vector.shape_cast %605 : vector<1x2x64xbf16> to vector<2x64xbf16>
    %607 = arith.extf %606 : vector<2x64xbf16> to vector<2x64xf32>
    %608 = arith.truncf %556 : vector<2x16xf32> to vector<2x16xbf16>
    %cst_217 = arith.constant dense<0.000000e+00> : vector<2x64xf32>
    %609 = tpu.matmul %608, %3, %cst_217 {dimension_numbers = #tpu.dot_dimension_numbers<[1], [1], [0], [0], [0, 0, 1, 0], [], []>} : vector<2x16xbf16>, vector<64x16xbf16>, vector<2x64xf32> -> vector<2x64xf32>
    %610 = arith.addf %607, %609 : vector<2x64xf32>
    %611 = vector.extract_strided_slice %610 {offsets = [0, 0], sizes = [2, 16], strides = [1, 1]} : vector<2x64xf32> to vector<2x16xf32>
    %cst_218 = arith.constant 5.000000e-01 : f32
    %612 = vector.broadcast %cst_218 : f32 to vector<2x16xf32>
    %613 = arith.mulf %612, %611 : vector<2x16xf32>
    %614 = math.tanh %613 : vector<2x16xf32>
    %cst_219 = arith.constant 1.000000e+00 : f32
    %615 = vector.broadcast %cst_219 : f32 to vector<2x16xf32>
    %616 = arith.addf %614, %615 : vector<2x16xf32>
    %cst_220 = arith.constant 5.000000e-01 : f32
    %617 = vector.broadcast %cst_220 : f32 to vector<2x16xf32>
    %618 = arith.mulf %617, %616 : vector<2x16xf32>
    %619 = vector.extract_strided_slice %610 {offsets = [0, 16], sizes = [2, 16], strides = [1, 1]} : vector<2x64xf32> to vector<2x16xf32>
    %cst_221 = arith.constant 5.000000e-01 : f32
    %620 = vector.broadcast %cst_221 : f32 to vector<2x16xf32>
    %621 = arith.mulf %620, %619 : vector<2x16xf32>
    %622 = math.tanh %621 : vector<2x16xf32>
    %cst_222 = arith.constant 1.000000e+00 : f32
    %623 = vector.broadcast %cst_222 : f32 to vector<2x16xf32>
    %624 = arith.addf %622, %623 : vector<2x16xf32>
    %cst_223 = arith.constant 5.000000e-01 : f32
    %625 = vector.broadcast %cst_223 : f32 to vector<2x16xf32>
    %626 = arith.mulf %625, %624 : vector<2x16xf32>
    %627 = vector.extract_strided_slice %610 {offsets = [0, 32], sizes = [2, 16], strides = [1, 1]} : vector<2x64xf32> to vector<2x16xf32>
    %628 = math.tanh %627 : vector<2x16xf32>
    %629 = vector.extract_strided_slice %610 {offsets = [0, 48], sizes = [2, 16], strides = [1, 1]} : vector<2x64xf32> to vector<2x16xf32>
    %cst_224 = arith.constant 5.000000e-01 : f32
    %630 = vector.broadcast %cst_224 : f32 to vector<2x16xf32>
    %631 = arith.mulf %630, %629 : vector<2x16xf32>
    %632 = math.tanh %631 : vector<2x16xf32>
    %cst_225 = arith.constant 1.000000e+00 : f32
    %633 = vector.broadcast %cst_225 : f32 to vector<2x16xf32>
    %634 = arith.addf %632, %633 : vector<2x16xf32>
    %cst_226 = arith.constant 5.000000e-01 : f32
    %635 = vector.broadcast %cst_226 : f32 to vector<2x16xf32>
    %636 = arith.mulf %635, %634 : vector<2x16xf32>
    %637 = arith.mulf %626, %554 : vector<2x16xf32>
    %638 = arith.mulf %618, %628 : vector<2x16xf32>
    %639 = arith.addf %637, %638 : vector<2x16xf32>
    %640 = math.tanh %639 : vector<2x16xf32>
    %641 = arith.mulf %636, %640 : vector<2x16xf32>
    %642 = arith.index_cast %c7_i32_214 : i32 to index
    %c0_227 = arith.constant 0 : index
    %c0_228 = arith.constant 0 : index
    %643 = vector.load %arg5[%642, %c0_227, %c0_228] : memref<8x2x16xf32, #tpu.memory_space<vmem>>, vector<1x2x16xf32>
    %644 = vector.shape_cast %643 : vector<1x2x16xf32> to vector<2x16xf32>
    %645 = vector.shape_cast %641 : vector<2x16xf32> to vector<1x2x16xf32>
    tpu.vector_store %arg5[%642, %c0_227, %c0_228], %645 {strides = array<i32>} : memref<8x2x16xf32, #tpu.memory_space<vmem>>, vector<1x2x16xf32>,
    %c7_i32_229 = arith.constant 7 : i32
    %646 = arith.subi %c7_i32_229, %c7_i32_214 : i32
    %647 = arith.index_cast %646 : i32 to index
    %c0_230 = arith.constant 0 : index
    %c0_231 = arith.constant 0 : index
    %648 = vector.load %arg2[%647, %c0_230, %c0_231] : memref<8x2x64xbf16, #tpu.memory_space<vmem>>, vector<1x2x64xbf16>
    %649 = vector.shape_cast %648 : vector<1x2x64xbf16> to vector<2x64xbf16>
    %650 = arith.extf %649 : vector<2x64xbf16> to vector<2x64xf32>
    %651 = arith.truncf %599 : vector<2x16xf32> to vector<2x16xbf16>
    %cst_232 = arith.constant dense<0.000000e+00> : vector<2x64xf32>
    %652 = tpu.matmul %651, %4, %cst_232 {dimension_numbers = #tpu.dot_dimension_numbers<[1], [1], [0], [0], [0, 0, 1, 0], [], []>} : vector<2x16xbf16>, vector<64x16xbf16>, vector<2x64xf32> -> vector<2x64xf32>
    %653 = arith.addf %650, %652 : vector<2x64xf32>
    %654 = vector.extract_strided_slice %653 {offsets = [0, 0], sizes = [2, 16], strides = [1, 1]} : vector<2x64xf32> to vector<2x16xf32>
    %cst_233 = arith.constant 5.000000e-01 : f32
    %655 = vector.broadcast %cst_233 : f32 to vector<2x16xf32>
    %656 = arith.mulf %655, %654 : vector<2x16xf32>
    %657 = math.tanh %656 : vector<2x16xf32>
    %cst_234 = arith.constant 1.000000e+00 : f32
    %658 = vector.broadcast %cst_234 : f32 to vector<2x16xf32>
    %659 = arith.addf %657, %658 : vector<2x16xf32>
    %cst_235 = arith.constant 5.000000e-01 : f32
    %660 = vector.broadcast %cst_235 : f32 to vector<2x16xf32>
    %661 = arith.mulf %660, %659 : vector<2x16xf32>
    %662 = vector.extract_strided_slice %653 {offsets = [0, 16], sizes = [2, 16], strides = [1, 1]} : vector<2x64xf32> to vector<2x16xf32>
    %cst_236 = arith.constant 5.000000e-01 : f32
    %663 = vector.broadcast %cst_236 : f32 to vector<2x16xf32>
    %664 = arith.mulf %663, %662 : vector<2x16xf32>
    %665 = math.tanh %664 : vector<2x16xf32>
    %cst_237 = arith.constant 1.000000e+00 : f32
    %666 = vector.broadcast %cst_237 : f32 to vector<2x16xf32>
    %667 = arith.addf %665, %666 : vector<2x16xf32>
    %cst_238 = arith.constant 5.000000e-01 : f32
    %668 = vector.broadcast %cst_238 : f32 to vector<2x16xf32>
    %669 = arith.mulf %668, %667 : vector<2x16xf32>
    %670 = vector.extract_strided_slice %653 {offsets = [0, 32], sizes = [2, 16], strides = [1, 1]} : vector<2x64xf32> to vector<2x16xf32>
    %671 = math.tanh %670 : vector<2x16xf32>
    %672 = vector.extract_strided_slice %653 {offsets = [0, 48], sizes = [2, 16], strides = [1, 1]} : vector<2x64xf32> to vector<2x16xf32>
    %cst_239 = arith.constant 5.000000e-01 : f32
    %673 = vector.broadcast %cst_239 : f32 to vector<2x16xf32>
    %674 = arith.mulf %673, %672 : vector<2x16xf32>
    %675 = math.tanh %674 : vector<2x16xf32>
    %cst_240 = arith.constant 1.000000e+00 : f32
    %676 = vector.broadcast %cst_240 : f32 to vector<2x16xf32>
    %677 = arith.addf %675, %676 : vector<2x16xf32>
    %cst_241 = arith.constant 5.000000e-01 : f32
    %678 = vector.broadcast %cst_241 : f32 to vector<2x16xf32>
    %679 = arith.mulf %678, %677 : vector<2x16xf32>
    %680 = arith.mulf %669, %597 : vector<2x16xf32>
    %681 = arith.mulf %661, %671 : vector<2x16xf32>
    %682 = arith.addf %680, %681 : vector<2x16xf32>
    %683 = math.tanh %682 : vector<2x16xf32>
    %684 = arith.mulf %679, %683 : vector<2x16xf32>
    %685 = arith.index_cast %646 : i32 to index
    %c0_242 = arith.constant 0 : index
    %c0_243 = arith.constant 0 : index
    %686 = vector.load %arg6[%685, %c0_242, %c0_243] : memref<8x2x16xf32, #tpu.memory_space<vmem>>, vector<1x2x16xf32>
    %687 = vector.shape_cast %686 : vector<1x2x16xf32> to vector<2x16xf32>
    %688 = vector.shape_cast %684 : vector<2x16xf32> to vector<1x2x16xf32>
    tpu.vector_store %arg6[%685, %c0_242, %c0_243], %688 {strides = array<i32>} : memref<8x2x16xf32, #tpu.memory_space<vmem>>, vector<1x2x16xf32>,
    %c8_i32 = arith.constant 8 : i32
    %c0_244 = arith.constant 0 : index
    %c0_245 = arith.constant 0 : index
    %689 = vector.load %arg7[%c0_244, %c0_245] : memref<2x16xf32, #tpu.memory_space<vmem>>, vector<2x16xf32>
    tpu.vector_store %arg7[%c0_244, %c0_245], %641 {strides = array<i32>} : memref<2x16xf32, #tpu.memory_space<vmem>>, vector<2x16xf32>,
    %c0_246 = arith.constant 0 : index
    %c0_247 = arith.constant 0 : index
    %690 = vector.load %arg8[%c0_246, %c0_247] : memref<2x16xf32, #tpu.memory_space<vmem>>, vector<2x16xf32>
    tpu.vector_store %arg8[%c0_246, %c0_247], %639 {strides = array<i32>} : memref<2x16xf32, #tpu.memory_space<vmem>>, vector<2x16xf32>,
    %c0_248 = arith.constant 0 : index
    %c0_249 = arith.constant 0 : index
    %691 = vector.load %arg9[%c0_248, %c0_249] : memref<2x16xf32, #tpu.memory_space<vmem>>, vector<2x16xf32>
    tpu.vector_store %arg9[%c0_248, %c0_249], %684 {strides = array<i32>} : memref<2x16xf32, #tpu.memory_space<vmem>>, vector<2x16xf32>,
    %c0_250 = arith.constant 0 : index
    %c0_251 = arith.constant 0 : index
    %692 = vector.load %arg10[%c0_250, %c0_251] : memref<2x16xf32, #tpu.memory_space<vmem>>, vector<2x16xf32>
    tpu.vector_store %arg10[%c0_250, %c0_251], %682 {strides = array<i32>} : memref<2x16xf32, #tpu.memory_space<vmem>>, vector<2x16xf32>,
    return
  }
  func.func @transform_0(%arg0: i32) -> (i32, i32, i32) {
    %c0_i32 = arith.constant 0 : i32
    %c0_i32_0 = arith.constant 0 : i32
    %c0_i32_1 = arith.constant 0 : i32
    return %arg0, %c0_i32, %c0_i32_0 : i32, i32, i32
  }
  func.func @transform_1(%arg0: i32) -> (i32, i32, i32) {
    %c0_i32 = arith.constant 0 : i32
    %0 = arith.subi %c0_i32, %arg0 : i32
    %c0_i32_0 = arith.constant 0 : i32
    %c0_i32_1 = arith.constant 0 : i32
    %c0_i32_2 = arith.constant 0 : i32
    return %0, %c0_i32_0, %c0_i32_1 : i32, i32, i32
  }
  func.func @transform_2(%arg0: i32) -> (i32, i32) {
    %c0_i32 = arith.constant 0 : i32
    %c0_i32_0 = arith.constant 0 : i32
    %c0_i32_1 = arith.constant 0 : i32
    return %c0_i32, %c0_i32_0 : i32, i32
  }
  func.func @transform_3(%arg0: i32) -> (i32, i32) {
    %c0_i32 = arith.constant 0 : i32
    %c0_i32_0 = arith.constant 0 : i32
    %c0_i32_1 = arith.constant 0 : i32
    return %c0_i32, %c0_i32_0 : i32, i32
  }
  func.func @transform_4(%arg0: i32) -> (i32, i32, i32) {
    %c0_i32 = arith.constant 0 : i32
    %c0_i32_0 = arith.constant 0 : i32
    %c0_i32_1 = arith.constant 0 : i32
    return %arg0, %c0_i32, %c0_i32_0 : i32, i32, i32
  }
  func.func @transform_5(%arg0: i32) -> (i32, i32, i32) {
    %c0_i32 = arith.constant 0 : i32
    %0 = arith.subi %c0_i32, %arg0 : i32
    %c0_i32_0 = arith.constant 0 : i32
    %c0_i32_1 = arith.constant 0 : i32
    %c0_i32_2 = arith.constant 0 : i32
    return %0, %c0_i32_0, %c0_i32_1 : i32, i32, i32
  }
}

module attributes {stable_mosaic.version = 11 : i64} {
  func.func @gsm_kernel(%arg0: i32, %arg1: i32, %arg2: i32, %arg3: memref<2x128xbf16, #tpu.memory_space<vmem>>, %arg4: memref<32x128xbf16, #tpu.memory_space<vmem>>, %arg5: memref<1x32xf32, #tpu.memory_space<vmem>>, %arg6: memref<16x32xf32, #tpu.memory_space<vmem>>, %arg7: memref<1x16xf32, #tpu.memory_space<vmem>>, %arg8: memref<16x16xf32, #tpu.memory_space<vmem>>, %arg9: memref<1x16xf32, #tpu.memory_space<vmem>>, %arg10: memref<8x8xf32, #tpu.memory_space<vmem>>, %arg11: memref<1x8xf32, #tpu.memory_space<vmem>>, %arg12: memref<8x16xbf16, #tpu.memory_space<vmem>>, %arg13: memref<128x16xbf16, #tpu.memory_space<vmem>>, %arg14: memref<2x8xf32, #tpu.memory_space<vmem>>, %arg15: memref<2x1xf32, #tpu.memory_space<vmem>>, %arg16: memref<2x32xf32, #tpu.memory_space<vmem>>, %arg17: memref<8x1xf32, #tpu.memory_space<vmem>>, %arg18: memref<8x1xf32, #tpu.memory_space<vmem>>, %arg19: memref<1x8x128xf32, #tpu.memory_space<vmem>>) attributes {dimension_semantics = [#tpu.dimension_semantics<parallel>, #tpu.dimension_semantics<arbitrary>, #tpu.dimension_semantics<arbitrary>], iteration_bounds = array<i64: 1, 2, 1>, scalar_prefetch = 0 : i64, scratch_operands = 4 : i64, tpu.core_type = #tpu.core_type<tc>, window_params = [{transform_indices = @transform_0, window_bounds = array<i64: 2, 128>}, {transform_indices = @transform_1, window_bounds = array<i64: 32, 128>}, {pipeline_mode = #tpu.pipeline_mode<synchronous>, transform_indices = @transform_2, window_bounds = array<i64: 1, 32>}, {pipeline_mode = #tpu.pipeline_mode<synchronous>, transform_indices = @transform_3, window_bounds = array<i64: 16, 32>}, {pipeline_mode = #tpu.pipeline_mode<synchronous>, transform_indices = @transform_4, window_bounds = array<i64: 1, 16>}, {pipeline_mode = #tpu.pipeline_mode<synchronous>, transform_indices = @transform_5, window_bounds = array<i64: 16, 16>}, {pipeline_mode = #tpu.pipeline_mode<synchronous>, transform_indices = @transform_6, window_bounds = array<i64: 1, 16>}, {pipeline_mode = #tpu.pipeline_mode<synchronous>, transform_indices = @transform_7, window_bounds = array<i64: 8, 8>}, {pipeline_mode = #tpu.pipeline_mode<synchronous>, transform_indices = @transform_8, window_bounds = array<i64: 1, 8>}, {pipeline_mode = #tpu.pipeline_mode<synchronous>, transform_indices = @transform_9, window_bounds = array<i64: 8, 16>}, {transform_indices = @transform_10, window_bounds = array<i64: 128, 16>}, {transform_indices = @transform_11, window_bounds = array<i64: 2, 8>}, {transform_indices = @transform_12, window_bounds = array<i64: 2, 1>}]} {
    %c0_i32 = arith.constant 0 : i32
    %0 = arith.cmpi eq, %arg1, %c0_i32 : i32
    %c0_i32_0 = arith.constant 0 : i32
    %1 = arith.cmpi eq, %arg2, %c0_i32_0 : i32
    %2 = arith.andi %0, %1 : i1
    %3 = arith.extui %2 : i1 to i32
    %c0_i32_1 = arith.constant 0 : i32
    %4 = arith.cmpi ne, %3, %c0_i32_1 : i32
    scf.if %4 {
      %cst = arith.constant 0.000000e+00 : f32
      %16 = vector.broadcast %cst : f32 to vector<2x32xf32>
      %c0 = arith.constant 0 : index
      %c0_8 = arith.constant 0 : index
      %17 = vector.load %arg16[%c0, %c0_8] : memref<2x32xf32, #tpu.memory_space<vmem>>, vector<2x32xf32>
      tpu.vector_store %arg16[%c0, %c0_8], %16 {strides = array<i32>} : memref<2x32xf32, #tpu.memory_space<vmem>>, vector<2x32xf32>,
      %cst_9 = arith.constant 0xFF800000 : f32
      %18 = vector.broadcast %cst_9 : f32 to vector<8x1xf32>
      %c0_10 = arith.constant 0 : index
      %c0_11 = arith.constant 0 : index
      %19 = vector.load %arg17[%c0_10, %c0_11] : memref<8x1xf32, #tpu.memory_space<vmem>>, vector<8x1xf32>
      tpu.vector_store %arg17[%c0_10, %c0_11], %18 {strides = array<i32>} : memref<8x1xf32, #tpu.memory_space<vmem>>, vector<8x1xf32>,
      %cst_12 = arith.constant 0.000000e+00 : f32
      %20 = vector.broadcast %cst_12 : f32 to vector<8x1xf32>
      %c0_13 = arith.constant 0 : index
      %c0_14 = arith.constant 0 : index
      %21 = vector.load %arg18[%c0_13, %c0_14] : memref<8x1xf32, #tpu.memory_space<vmem>>, vector<8x1xf32>
      tpu.vector_store %arg18[%c0_13, %c0_14], %20 {strides = array<i32>} : memref<8x1xf32, #tpu.memory_space<vmem>>, vector<8x1xf32>,
    } else {
    }
    %c0_i32_2 = arith.constant 0 : i32
    %5 = arith.cmpi eq, %arg1, %c0_i32_2 : i32
    %6 = arith.extui %5 : i1 to i32
    %c0_i32_3 = arith.constant 0 : i32
    %7 = arith.cmpi ne, %6, %c0_i32_3 : i32
    scf.if %7 {
      %c0 = arith.constant 0 : index
      %c0_8 = arith.constant 0 : index
      %16 = vector.load %arg16[%c0, %c0_8] : memref<2x32xf32, #tpu.memory_space<vmem>>, vector<2x32xf32>
      %c0_9 = arith.constant 0 : index
      %c0_10 = arith.constant 0 : index
      %17 = vector.load %arg3[%c0_9, %c0_10] : memref<2x128xbf16, #tpu.memory_space<vmem>>, vector<2x128xbf16>
      %c0_11 = arith.constant 0 : index
      %c0_12 = arith.constant 0 : index
      %18 = vector.load %arg4[%c0_11, %c0_12] : memref<32x128xbf16, #tpu.memory_space<vmem>>, vector<32x128xbf16>
      %cst = arith.constant dense<0.000000e+00> : vector<2x32xf32>
      %19 = tpu.matmul %17, %18, %cst {dimension_numbers = #tpu.dot_dimension_numbers<[1], [1], [0], [0], [0, 0, 1, 0], [], []>} : vector<2x128xbf16>, vector<32x128xbf16>, vector<2x32xf32> -> vector<2x32xf32>
      %20 = arith.addf %16, %19 : vector<2x32xf32>
      %c0_13 = arith.constant 0 : index
      %c0_14 = arith.constant 0 : index
      %21 = vector.load %arg16[%c0_13, %c0_14] : memref<2x32xf32, #tpu.memory_space<vmem>>, vector<2x32xf32>
      tpu.vector_store %arg16[%c0_13, %c0_14], %20 {strides = array<i32>} : memref<2x32xf32, #tpu.memory_space<vmem>>, vector<2x32xf32>,
      %c0_15 = arith.constant 0 : index
      %c0_16 = arith.constant 0 : index
      %22 = vector.load %arg12[%c0_15, %c0_16] : memref<8x16xbf16, #tpu.memory_space<vmem>>, vector<8x16xbf16>
      %c0_17 = arith.constant 0 : index
      %c0_18 = arith.constant 0 : index
      %23 = vector.load %arg13[%c0_17, %c0_18] : memref<128x16xbf16, #tpu.memory_space<vmem>>, vector<128x16xbf16>
      %cst_19 = arith.constant dense<0.000000e+00> : vector<8x128xf32>
      %24 = tpu.matmul %22, %23, %cst_19 {dimension_numbers = #tpu.dot_dimension_numbers<[1], [1], [0], [0], [0, 0, 1, 0], [], []>} : vector<8x16xbf16>, vector<128x16xbf16>, vector<8x128xf32> -> vector<8x128xf32>
      %25 = tpu.iota {dimensions = array<i32: 1>} : vector<8x128xi32>
      %c128_i32 = arith.constant 128 : i32
      %26 = arith.muli %arg2, %c128_i32 : i32
      %27 = vector.broadcast %26 : i32 to vector<8x128xi32>
      %28 = arith.addi %25, %27 : vector<8x128xi32>
      %c32_i32 = arith.constant 32 : i32
      %29 = vector.broadcast %c32_i32 : i32 to vector<8x128xi32>
      %30 = arith.cmpi slt, %28, %29 : vector<8x128xi32>
      %cst_20 = arith.constant -1.000000e+30 : f32
      %31 = vector.broadcast %cst_20 : f32 to vector<8x128xf32>
      %32 = arith.select %30, %24, %31 : vector<8x128xi1>, vector<8x128xf32>
      %33 = arith.index_cast %arg2 : i32 to index
      %c0_21 = arith.constant 0 : index
      %c0_22 = arith.constant 0 : index
      %34 = vector.load %arg19[%33, %c0_21, %c0_22] : memref<1x8x128xf32, #tpu.memory_space<vmem>>, vector<1x8x128xf32>
      %35 = vector.shape_cast %34 : vector<1x8x128xf32> to vector<8x128xf32>
      %36 = vector.shape_cast %32 : vector<8x128xf32> to vector<1x8x128xf32>
      tpu.vector_store %arg19[%33, %c0_21, %c0_22], %36 {strides = array<i32>} : memref<1x8x128xf32, #tpu.memory_space<vmem>>, vector<1x8x128xf32>,
      %c0_23 = arith.constant 0 : index
      %c0_24 = arith.constant 0 : index
      %37 = vector.load %arg17[%c0_23, %c0_24] : memref<8x1xf32, #tpu.memory_space<vmem>>, vector<8x1xf32>
      %cst_25 = arith.constant dense<0xFF800000> : vector<8xf32>
      %38 = vector.multi_reduction <maximumf>, %32, %cst_25 [1] : vector<8x128xf32> to vector<8xf32>
      %39 = vector.shape_cast %38 : vector<8xf32> to vector<8x1xf32>
      %40 = arith.maximumf %37, %39 : vector<8x1xf32>
      %c0_26 = arith.constant 0 : index
      %c0_27 = arith.constant 0 : index
      %41 = vector.load %arg18[%c0_26, %c0_27] : memref<8x1xf32, #tpu.memory_space<vmem>>, vector<8x1xf32>
      %42 = arith.subf %37, %40 : vector<8x1xf32>
      %43 = math.exp %42 : vector<8x1xf32>
      %44 = arith.mulf %41, %43 : vector<8x1xf32>
      %45 = vector.broadcast %40 : vector<8x1xf32> to vector<8x128xf32>
      %46 = arith.subf %32, %45 : vector<8x128xf32>
      %47 = math.exp %46 : vector<8x128xf32>
      %cst_28 = arith.constant dense<0.000000e+00> : vector<8xf32>
      %48 = vector.multi_reduction <add>, %47, %cst_28 [1] : vector<8x128xf32> to vector<8xf32>
      %49 = vector.shape_cast %48 : vector<8xf32> to vector<8x1xf32>
      %50 = arith.addf %44, %49 : vector<8x1xf32>
      %c0_29 = arith.constant 0 : index
      %c0_30 = arith.constant 0 : index
      %51 = vector.load %arg18[%c0_29, %c0_30] : memref<8x1xf32, #tpu.memory_space<vmem>>, vector<8x1xf32>
      tpu.vector_store %arg18[%c0_29, %c0_30], %50 {strides = array<i32>} : memref<8x1xf32, #tpu.memory_space<vmem>>, vector<8x1xf32>,
      %c0_31 = arith.constant 0 : index
      %c0_32 = arith.constant 0 : index
      %52 = vector.load %arg17[%c0_31, %c0_32] : memref<8x1xf32, #tpu.memory_space<vmem>>, vector<8x1xf32>
      tpu.vector_store %arg17[%c0_31, %c0_32], %40 {strides = array<i32>} : memref<8x1xf32, #tpu.memory_space<vmem>>, vector<8x1xf32>,
    } else {
    }
    %c1_i32 = arith.constant 1 : i32
    %8 = arith.cmpi eq, %arg1, %c1_i32 : i32
    %c0_i32_4 = arith.constant 0 : i32
    %9 = arith.cmpi eq, %arg2, %c0_i32_4 : i32
    %10 = arith.andi %8, %9 : i1
    %11 = arith.extui %10 : i1 to i32
    %c0_i32_5 = arith.constant 0 : i32
    %12 = arith.cmpi ne, %11, %c0_i32_5 : i32
    scf.if %12 {
      %c0 = arith.constant 0 : index
      %c0_8 = arith.constant 0 : index
      %16 = vector.load %arg16[%c0, %c0_8] : memref<2x32xf32, #tpu.memory_space<vmem>>, vector<2x32xf32>
      %c0_9 = arith.constant 0 : index
      %c0_10 = arith.constant 0 : index
      %17 = vector.load %arg5[%c0_9, %c0_10] : memref<1x32xf32, #tpu.memory_space<vmem>>, vector<1x32xf32>
      %18 = vector.broadcast %17 : vector<1x32xf32> to vector<2x32xf32>
      %19 = arith.addf %16, %18 : vector<2x32xf32>
      %20 = math.tanh %19 : vector<2x32xf32>
      %c0_11 = arith.constant 0 : index
      %c0_12 = arith.constant 0 : index
      %21 = vector.load %arg6[%c0_11, %c0_12] : memref<16x32xf32, #tpu.memory_space<vmem>>, vector<16x32xf32>
      %cst = arith.constant dense<0.000000e+00> : vector<2x16xf32>
      %22 = tpu.matmul %20, %21, %cst {dimension_numbers = #tpu.dot_dimension_numbers<[1], [1], [0], [0], [0, 0, 1, 0], [], []>} : vector<2x32xf32>, vector<16x32xf32>, vector<2x16xf32> -> vector<2x16xf32>
      %c0_13 = arith.constant 0 : index
      %c0_14 = arith.constant 0 : index
      %23 = vector.load %arg7[%c0_13, %c0_14] : memref<1x16xf32, #tpu.memory_space<vmem>>, vector<1x16xf32>
      %24 = vector.broadcast %23 : vector<1x16xf32> to vector<2x16xf32>
      %25 = arith.addf %22, %24 : vector<2x16xf32>
      %26 = math.tanh %25 : vector<2x16xf32>
      %c0_15 = arith.constant 0 : index
      %c0_16 = arith.constant 0 : index
      %27 = vector.load %arg8[%c0_15, %c0_16] : memref<16x16xf32, #tpu.memory_space<vmem>>, vector<16x16xf32>
      %cst_17 = arith.constant dense<0.000000e+00> : vector<2x16xf32>
      %28 = tpu.matmul %26, %27, %cst_17 {dimension_numbers = #tpu.dot_dimension_numbers<[1], [1], [0], [0], [0, 0, 1, 0], [], []>} : vector<2x16xf32>, vector<16x16xf32>, vector<2x16xf32> -> vector<2x16xf32>
      %c0_18 = arith.constant 0 : index
      %c0_19 = arith.constant 0 : index
      %29 = vector.load %arg9[%c0_18, %c0_19] : memref<1x16xf32, #tpu.memory_space<vmem>>, vector<1x16xf32>
      %30 = vector.broadcast %29 : vector<1x16xf32> to vector<2x16xf32>
      %31 = arith.addf %28, %30 : vector<2x16xf32>
      %32 = vector.extract_strided_slice %31 {offsets = [0, 0], sizes = [2, 8], strides = [1, 1]} : vector<2x16xf32> to vector<2x8xf32>
      %33 = vector.extract_strided_slice %31 {offsets = [0, 8], sizes = [2, 8], strides = [1, 1]} : vector<2x16xf32> to vector<2x8xf32>
      %c0_20 = arith.constant 0 : index
      %c0_21 = arith.constant 0 : index
      %34 = vector.load %arg10[%c0_20, %c0_21] : memref<8x8xf32, #tpu.memory_space<vmem>>, vector<8x8xf32>
      %cst_22 = arith.constant dense<0.000000e+00> : vector<2x8xf32>
      %35 = tpu.matmul %32, %34, %cst_22 {dimension_numbers = #tpu.dot_dimension_numbers<[1], [1], [0], [0], [0, 0, 1, 0], [], []>} : vector<2x8xf32>, vector<8x8xf32>, vector<2x8xf32> -> vector<2x8xf32>
      %c0_23 = arith.constant 0 : index
      %c0_24 = arith.constant 0 : index
      %36 = vector.load %arg11[%c0_23, %c0_24] : memref<1x8xf32, #tpu.memory_space<vmem>>, vector<1x8xf32>
      %37 = vector.broadcast %36 : vector<1x8xf32> to vector<2x8xf32>
      %38 = arith.addf %35, %37 : vector<2x8xf32>
      %cst_25 = arith.constant dense<0xFF800000> : vector<2xf32>
      %39 = vector.multi_reduction <maximumf>, %38, %cst_25 [1] : vector<2x8xf32> to vector<2xf32>
      %40 = vector.shape_cast %39 : vector<2xf32> to vector<2x1xf32>
      %41 = vector.broadcast %40 : vector<2x1xf32> to vector<2x8xf32>
      %42 = arith.subf %38, %41 : vector<2x8xf32>
      %43 = math.exp %42 : vector<2x8xf32>
      %cst_26 = arith.constant dense<0.000000e+00> : vector<2xf32>
      %44 = vector.multi_reduction <add>, %43, %cst_26 [1] : vector<2x8xf32> to vector<2xf32>
      %45 = vector.shape_cast %44 : vector<2xf32> to vector<2x1xf32>
      %46 = vector.broadcast %45 : vector<2x1xf32> to vector<2x8xf32>
      %47 = arith.divf %43, %46 : vector<2x8xf32>
      %c0_27 = arith.constant 0 : index
      %c0_28 = arith.constant 0 : index
      %48 = vector.load %arg14[%c0_27, %c0_28] : memref<2x8xf32, #tpu.memory_space<vmem>>, vector<2x8xf32>
      tpu.vector_store %arg14[%c0_27, %c0_28], %47 {strides = array<i32>} : memref<2x8xf32, #tpu.memory_space<vmem>>, vector<2x8xf32>,
      %49 = arith.mulf %32, %32 : vector<2x8xf32>
      %cst_29 = arith.constant 1.000000e+00 : f32
      %50 = vector.broadcast %cst_29 : f32 to vector<2x8xf32>
      %51 = arith.subf %50, %49 : vector<2x8xf32>
      %52 = arith.addf %51, %33 : vector<2x8xf32>
      %53 = math.exp %33 : vector<2x8xf32>
      %54 = arith.subf %52, %53 : vector<2x8xf32>
      %cst_30 = arith.constant dense<0.000000e+00> : vector<2xf32>
      %55 = vector.multi_reduction <add>, %54, %cst_30 [1] : vector<2x8xf32> to vector<2xf32>
      %56 = vector.shape_cast %55 : vector<2xf32> to vector<2x1xf32>
      %cst_31 = arith.constant -5.000000e-01 : f32
      %57 = vector.broadcast %cst_31 : f32 to vector<2x1xf32>
      %58 = arith.mulf %57, %56 : vector<2x1xf32>
      %c0_32 = arith.constant 0 : index
      %c0_33 = arith.constant 0 : index
      %59 = vector.load %arg15[%c0_32, %c0_33] : memref<2x1xf32, #tpu.memory_space<vmem>>, vector<2x1xf32>
      tpu.vector_store %arg15[%c0_32, %c0_33], %58 {strides = array<i32>} : memref<2x1xf32, #tpu.memory_space<vmem>>, vector<2x1xf32>,
    } else {
    }
    %c1_i32_6 = arith.constant 1 : i32
    %13 = arith.cmpi eq, %arg1, %c1_i32_6 : i32
    %14 = arith.extui %13 : i1 to i32
    %c0_i32_7 = arith.constant 0 : i32
    %15 = arith.cmpi ne, %14, %c0_i32_7 : i32
    scf.if %15 {
      %16 = arith.index_cast %arg2 : i32 to index
      %c0 = arith.constant 0 : index
      %c0_8 = arith.constant 0 : index
      %17 = vector.load %arg19[%16, %c0, %c0_8] : memref<1x8x128xf32, #tpu.memory_space<vmem>>, vector<1x8x128xf32>
      %18 = vector.shape_cast %17 : vector<1x8x128xf32> to vector<8x128xf32>
      %c0_9 = arith.constant 0 : index
      %c0_10 = arith.constant 0 : index
      %19 = vector.load %arg17[%c0_9, %c0_10] : memref<8x1xf32, #tpu.memory_space<vmem>>, vector<8x1xf32>
      %20 = vector.broadcast %19 : vector<8x1xf32> to vector<8x128xf32>
      %21 = arith.subf %18, %20 : vector<8x128xf32>
      %22 = math.exp %21 : vector<8x128xf32>
      %c0_11 = arith.constant 0 : index
      %c0_12 = arith.constant 0 : index
      %23 = vector.load %arg18[%c0_11, %c0_12] : memref<8x1xf32, #tpu.memory_space<vmem>>, vector<8x1xf32>
      %24 = vector.broadcast %23 : vector<8x1xf32> to vector<8x128xf32>
      %25 = arith.divf %22, %24 : vector<8x128xf32>
      %c0_13 = arith.constant 0 : index
      %c0_14 = arith.constant 0 : index
      %26 = vector.load %arg14[%c0_13, %c0_14] : memref<2x8xf32, #tpu.memory_space<vmem>>, vector<2x8xf32>
      %cst = arith.constant dense<0.000000e+00> : vector<2x128xf32>
      %27 = tpu.matmul %26, %25, %cst {dimension_numbers = #tpu.dot_dimension_numbers<[1], [0], [0], [1], [0, 0, 1, 1], [], []>} : vector<2x8xf32>, vector<8x128xf32>, vector<2x128xf32> -> vector<2x128xf32>
      %c0_15 = arith.constant 0 : index
      %c0_16 = arith.constant 0 : index
      %28 = vector.load %arg3[%c0_15, %c0_16] : memref<2x128xbf16, #tpu.memory_space<vmem>>, vector<2x128xbf16>
      %29 = arith.extf %28 : vector<2x128xbf16> to vector<2x128xf32>
      %c0_17 = arith.constant 0 : index
      %c0_18 = arith.constant 0 : index
      %30 = vector.load %arg15[%c0_17, %c0_18] : memref<2x1xf32, #tpu.memory_space<vmem>>, vector<2x1xf32>
      %cst_19 = arith.constant 1.000000e-10 : f32
      %31 = vector.broadcast %cst_19 : f32 to vector<2x128xf32>
      %32 = arith.addf %27, %31 : vector<2x128xf32>
      %33 = math.log %32 : vector<2x128xf32>
      %34 = arith.mulf %29, %33 : vector<2x128xf32>
      %cst_20 = arith.constant dense<0.000000e+00> : vector<2xf32>
      %35 = vector.multi_reduction <add>, %34, %cst_20 [1] : vector<2x128xf32> to vector<2xf32>
      %36 = vector.shape_cast %35 : vector<2xf32> to vector<2x1xf32>
      %cst_21 = arith.constant 0.000000e+00 : f32
      %37 = vector.broadcast %cst_21 : f32 to vector<2x1xf32>
      %38 = arith.subf %37, %36 : vector<2x1xf32>
      %39 = arith.addf %30, %38 : vector<2x1xf32>
      %c0_22 = arith.constant 0 : index
      %c0_23 = arith.constant 0 : index
      %40 = vector.load %arg15[%c0_22, %c0_23] : memref<2x1xf32, #tpu.memory_space<vmem>>, vector<2x1xf32>
      tpu.vector_store %arg15[%c0_22, %c0_23], %39 {strides = array<i32>} : memref<2x1xf32, #tpu.memory_space<vmem>>, vector<2x1xf32>,
    } else {
    }
    return
  }
  func.func @transform_0(%arg0: i32, %arg1: i32, %arg2: i32) -> (i32, i32) {
    %c0_i32 = arith.constant 0 : i32
    return %arg0, %arg2 : i32, i32
  }
  func.func @transform_1(%arg0: i32, %arg1: i32, %arg2: i32) -> (i32, i32) {
    %c1_i32 = arith.constant 1 : i32
    %0 = arith.subi %c1_i32, %arg1 : i32
    %1 = arith.muli %arg2, %0 : i32
    %c0_i32 = arith.constant 0 : i32
    %c0_i32_0 = arith.constant 0 : i32
    return %c0_i32, %1 : i32, i32
  }
  func.func @transform_2(%arg0: i32, %arg1: i32, %arg2: i32) -> (i32, i32) {
    %c0_i32 = arith.constant 0 : i32
    %c0_i32_0 = arith.constant 0 : i32
    %c0_i32_1 = arith.constant 0 : i32
    return %c0_i32, %c0_i32_0 : i32, i32
  }
  func.func @transform_3(%arg0: i32, %arg1: i32, %arg2: i32) -> (i32, i32) {
    %c0_i32 = arith.constant 0 : i32
    %c0_i32_0 = arith.constant 0 : i32
    %c0_i32_1 = arith.constant 0 : i32
    return %c0_i32, %c0_i32_0 : i32, i32
  }
  func.func @transform_4(%arg0: i32, %arg1: i32, %arg2: i32) -> (i32, i32) {
    %c0_i32 = arith.constant 0 : i32
    %c0_i32_0 = arith.constant 0 : i32
    %c0_i32_1 = arith.constant 0 : i32
    return %c0_i32, %c0_i32_0 : i32, i32
  }
  func.func @transform_5(%arg0: i32, %arg1: i32, %arg2: i32) -> (i32, i32) {
    %c0_i32 = arith.constant 0 : i32
    %c0_i32_0 = arith.constant 0 : i32
    %c0_i32_1 = arith.constant 0 : i32
    return %c0_i32, %c0_i32_0 : i32, i32
  }
  func.func @transform_6(%arg0: i32, %arg1: i32, %arg2: i32) -> (i32, i32) {
    %c0_i32 = arith.constant 0 : i32
    %c0_i32_0 = arith.constant 0 : i32
    %c0_i32_1 = arith.constant 0 : i32
    return %c0_i32, %c0_i32_0 : i32, i32
  }
  func.func @transform_7(%arg0: i32, %arg1: i32, %arg2: i32) -> (i32, i32) {
    %c0_i32 = arith.constant 0 : i32
    %c0_i32_0 = arith.constant 0 : i32
    %c0_i32_1 = arith.constant 0 : i32
    return %c0_i32, %c0_i32_0 : i32, i32
  }
  func.func @transform_8(%arg0: i32, %arg1: i32, %arg2: i32) -> (i32, i32) {
    %c0_i32 = arith.constant 0 : i32
    %c0_i32_0 = arith.constant 0 : i32
    %c0_i32_1 = arith.constant 0 : i32
    return %c0_i32, %c0_i32_0 : i32, i32
  }
  func.func @transform_9(%arg0: i32, %arg1: i32, %arg2: i32) -> (i32, i32) {
    %c0_i32 = arith.constant 0 : i32
    %c0_i32_0 = arith.constant 0 : i32
    %c0_i32_1 = arith.constant 0 : i32
    return %c0_i32, %c0_i32_0 : i32, i32
  }
  func.func @transform_10(%arg0: i32, %arg1: i32, %arg2: i32) -> (i32, i32) {
    %c1_i32 = arith.constant 1 : i32
    %0 = arith.subi %c1_i32, %arg1 : i32
    %1 = arith.muli %arg2, %0 : i32
    %c0_i32 = arith.constant 0 : i32
    %c0_i32_0 = arith.constant 0 : i32
    return %1, %c0_i32 : i32, i32
  }
  func.func @transform_11(%arg0: i32, %arg1: i32, %arg2: i32) -> (i32, i32) {
    %c0_i32 = arith.constant 0 : i32
    %c0_i32_0 = arith.constant 0 : i32
    return %arg0, %c0_i32 : i32, i32
  }
  func.func @transform_12(%arg0: i32, %arg1: i32, %arg2: i32) -> (i32, i32) {
    %c0_i32 = arith.constant 0 : i32
    %c0_i32_0 = arith.constant 0 : i32
    return %arg0, %c0_i32 : i32, i32
  }
}

module attributes {stable_mosaic.version = 11 : i64} {
  func.func @att_pool_kernel(%arg0: i32, %arg1: memref<8x2x16xf32, #tpu.memory_space<vmem>>, %arg2: memref<8x2x16xf32, #tpu.memory_space<vmem>>, %arg3: memref<16x16xbf16, #tpu.memory_space<vmem>>, %arg4: memref<16x16xbf16, #tpu.memory_space<vmem>>, %arg5: memref<1x16xf32, #tpu.memory_space<vmem>>, %arg6: memref<8x16xbf16, #tpu.memory_space<vmem>>, %arg7: memref<2x8xf32, #tpu.memory_space<vmem>>, %arg8: memref<2x32xf32, #tpu.memory_space<vmem>>) attributes {dimension_semantics = [#tpu.dimension_semantics<parallel>], iteration_bounds = array<i64: 1>, scalar_prefetch = 0 : i64, scratch_operands = 0 : i64, tpu.core_type = #tpu.core_type<tc>, window_params = [{transform_indices = @transform_0, window_bounds = array<i64: 8, 2, 16>}, {transform_indices = @transform_1, window_bounds = array<i64: 8, 2, 16>}, {pipeline_mode = #tpu.pipeline_mode<synchronous>, transform_indices = @transform_2, window_bounds = array<i64: 16, 16>}, {pipeline_mode = #tpu.pipeline_mode<synchronous>, transform_indices = @transform_3, window_bounds = array<i64: 16, 16>}, {pipeline_mode = #tpu.pipeline_mode<synchronous>, transform_indices = @transform_4, window_bounds = array<i64: 1, 16>}, {pipeline_mode = #tpu.pipeline_mode<synchronous>, transform_indices = @transform_5, window_bounds = array<i64: 8, 16>}, {transform_indices = @transform_6, window_bounds = array<i64: 2, 8>}, {transform_indices = @transform_7, window_bounds = array<i64: 2, 32>}]} {
    %c0 = arith.constant 0 : index
    %c0_0 = arith.constant 0 : index
    %c0_1 = arith.constant 0 : index
    %0 = vector.load %arg1[%c0, %c0_0, %c0_1] : memref<8x2x16xf32, #tpu.memory_space<vmem>>, vector<8x2x16xf32>
    %c0_2 = arith.constant 0 : index
    %c0_3 = arith.constant 0 : index
    %c0_4 = arith.constant 0 : index
    %1 = vector.load %arg2[%c0_2, %c0_3, %c0_4] : memref<8x2x16xf32, #tpu.memory_space<vmem>>, vector<8x2x16xf32>
    %2 = arith.truncf %0 : vector<8x2x16xf32> to vector<8x2x16xbf16>
    %3 = vector.shape_cast %2 : vector<8x2x16xbf16> to vector<16x16xbf16>
    %4 = arith.truncf %1 : vector<8x2x16xf32> to vector<8x2x16xbf16>
    %5 = vector.shape_cast %4 : vector<8x2x16xbf16> to vector<16x16xbf16>
    %c0_5 = arith.constant 0 : index
    %c0_6 = arith.constant 0 : index
    %6 = vector.load %arg3[%c0_5, %c0_6] : memref<16x16xbf16, #tpu.memory_space<vmem>>, vector<16x16xbf16>
    %cst = arith.constant dense<0.000000e+00> : vector<16x16xf32>
    %7 = tpu.matmul %3, %6, %cst {dimension_numbers = #tpu.dot_dimension_numbers<[1], [1], [0], [0], [0, 0, 1, 0], [], []>} : vector<16x16xbf16>, vector<16x16xbf16>, vector<16x16xf32> -> vector<16x16xf32>
    %c0_7 = arith.constant 0 : index
    %c0_8 = arith.constant 0 : index
    %8 = vector.load %arg4[%c0_7, %c0_8] : memref<16x16xbf16, #tpu.memory_space<vmem>>, vector<16x16xbf16>
    %cst_9 = arith.constant dense<0.000000e+00> : vector<16x16xf32>
    %9 = tpu.matmul %5, %8, %cst_9 {dimension_numbers = #tpu.dot_dimension_numbers<[1], [1], [0], [0], [0, 0, 1, 0], [], []>} : vector<16x16xbf16>, vector<16x16xbf16>, vector<16x16xf32> -> vector<16x16xf32>
    %10 = arith.addf %7, %9 : vector<16x16xf32>
    %c0_10 = arith.constant 0 : index
    %c0_11 = arith.constant 0 : index
    %11 = vector.load %arg5[%c0_10, %c0_11] : memref<1x16xf32, #tpu.memory_space<vmem>>, vector<1x16xf32>
    %12 = vector.broadcast %11 : vector<1x16xf32> to vector<16x16xf32>
    %13 = arith.addf %10, %12 : vector<16x16xf32>
    %14 = math.tanh %13 : vector<16x16xf32>
    %15 = vector.shape_cast %14 : vector<16x16xf32> to vector<8x2x16xf32>
    %16 = arith.truncf %15 : vector<8x2x16xf32> to vector<8x2x16xbf16>
    %c0_12 = arith.constant 0 : index
    %c0_13 = arith.constant 0 : index
    %17 = vector.load %arg6[%c0_12, %c0_13] : memref<8x16xbf16, #tpu.memory_space<vmem>>, vector<8x16xbf16>
    %c0_14 = arith.constant 0 : index
    %c0_15 = arith.constant 0 : index
    %18 = vector.load %arg7[%c0_14, %c0_15] : memref<2x8xf32, #tpu.memory_space<vmem>>, vector<2x8xf32>
    %19 = vector.extract_strided_slice %16 {offsets = [0, 0, 0], sizes = [8, 1, 16], strides = [1, 1, 1]} : vector<8x2x16xbf16> to vector<8x1x16xbf16>
    %20 = vector.shape_cast %19 : vector<8x1x16xbf16> to vector<8x16xbf16>
    %cst_16 = arith.constant dense<0.000000e+00> : vector<8x8xf32>
    %21 = tpu.matmul %17, %20, %cst_16 {dimension_numbers = #tpu.dot_dimension_numbers<[1], [1], [0], [0], [0, 0, 1, 0], [], []>} : vector<8x16xbf16>, vector<8x16xbf16>, vector<8x8xf32> -> vector<8x8xf32>
    %cst_17 = arith.constant dense<0xFF800000> : vector<8xf32>
    %22 = vector.multi_reduction <maximumf>, %21, %cst_17 [1] : vector<8x8xf32> to vector<8xf32>
    %23 = vector.shape_cast %22 : vector<8xf32> to vector<8x1xf32>
    %24 = vector.broadcast %23 : vector<8x1xf32> to vector<8x8xf32>
    %25 = arith.subf %21, %24 : vector<8x8xf32>
    %26 = math.exp %25 : vector<8x8xf32>
    %cst_18 = arith.constant dense<0.000000e+00> : vector<8xf32>
    %27 = vector.multi_reduction <add>, %26, %cst_18 [1] : vector<8x8xf32> to vector<8xf32>
    %28 = vector.shape_cast %27 : vector<8xf32> to vector<8x1xf32>
    %29 = vector.broadcast %28 : vector<8x1xf32> to vector<8x8xf32>
    %30 = arith.divf %26, %29 : vector<8x8xf32>
    %31 = vector.extract_strided_slice %18 {offsets = [0, 0], sizes = [1, 8], strides = [1, 1]} : vector<2x8xf32> to vector<1x8xf32>
    %cst_19 = arith.constant dense<0.000000e+00> : vector<1x8xf32>
    %32 = tpu.matmul %31, %30, %cst_19 {dimension_numbers = #tpu.dot_dimension_numbers<[1], [0], [0], [1], [0, 0, 1, 1], [], []>} : vector<1x8xf32>, vector<8x8xf32>, vector<1x8xf32> -> vector<1x8xf32>
    %33 = vector.extract_strided_slice %0 {offsets = [0, 0, 0], sizes = [8, 1, 16], strides = [1, 1, 1]} : vector<8x2x16xf32> to vector<8x1x16xf32>
    %34 = vector.shape_cast %33 : vector<8x1x16xf32> to vector<8x16xf32>
    %cst_20 = arith.constant dense<0.000000e+00> : vector<1x16xf32>
    %35 = tpu.matmul %32, %34, %cst_20 {dimension_numbers = #tpu.dot_dimension_numbers<[1], [0], [0], [1], [0, 0, 1, 1], [], []>} : vector<1x8xf32>, vector<8x16xf32>, vector<1x16xf32> -> vector<1x16xf32>
    %c0_21 = arith.constant 0 : index
    %c0_22 = arith.constant 0 : index
    %36 = vector.load %arg8[%c0_21, %c0_22] : memref<2x32xf32, #tpu.memory_space<vmem>>, vector<1x16xf32>
    tpu.vector_store %arg8[%c0_21, %c0_22], %35 {strides = array<i32>} : memref<2x32xf32, #tpu.memory_space<vmem>>, vector<1x16xf32>,
    %37 = vector.extract_strided_slice %1 {offsets = [0, 0, 0], sizes = [8, 1, 16], strides = [1, 1, 1]} : vector<8x2x16xf32> to vector<8x1x16xf32>
    %38 = vector.shape_cast %37 : vector<8x1x16xf32> to vector<8x16xf32>
    %cst_23 = arith.constant dense<0.000000e+00> : vector<1x16xf32>
    %39 = tpu.matmul %32, %38, %cst_23 {dimension_numbers = #tpu.dot_dimension_numbers<[1], [0], [0], [1], [0, 0, 1, 1], [], []>} : vector<1x8xf32>, vector<8x16xf32>, vector<1x16xf32> -> vector<1x16xf32>
    %c0_24 = arith.constant 0 : index
    %c16 = arith.constant 16 : index
    %40 = vector.load %arg8[%c0_24, %c16] : memref<2x32xf32, #tpu.memory_space<vmem>>, vector<1x16xf32>
    tpu.vector_store %arg8[%c0_24, %c16], %39 {strides = array<i32>} : memref<2x32xf32, #tpu.memory_space<vmem>>, vector<1x16xf32>,
    %41 = vector.extract_strided_slice %16 {offsets = [0, 1, 0], sizes = [8, 1, 16], strides = [1, 1, 1]} : vector<8x2x16xbf16> to vector<8x1x16xbf16>
    %42 = vector.shape_cast %41 : vector<8x1x16xbf16> to vector<8x16xbf16>
    %cst_25 = arith.constant dense<0.000000e+00> : vector<8x8xf32>
    %43 = tpu.matmul %17, %42, %cst_25 {dimension_numbers = #tpu.dot_dimension_numbers<[1], [1], [0], [0], [0, 0, 1, 0], [], []>} : vector<8x16xbf16>, vector<8x16xbf16>, vector<8x8xf32> -> vector<8x8xf32>
    %cst_26 = arith.constant dense<0xFF800000> : vector<8xf32>
    %44 = vector.multi_reduction <maximumf>, %43, %cst_26 [1] : vector<8x8xf32> to vector<8xf32>
    %45 = vector.shape_cast %44 : vector<8xf32> to vector<8x1xf32>
    %46 = vector.broadcast %45 : vector<8x1xf32> to vector<8x8xf32>
    %47 = arith.subf %43, %46 : vector<8x8xf32>
    %48 = math.exp %47 : vector<8x8xf32>
    %cst_27 = arith.constant dense<0.000000e+00> : vector<8xf32>
    %49 = vector.multi_reduction <add>, %48, %cst_27 [1] : vector<8x8xf32> to vector<8xf32>
    %50 = vector.shape_cast %49 : vector<8xf32> to vector<8x1xf32>
    %51 = vector.broadcast %50 : vector<8x1xf32> to vector<8x8xf32>
    %52 = arith.divf %48, %51 : vector<8x8xf32>
    %53 = vector.extract_strided_slice %18 {offsets = [1, 0], sizes = [1, 8], strides = [1, 1]} : vector<2x8xf32> to vector<1x8xf32>
    %cst_28 = arith.constant dense<0.000000e+00> : vector<1x8xf32>
    %54 = tpu.matmul %53, %52, %cst_28 {dimension_numbers = #tpu.dot_dimension_numbers<[1], [0], [0], [1], [0, 0, 1, 1], [], []>} : vector<1x8xf32>, vector<8x8xf32>, vector<1x8xf32> -> vector<1x8xf32>
    %55 = vector.extract_strided_slice %0 {offsets = [0, 1, 0], sizes = [8, 1, 16], strides = [1, 1, 1]} : vector<8x2x16xf32> to vector<8x1x16xf32>
    %56 = vector.shape_cast %55 : vector<8x1x16xf32> to vector<8x16xf32>
    %cst_29 = arith.constant dense<0.000000e+00> : vector<1x16xf32>
    %57 = tpu.matmul %54, %56, %cst_29 {dimension_numbers = #tpu.dot_dimension_numbers<[1], [0], [0], [1], [0, 0, 1, 1], [], []>} : vector<1x8xf32>, vector<8x16xf32>, vector<1x16xf32> -> vector<1x16xf32>
    %c1 = arith.constant 1 : index
    %c0_30 = arith.constant 0 : index
    %58 = vector.load %arg8[%c1, %c0_30] : memref<2x32xf32, #tpu.memory_space<vmem>>, vector<1x16xf32>
    tpu.vector_store %arg8[%c1, %c0_30], %57 {strides = array<i32>} : memref<2x32xf32, #tpu.memory_space<vmem>>, vector<1x16xf32>,
    %59 = vector.extract_strided_slice %1 {offsets = [0, 1, 0], sizes = [8, 1, 16], strides = [1, 1, 1]} : vector<8x2x16xf32> to vector<8x1x16xf32>
    %60 = vector.shape_cast %59 : vector<8x1x16xf32> to vector<8x16xf32>
    %cst_31 = arith.constant dense<0.000000e+00> : vector<1x16xf32>
    %61 = tpu.matmul %54, %60, %cst_31 {dimension_numbers = #tpu.dot_dimension_numbers<[1], [0], [0], [1], [0, 0, 1, 1], [], []>} : vector<1x8xf32>, vector<8x16xf32>, vector<1x16xf32> -> vector<1x16xf32>
    %c1_32 = arith.constant 1 : index
    %c16_33 = arith.constant 16 : index
    %62 = vector.load %arg8[%c1_32, %c16_33] : memref<2x32xf32, #tpu.memory_space<vmem>>, vector<1x16xf32>
    tpu.vector_store %arg8[%c1_32, %c16_33], %61 {strides = array<i32>} : memref<2x32xf32, #tpu.memory_space<vmem>>, vector<1x16xf32>,
    return
  }
  func.func @transform_0(%arg0: i32) -> (i32, i32, i32) {
    %c0_i32 = arith.constant 0 : i32
    %c0_i32_0 = arith.constant 0 : i32
    %c0_i32_1 = arith.constant 0 : i32
    return %c0_i32, %arg0, %c0_i32_0 : i32, i32, i32
  }
  func.func @transform_1(%arg0: i32) -> (i32, i32, i32) {
    %c0_i32 = arith.constant 0 : i32
    %c0_i32_0 = arith.constant 0 : i32
    %c0_i32_1 = arith.constant 0 : i32
    return %c0_i32, %arg0, %c0_i32_0 : i32, i32, i32
  }
  func.func @transform_2(%arg0: i32) -> (i32, i32) {
    %c0_i32 = arith.constant 0 : i32
    %c0_i32_0 = arith.constant 0 : i32
    %c0_i32_1 = arith.constant 0 : i32
    return %c0_i32, %c0_i32_0 : i32, i32
  }
  func.func @transform_3(%arg0: i32) -> (i32, i32) {
    %c0_i32 = arith.constant 0 : i32
    %c0_i32_0 = arith.constant 0 : i32
    %c0_i32_1 = arith.constant 0 : i32
    return %c0_i32, %c0_i32_0 : i32, i32
  }
  func.func @transform_4(%arg0: i32) -> (i32, i32) {
    %c0_i32 = arith.constant 0 : i32
    %c0_i32_0 = arith.constant 0 : i32
    %c0_i32_1 = arith.constant 0 : i32
    return %c0_i32, %c0_i32_0 : i32, i32
  }
  func.func @transform_5(%arg0: i32) -> (i32, i32) {
    %c0_i32 = arith.constant 0 : i32
    %c0_i32_0 = arith.constant 0 : i32
    %c0_i32_1 = arith.constant 0 : i32
    return %c0_i32, %c0_i32_0 : i32, i32
  }
  func.func @transform_6(%arg0: i32) -> (i32, i32) {
    %c0_i32 = arith.constant 0 : i32
    %c0_i32_0 = arith.constant 0 : i32
    return %arg0, %c0_i32 : i32, i32
  }
  func.func @transform_7(%arg0: i32) -> (i32, i32) {
    %c0_i32 = arith.constant 0 : i32
    %c0_i32_0 = arith.constant 0 : i32
    return %arg0, %c0_i32 : i32, i32
  }
}

module attributes {stable_mosaic.version = 11 : i64} {
  func.func @att_head_kernel(%arg0: memref<2x32xf32, #tpu.memory_space<vmem>>, %arg1: memref<8x32xf32, #tpu.memory_space<vmem>>, %arg2: memref<1x8xf32, #tpu.memory_space<vmem>>, %arg3: memref<2x8xf32, #tpu.memory_space<vmem>>, %arg4: memref<2x1xf32, #tpu.memory_space<vmem>>, %arg5: memref<2x8xf32, #tpu.memory_space<vmem>>, %arg6: memref<1x1xf32, #tpu.memory_space<vmem>>) attributes {dimension_semantics = [], scalar_prefetch = 0 : i64, scratch_operands = 0 : i64, tpu.core_type = #tpu.core_type<tc>} {
    %c0 = arith.constant 0 : index
    %c0_0 = arith.constant 0 : index
    %0 = vector.load %arg0[%c0, %c0_0] : memref<2x32xf32, #tpu.memory_space<vmem>>, vector<2x32xf32>
    %c0_1 = arith.constant 0 : index
    %c0_2 = arith.constant 0 : index
    %1 = vector.load %arg1[%c0_1, %c0_2] : memref<8x32xf32, #tpu.memory_space<vmem>>, vector<8x32xf32>
    %cst = arith.constant dense<0.000000e+00> : vector<2x8xf32>
    %2 = tpu.matmul %0, %1, %cst {dimension_numbers = #tpu.dot_dimension_numbers<[1], [1], [0], [0], [0, 0, 1, 0], [], []>} : vector<2x32xf32>, vector<8x32xf32>, vector<2x8xf32> -> vector<2x8xf32>
    %c0_3 = arith.constant 0 : index
    %c0_4 = arith.constant 0 : index
    %3 = vector.load %arg2[%c0_3, %c0_4] : memref<1x8xf32, #tpu.memory_space<vmem>>, vector<1x8xf32>
    %4 = vector.broadcast %3 : vector<1x8xf32> to vector<2x8xf32>
    %5 = arith.addf %2, %4 : vector<2x8xf32>
    %cst_5 = arith.constant 5.000000e-01 : f32
    %6 = vector.broadcast %cst_5 : f32 to vector<2x8xf32>
    %7 = arith.mulf %6, %5 : vector<2x8xf32>
    %8 = math.tanh %7 : vector<2x8xf32>
    %cst_6 = arith.constant 1.000000e+00 : f32
    %9 = vector.broadcast %cst_6 : f32 to vector<2x8xf32>
    %10 = arith.addf %8, %9 : vector<2x8xf32>
    %cst_7 = arith.constant 5.000000e-01 : f32
    %11 = vector.broadcast %cst_7 : f32 to vector<2x8xf32>
    %12 = arith.mulf %11, %10 : vector<2x8xf32>
    %c0_8 = arith.constant 0 : index
    %c0_9 = arith.constant 0 : index
    %13 = vector.load %arg5[%c0_8, %c0_9] : memref<2x8xf32, #tpu.memory_space<vmem>>, vector<2x8xf32>
    tpu.vector_store %arg5[%c0_8, %c0_9], %12 {strides = array<i32>} : memref<2x8xf32, #tpu.memory_space<vmem>>, vector<2x8xf32>,
    %c0_10 = arith.constant 0 : index
    %c0_11 = arith.constant 0 : index
    %14 = vector.load %arg3[%c0_10, %c0_11] : memref<2x8xf32, #tpu.memory_space<vmem>>, vector<2x8xf32>
    %cst_12 = arith.constant 9.99999996E-13 : f32
    %cst_13 = arith.constant 1.000000e+00 : f32
    %15 = vector.broadcast %cst_12 : f32 to vector<2x8xf32>
    %16 = arith.maximumf %15, %12 : vector<2x8xf32>
    %17 = vector.broadcast %cst_13 : f32 to vector<2x8xf32>
    %18 = arith.minimumf %17, %16 : vector<2x8xf32>
    %19 = math.log %18 : vector<2x8xf32>
    %20 = arith.mulf %14, %19 : vector<2x8xf32>
    %cst_14 = arith.constant 1.000000e+00 : f32
    %21 = vector.broadcast %cst_14 : f32 to vector<2x8xf32>
    %22 = arith.subf %21, %14 : vector<2x8xf32>
    %cst_15 = arith.constant 1.000000e+00 : f32
    %23 = vector.broadcast %cst_15 : f32 to vector<2x8xf32>
    %24 = arith.subf %23, %18 : vector<2x8xf32>
    %25 = math.log %24 : vector<2x8xf32>
    %26 = arith.mulf %22, %25 : vector<2x8xf32>
    %27 = arith.addf %20, %26 : vector<2x8xf32>
    %28 = vector.shape_cast %27 : vector<2x8xf32> to vector<1x2x8xf32>
    %cst_16 = arith.constant dense<0.000000e+00> : vector<1xf32>
    %29 = vector.multi_reduction <add>, %28, %cst_16 [1, 2] : vector<1x2x8xf32> to vector<1xf32>
    %30 = vector.shape_cast %29 : vector<1xf32> to vector<1x1x1xf32>
    %31 = vector.extract %30[0, 0, 0] : f32 from vector<1x1x1xf32>
    %cst_17 = arith.constant 1.600000e+01 : f32
    %32 = arith.divf %31, %cst_17 : f32
    %cst_18 = arith.constant 0.000000e+00 : f32
    %33 = arith.subf %cst_18, %32 : f32
    %c0_19 = arith.constant 0 : index
    %c0_20 = arith.constant 0 : index
    %34 = vector.load %arg4[%c0_19, %c0_20] : memref<2x1xf32, #tpu.memory_space<vmem>>, vector<2x1xf32>
    %35 = vector.shape_cast %34 : vector<2x1xf32> to vector<1x2x1xf32>
    %cst_21 = arith.constant dense<0.000000e+00> : vector<1xf32>
    %36 = vector.multi_reduction <add>, %35, %cst_21 [1, 2] : vector<1x2x1xf32> to vector<1xf32>
    %37 = vector.shape_cast %36 : vector<1xf32> to vector<1x1x1xf32>
    %38 = vector.extract %37[0, 0, 0] : f32 from vector<1x1x1xf32>
    %cst_22 = arith.constant 2.000000e+00 : f32
    %39 = arith.divf %38, %cst_22 : f32
    %40 = arith.addf %39, %33 : f32
    %41 = vector.broadcast %40 : f32 to vector<1x1xf32>
    %c0_23 = arith.constant 0 : index
    %c0_24 = arith.constant 0 : index
    %42 = vector.load %arg6[%c0_23, %c0_24] : memref<1x1xf32, #tpu.memory_space<vmem>>, vector<1x1xf32>
    tpu.vector_store %arg6[%c0_23, %c0_24], %41 {strides = array<i32>} : memref<1x1xf32, #tpu.memory_space<vmem>>, vector<1x1xf32>,
    return
  }
}

</mosaic_0001>

<llo_original>
// kernel: topic_att_forward.5
$region0: #{topic_att_forward.5}
  #allocation0 [shape = 'u32[]', space=smem, size = 0x4, offset = 0x4, fixed_abs, tag = 'smem constant byte address 0x4 - core index']
  #allocation1 [shape = 'u32[72,128]{1,0:T(1,128)}', space=vmem, size = 0x9000, scoped, tag = 'internal scratch']
  %s0 = inlined_call_operand.vmem [shape: bf16[16,16], index: 0, kind: input, shape index: {}]
  %s1 = inlined_call_operand.vmem [shape: bf16[128,16], index: 1, kind: input, shape index: {}]
  %s2 = inlined_call_operand.vmem [shape: f32[1,128], index: 2, kind: input, shape index: {}]
  %s3 = inlined_call_operand.vmem [shape: bf16[16,64], index: 3, kind: output, shape index: {0}]
  %s4 = inlined_call_operand.vmem [shape: bf16[16,64], index: 4, kind: output, shape index: {1}]
  %5 = xla_tuple %s3, %s4
  %s6 = sld [smem:[#allocation0]]
  $region30: #{topic_att_forward.5} parent=0
    _
  %s8 = ssub.s32 1, %s6
  %s9 = scalar_select 0, %s8, %s6
  // Predicated region
  $region2: #{topic_att_forward.5} parent=0 // pred_check
    _
  $region3: #{topic_att_forward.5} parent=0 // pred_check_branch
    %11 = sbr.rel (0) target = $region5
  $region4: #{topic_att_forward.5} parent=0 // pred_region
    _
  $region5: #{topic_att_forward.5} parent=0 // pred_fallthru
    _
  // Predicated region
  $region6: #{topic_att_forward.5} parent=0 // pred_check
    _
  $region7: #{topic_att_forward.5} parent=0 // pred_check_branch
    %13 = sbr.rel (0) target = $region9
  $region8: #{topic_att_forward.5} parent=0 // pred_region
    _
  $region9: #{topic_att_forward.5} parent=0 // pred_fallthru
    _
  // Predicated region
  $region10: #{topic_att_forward.5} parent=0 // pred_check
    _
  $region11: #{topic_att_forward.5} parent=0 // pred_check_branch
    %15 = sbr.rel (0) target = $region13
  $region12: #{topic_att_forward.5} parent=0 // pred_region
    _
  $region13: #{topic_att_forward.5} parent=0 // pred_fallthru
    _
  %v16 = vld [vmem:[%s0] sm:$0xf]
  %v17 = vld [vmem:[%s0 + $0x4] sm:$0xf]
  %v18 = vld [vmem:[%s1] sm:$0xf]
  %v19 = vld [vmem:[%s1 + $0x4] sm:$0xf]
  %v20 = vld [vmem:[%s1 + $0x8] sm:$0xf]
  %v21 = vld [vmem:[%s1 + $0xc] sm:$0xf]
  %v22 = vld [vmem:[%s1 + $0x10] sm:$0xf]
  %v23 = vld [vmem:[%s1 + $0x14] sm:$0xf]
  %v24 = vld [vmem:[%s1 + $0x18] sm:$0xf]
  %v25 = vld [vmem:[%s1 + $0x1c] sm:$0xf]
  %v26 = vld [vmem:[%s1 + $0x20] sm:$0xf]
  %v27 = vld [vmem:[%s1 + $0x24] sm:$0xf]
  %v28 = vld [vmem:[%s1 + $0x28] sm:$0xf]
  %v29 = vld [vmem:[%s1 + $0x2c] sm:$0xf]
  %v30 = vld [vmem:[%s1 + $0x30] sm:$0xf]
  %v31 = vld [vmem:[%s1 + $0x34] sm:$0xf]
  %v32 = vld [vmem:[%s1 + $0x38] sm:$0xf]
  %v33 = vld [vmem:[%s1 + $0x3c] sm:$0xf]
  %v34 = vld [vmem:[%s2] sm:$0x1]
  %v36 = vperm.slane %v34, 0
  %v40 = vunpack.c.l.b16 %v16
  %v41 = vunpack.c.l.b16 %v17
  %v42 = vpack.c.b16 %v41, %v40
  %v59 = vunpack.c.l.b16 %v18
  %v60 = vunpack.c.l.b16 %v19
  %v61 = vunpack.c.l.b16 %v20
  %v62 = vunpack.c.l.b16 %v21
  %v63 = vunpack.c.l.b16 %v22
  %v64 = vunpack.c.l.b16 %v23
  %v65 = vunpack.c.l.b16 %v24
  %v66 = vunpack.c.l.b16 %v25
  %v67 = vunpack.c.l.b16 %v26
  %v68 = vunpack.c.l.b16 %v27
  %v69 = vunpack.c.l.b16 %v28
  %v70 = vunpack.c.l.b16 %v29
  %v71 = vunpack.c.l.b16 %v30
  %v72 = vunpack.c.l.b16 %v31
  %v73 = vunpack.c.l.b16 %v32
  %v74 = vunpack.c.l.b16 %v33
  %v75 = vpack.c.b16 %v60, %v59
  %v76 = vpack.c.b16 %v62, %v61
  %v77 = vpack.c.b16 %v64, %v63
  %v78 = vpack.c.b16 %v66, %v65
  %v79 = vpack.c.b16 %v68, %v67
  %v80 = vpack.c.b16 %v70, %v69
  %v81 = vpack.c.b16 %v72, %v71
  %v82 = vpack.c.b16 %v74, %v73
  %vm83 = vcmask 130048
  %v85 = vsel %vm83, %v42, 0
  %v88 = vsel %vm83, %v75, 0
  %v91 = vsel %vm83, %v76, 0
  %v94 = vsel %vm83, %v77, 0
  %v97 = vsel %vm83, %v78, 0
  %v100 = vsel %vm83, %v79, 0
  %v103 = vsel %vm83, %v80, 0
  %v106 = vsel %vm83, %v81, 0
  %v109 = vsel %vm83, %v82, 0
  %111 = vmatpush.bf16.xpose.msra.mxu0 %v109
  %112 = vmatpush.bf16.xpose.msra.mxu0 %v106
  %113 = vmatpush.bf16.xpose.msra.mxu0 %v103
  %114 = vmatpush.bf16.xpose.msra.mxu0 %v100
  %115 = vmatpush.bf16.xpose.msra.mxu0 %v97
  %116 = vmatpush.bf16.xpose.msra.mxu0 %v94
  %117 = vmatpush.bf16.xpose.msra.mxu0 %v91
  %118 = vmatpush.bf16.xpose.msra.mxu0 %v88
  %119 = vmatmul.bf16.gmra.mxu0 %v85
  %v120 = vpop.f32.mrf.mxu0
  %v121 = vadd.f32 %v36, %v120
  %v122 = vpop.f32.mrf.mxu0
  %v123 = vadd.f32 %v36, %v122
  %124 = vdwg.mxu0
  %v125 = vpack.c.bf16 %v121, %v121
  %v126 = vpack.c.bf16 %v123, %v123
  %vm127 = vcmask 519168
  %128 = vst.msk [vmem:[%s3] sm:$0xf] %vm127, %v125
  %129 = vst.msk [vmem:[%s3 + $0x4] sm:$0xf] %vm127, %v126
  %132 = vrot.lane.b32.xlu0 %v125, 64
  %v133 = vpop.permute.xlu0 %132
  %134 = vrot.lane.b32.xlu0 %v126, 64
  %v135 = vpop.permute.xlu0 %134
  %138 = vst.msk [vmem:[%s4] sm:$0xf] %vm127, %v133
  %139 = vst.msk [vmem:[%s4 + $0x4] sm:$0xf] %vm127, %v135
  // Predicated region
  $region14: #{topic_att_forward.5} parent=0 // pred_check
    _
  $region15: #{topic_att_forward.5} parent=0 // pred_check_branch
    %141 = sbr.rel (0) target = $region17
  $region16: #{topic_att_forward.5} parent=0 // pred_region
    _
  $region17: #{topic_att_forward.5} parent=0 // pred_fallthru
    _
  // Predicated region
  $region18: #{topic_att_forward.5} parent=0 // pred_check
    _
  $region19: #{topic_att_forward.5} parent=0 // pred_check_branch
    %143 = sbr.rel (0) target = $region21
  $region20: #{topic_att_forward.5} parent=0 // pred_region
    _
  $region21: #{topic_att_forward.5} parent=0 // pred_fallthru
    _
  // Predicated region
  $region22: #{topic_att_forward.5} parent=0 // pred_check
    _
  $region23: #{topic_att_forward.5} parent=0 // pred_check_branch
    %145 = sbr.rel (0) target = $region25
  $region24: #{topic_att_forward.5} parent=0 // pred_region
    _
  $region25: #{topic_att_forward.5} parent=0 // pred_fallthru
    _
  // Predicated region
  $region26: #{topic_att_forward.5} parent=0 // pred_check
    _
  $region27: #{topic_att_forward.5} parent=0 // pred_check_branch
    %147 = sbr.rel (0) target = $region29
  $region28: #{topic_att_forward.5} parent=0 // pred_region
    _
  $region29: #{topic_att_forward.5} parent=0 // pred_fallthru
    _

// kernel: topic_att_forward.8
$region0: #{topic_att_forward.8}
  #allocation0 [shape = 'u32[]', space=smem, size = 0x4, offset = 0x4, fixed_abs, tag = 'smem constant byte address 0x4 - core index']
  #allocation1 [shape = 'u32[72,128]{1,0:T(1,128)}', space=vmem, size = 0x9000, scoped, tag = 'internal scratch']
  %s0 = inlined_call_operand.vmem [shape: f32[8,2,16], index: 0, kind: input, shape index: {}]
  %s1 = inlined_call_operand.vmem [shape: f32[8,2,16], index: 1, kind: input, shape index: {}]
  %s2 = inlined_call_operand.vmem [shape: bf16[16,16], index: 2, kind: input, shape index: {}]
  %s3 = inlined_call_operand.vmem [shape: bf16[16,16], index: 3, kind: input, shape index: {}]
  %s4 = inlined_call_operand.vmem [shape: f32[1,16], index: 4, kind: input, shape index: {}]
  %s5 = inlined_call_operand.vmem [shape: bf16[8,16], index: 5, kind: input, shape index: {}]
  %s6 = inlined_call_operand.vmem [shape: f32[2,8], index: 6, kind: input, shape index: {}]
  %s7 = inlined_call_operand.vmem [shape: f32[2,32], index: 7, kind: output, shape index: {}]
  %s8 = sld [smem:[#allocation0]]
  $region38: #{topic_att_forward.8} parent=0
    _
  %s10 = ssub.s32 1, %s8
  %s11 = scalar_select 0, %s10, %s8
  // Predicated region
  $region2: #{topic_att_forward.8} parent=0 // pred_check
    _
  $region3: #{topic_att_forward.8} parent=0 // pred_check_branch
    %13 = sbr.rel (0) target = $region5
  $region4: #{topic_att_forward.8} parent=0 // pred_region
    _
  $region5: #{topic_att_forward.8} parent=0 // pred_fallthru
    _
  // Predicated region
  $region6: #{topic_att_forward.8} parent=0 // pred_check
    _
  $region7: #{topic_att_forward.8} parent=0 // pred_check_branch
    %15 = sbr.rel (0) target = $region9
  $region8: #{topic_att_forward.8} parent=0 // pred_region
    _
  $region9: #{topic_att_forward.8} parent=0 // pred_fallthru
    _
  // Predicated region
  $region10: #{topic_att_forward.8} parent=0 // pred_check
    _
  $region11: #{topic_att_forward.8} parent=0 // pred_check_branch
    %17 = sbr.rel (0) target = $region13
  $region12: #{topic_att_forward.8} parent=0 // pred_region
    _
  $region13: #{topic_att_forward.8} parent=0 // pred_fallthru
    _
  // Predicated region
  $region14: #{topic_att_forward.8} parent=0 // pred_check
    _
  $region15: #{topic_att_forward.8} parent=0 // pred_check_branch
    %19 = sbr.rel (0) target = $region17
  $region16: #{topic_att_forward.8} parent=0 // pred_region
    _
  $region17: #{topic_att_forward.8} parent=0 // pred_fallthru
    _
  // Predicated region
  $region18: #{topic_att_forward.8} parent=0 // pred_check
    _
  $region19: #{topic_att_forward.8} parent=0 // pred_check_branch
    %21 = sbr.rel (0) target = $region21
  $region20: #{topic_att_forward.8} parent=0 // pred_region
    _
  $region21: #{topic_att_forward.8} parent=0 // pred_fallthru
    _
  // Predicated region
  $region22: #{topic_att_forward.8} parent=0 // pred_check
    _
  $region23: #{topic_att_forward.8} parent=0 // pred_check_branch
    %23 = sbr.rel (0) target = $region25
  $region24: #{topic_att_forward.8} parent=0 // pred_region
    _
  $region25: #{topic_att_forward.8} parent=0 // pred_fallthru
    _
  // Predicated region
  $region26: #{topic_att_forward.8} parent=0 // pred_check
    _
  $region27: #{topic_att_forward.8} parent=0 // pred_check_branch
    %25 = sbr.rel (0) target = $region29
  $region28: #{topic_att_forward.8} parent=0 // pred_region
    _
  $region29: #{topic_att_forward.8} parent=0 // pred_fallthru
    _
  %v27 = vld [vmem:[%s0] sm:$0x3]
  %v28 = vld [vmem:[%s0 + $0x2] sm:$0x3]
  %v29 = vld [vmem:[%s0 + $0x4] sm:$0x3]
  %v30 = vld [vmem:[%s0 + $0x6] sm:$0x3]
  %v31 = vld [vmem:[%s0 + $0x8] sm:$0x3]
  %v32 = vld [vmem:[%s0 + $0xa] sm:$0x3]
  %v33 = vld [vmem:[%s0 + $0xc] sm:$0x3]
  %v34 = vld [vmem:[%s0 + $0xe] sm:$0x3]
  %v35 = vld [vmem:[%s1] sm:$0x3]
  %v36 = vld [vmem:[%s1 + $0x2] sm:$0x3]
  %v37 = vld [vmem:[%s1 + $0x4] sm:$0x3]
  %v38 = vld [vmem:[%s1 + $0x6] sm:$0x3]
  %v39 = vld [vmem:[%s1 + $0x8] sm:$0x3]
  %v40 = vld [vmem:[%s1 + $0xa] sm:$0x3]
  %v41 = vld [vmem:[%s1 + $0xc] sm:$0x3]
  %v42 = vld [vmem:[%s1 + $0xe] sm:$0x3]
  %v43 = vpack.c.bf16 %v27, %v27
  %v44 = vpack.c.bf16 %v28, %v28
  %v45 = vpack.c.bf16 %v29, %v29
  %v46 = vpack.c.bf16 %v30, %v30
  %v47 = vpack.c.bf16 %v31, %v31
  %v48 = vpack.c.bf16 %v32, %v32
  %v49 = vpack.c.bf16 %v33, %v33
  %v50 = vpack.c.bf16 %v34, %v34
  %v51 = vpack.c.bf16 %v35, %v35
  %v52 = vpack.c.bf16 %v36, %v36
  %v53 = vpack.c.bf16 %v37, %v37
  %v54 = vpack.c.bf16 %v38, %v38
  %v55 = vpack.c.bf16 %v39, %v39
  %v56 = vpack.c.bf16 %v40, %v40
  %v57 = vpack.c.bf16 %v41, %v41
  %v58 = vpack.c.bf16 %v42, %v42
  %v59 = vld [vmem:[%s2] sm:$0xf]
  %v60 = vld [vmem:[%s2 + $0x4] sm:$0xf]
  %v61 = vld [vmem:[%s3] sm:$0xf]
  %v62 = vld [vmem:[%s3 + $0x4] sm:$0xf]
  %64 = vst [vmem:[#allocation1] ss:$9 sm:$0xff] %v51
  %s66 = scalar_lea.vmem [#allocation1], 1
  %67 = vst [vmem:[%s66] ss:$9 sm:$0xff] %v52
  %s69 = scalar_lea.vmem [#allocation1], 2
  %70 = vst [vmem:[%s69] ss:$9 sm:$0xff] %v53
  %s72 = scalar_lea.vmem [#allocation1], 3
  %73 = vst [vmem:[%s72] ss:$9 sm:$0xff] %v54
  %s75 = scalar_lea.vmem [#allocation1], 4
  %76 = vst [vmem:[%s75] ss:$9 sm:$0xff] %v55
  %s78 = scalar_lea.vmem [#allocation1], 5
  %79 = vst [vmem:[%s78] ss:$9 sm:$0xff] %v56
  %s81 = scalar_lea.vmem [#allocation1], 6
  %82 = vst [vmem:[%s81] ss:$9 sm:$0xff] %v57
  %s84 = scalar_lea.vmem [#allocation1], 7
  %85 = vst [vmem:[%s84] ss:$9 sm:$0xff] %v58
  %v86 = vld [vmem:[#allocation1] sm:$0xff]
  %v89 = vunpack.c.l.b16 %v61
  %v90 = vunpack.c.l.b16 %v62
  %v91 = vpack.c.b16 %v90, %v89
  %vm92 = vcmask 130048
  %v93 = vsel %vm92, %v86, 0
  %v96 = vsel %vm92, %v91, 0
  %98 = vmatpush.bf16.xpose.msra.mxu0 0
  %99 = vmatpush.bf16.xpose.msra.mxu0 0
  %100 = vmatpush.bf16.xpose.msra.mxu0 0
  %101 = vmatpush.bf16.xpose.msra.mxu0 0
  %102 = vmatpush.bf16.xpose.msra.mxu0 0
  %103 = vmatpush.bf16.xpose.msra.mxu0 0
  %104 = vmatpush.bf16.xpose.msra.mxu0 0
  %105 = vmatpush.bf16.xpose.msra.mxu0 %v96
  %106 = vmatmul.bf16.gmra.mxu0 %v93
  %v107 = vpop.f32.mrf.mxu0
  %v108 = vadd.f32 0.0, %v107
  %v109 = vpop.f32.mrf.mxu0
  %v110 = vadd.f32 0.0, %v109
  %111 = vdwg.mxu0
  %113 = vst [vmem:[#allocation1] ss:$9 sm:$0xff] %v43
  %s115 = scalar_lea.vmem [#allocation1], 1
  %116 = vst [vmem:[%s115] ss:$9 sm:$0xff] %v44
  %s118 = scalar_lea.vmem [#allocation1], 2
  %119 = vst [vmem:[%s118] ss:$9 sm:$0xff] %v45
  %s121 = scalar_lea.vmem [#allocation1], 3
  %122 = vst [vmem:[%s121] ss:$9 sm:$0xff] %v46
  %s124 = scalar_lea.vmem [#allocation1], 4
  %125 = vst [vmem:[%s124] ss:$9 sm:$0xff] %v47
  %s127 = scalar_lea.vmem [#allocation1], 5
  %128 = vst [vmem:[%s127] ss:$9 sm:$0xff] %v48
  %s130 = scalar_lea.vmem [#allocation1], 6
  %131 = vst [vmem:[%s130] ss:$9 sm:$0xff] %v49
  %s133 = scalar_lea.vmem [#allocation1], 7
  %134 = vst [vmem:[%s133] ss:$9 sm:$0xff] %v50
  %v135 = vld [vmem:[#allocation1] sm:$0xff]
  %v138 = vunpack.c.l.b16 %v59
  %v139 = vunpack.c.l.b16 %v60
  %v140 = vpack.c.b16 %v139, %v138
  %v141 = vsel %vm92, %v135, 0
  %v144 = vsel %vm92, %v140, 0
  %146 = vmatpush.bf16.xpose.msra.mxu0 0
  %147 = vmatpush.bf16.xpose.msra.mxu0 0
  %148 = vmatpush.bf16.xpose.msra.mxu0 0
  %149 = vmatpush.bf16.xpose.msra.mxu0 0
  %150 = vmatpush.bf16.xpose.msra.mxu0 0
  %151 = vmatpush.bf16.xpose.msra.mxu0 0
  %152 = vmatpush.bf16.xpose.msra.mxu0 0
  %153 = vmatpush.bf16.xpose.msra.mxu0 %v144
  %154 = vmatmul.bf16.gmra.mxu0 %v141
  %v155 = vpop.f32.mrf.mxu0
  %v156 = vadd.f32 %v108, %v155
  %v157 = vpop.f32.mrf.mxu0
  %v158 = vadd.f32 %v110, %v157
  %159 = vdwg.mxu0
  %v160 = vld [vmem:[%s4] sm:$0x1]
  %v162 = vperm.slane %v160, 0
  %v164 = vadd.f32 %v156, %v162
  %v165 = vadd.f32 %v158, %v162
  %v166 = vtanh.pop %v164
  %v167 = vtanh.pop %v165
  %v170 = vrot.slane %v166, 2
  %v171 = vrot.slane %v166, 4
  %v172 = vrot.slane %v166, 6
  %v173 = vrot.slane %v167, 2
  %v174 = vrot.slane %v167, 4
  %v175 = vrot.slane %v167, 6
  %v182 = vpack.c.bf16 %v166, %v166
  %v183 = vpack.c.bf16 %v170, %v170
  %v184 = vpack.c.bf16 %v171, %v171
  %v185 = vpack.c.bf16 %v172, %v172
  %v186 = vpack.c.bf16 %v167, %v167
  %v187 = vpack.c.bf16 %v173, %v173
  %v188 = vpack.c.bf16 %v174, %v174
  %v189 = vpack.c.bf16 %v175, %v175
  %v190 = vld [vmem:[%s5] sm:$0xf]
  %v191 = vld [vmem:[%s6] sm:$0x3]
  %v200 = vunpack.c.l.b16 %v182
  %v201 = vunpack.c.l.b16 %v183
  %v202 = vunpack.c.l.b16 %v184
  %v203 = vunpack.c.l.b16 %v185
  %v204 = vunpack.c.l.b16 %v186
  %v205 = vunpack.c.l.b16 %v187
  %v206 = vunpack.c.l.b16 %v188
  %v207 = vunpack.c.l.b16 %v189
  %v208 = vpack.c.b16 %v200, %v200
  %v209 = vpack.c.b16 %v201, %v201
  %v210 = vpack.c.b16 %v202, %v202
  %v211 = vpack.c.b16 %v203, %v203
  %v212 = vpack.c.b16 %v204, %v204
  %v213 = vpack.c.b16 %v205, %v205
  %v214 = vpack.c.b16 %v206, %v206
  %v215 = vpack.c.b16 %v207, %v207
  %v216 = vunpack.c.l.b16 %v208
  %v217 = vunpack.c.l.b16 %v209
  %v218 = vunpack.c.l.b16 %v210
  %v219 = vunpack.c.l.b16 %v211
  %v220 = vunpack.c.l.b16 %v212
  %v221 = vunpack.c.l.b16 %v213
  %v222 = vunpack.c.l.b16 %v214
  %v223 = vunpack.c.l.b16 %v215
  %v224 = vrot.slane %v217, 7
  %vm225 = vcmask 1041409
  %v226 = vsel %vm225, %v224, %v216
  %v227 = vrot.slane %v218, 6
  %vm228 = vcmask 1042434
  %v229 = vsel %vm228, %v227, %v226
  %v230 = vrot.slane %v219, 5
  %vm231 = vcmask 1043459
  %v232 = vsel %vm231, %v230, %v229
  %v233 = vrot.slane %v220, 4
  %vm234 = vcmask 1044484
  %v235 = vsel %vm234, %v233, %v232
  %v236 = vrot.slane %v221, 3
  %vm237 = vcmask 1045509
  %v238 = vsel %vm237, %v236, %v235
  %v239 = vrot.slane %v222, 2
  %vm240 = vcmask 1046534
  %v241 = vsel %vm240, %v239, %v238
  %v242 = vrot.slane %v223, 1
  %vm243 = vcmask 1047559
  %v244 = vsel %vm243, %v242, %v241
  %v245 = vpack.c.b16 %v244, %v244
  %v247 = vsel %vm92, %v190, 0
  %v250 = vsel %vm92, %v245, 0
  %252 = vmatpush.bf16.xpose.msra.mxu0 0
  %253 = vmatpush.bf16.xpose.msra.mxu0 0
  %254 = vmatpush.bf16.xpose.msra.mxu0 0
  %255 = vmatpush.bf16.xpose.msra.mxu0 0
  %256 = vmatpush.bf16.xpose.msra.mxu0 0
  %257 = vmatpush.bf16.xpose.msra.mxu0 0
  %258 = vmatpush.bf16.xpose.msra.mxu0 0
  %259 = vmatpush.bf16.xpose.msra.mxu0 %v250
  %260 = vmatmul.bf16.gmra.mxu0 %v247
  %v261 = vpop.f32.mrf.mxu0
  %v262 = vadd.f32 0.0, %v261
  %v263 = vpop.f32.mrf.mxu0
  %264 = vdwg.mxu0
  %vm265 = vcmask 64512
  %v266 = vsel %vm265, %v262, -inf
  %267 = vmax.xlane.f32.xlu0 %v266
  %v268 = vpop.xlane.xlu0 %267
  %v269 = vsub.f32 %v262, %v268
  %v270 = vmul.f32 %v269, 1.442695
  %v271 = vpow.pop %v270
  %v272 = vsel %vm265, %v271, 0.0
  %273 = vadd.xlane.f32.xlu0 %v272
  %v274 = vpop.xlane.xlu0 %273
  %v275 = vrcp.pop %v274
  %v276 = vmul.f32 %v274, %v275
  %v277 = vsub.f32 1.0, %v276
  %v278 = vmul.f32 %v275, %v277
  %v279 = vadd.f32 %v275, %v278
  %vm280 = vweird.f32 %v274
  %vm281 = vweird.f32 %v275
  %vm282 = vmor %vm280, %vm281
  %v283 = vsel %vm282, %v275, %v279
  %v284 = vand.u32 2147483647, %v274
  %vm285 = vcmp.eq.f32.partialorder %v284, 8.507059e+37
  %v286 = vand.u32 %v274, 2147483648
  %v287 = vor.u32 1.1754944e-38, %v286
  %v288 = vsel %vm285, %v287, %v283
  %v289 = vmul.f32 %v271, %v288
  %v291 = vsel %vm265, %v191, 0
  %293 = vmatpush.msra.mxu0 0.0
  %294 = vmatpush.msra.mxu0 0.0
  %295 = vmatpush.msra.mxu0 0.0
  %296 = vmatpush.msra.mxu0 0.0
  %297 = vmatpush.msra.mxu0 0.0
  %298 = vmatpush.msra.mxu0 0.0
  %299 = vmatpush.msra.mxu0 0.0
  %300 = vmatpush.msra.mxu0 0.0
  %301 = vmatpush.msra.mxu0 0.0
  %302 = vmatpush.msra.mxu0 0.0
  %303 = vmatpush.msra.mxu0 0.0
  %304 = vmatpush.msra.mxu0 0.0
  %305 = vmatpush.msra.mxu0 0.0
  %306 = vmatpush.msra.mxu0 0.0
  %307 = vmatpush.msra.mxu0 0.0
  %308 = vmatpush.msra.mxu0 %v289
  %309 = vmatmul.f32.gmra.mxu0 %v291
  %v310 = vpop.f32.mrf.mxu0
  %v311 = vadd.f32 0.0, %v310
  %312 = vdwg.mxu0
  %v321 = vrot.slane %v28, 7
  %v322 = vsel %vm225, %v321, %v27
  %v323 = vrot.slane %v29, 6
  %v324 = vsel %vm228, %v323, %v322
  %v325 = vrot.slane %v30, 5
  %v326 = vsel %vm231, %v325, %v324
  %v327 = vrot.slane %v31, 4
  %v328 = vsel %vm234, %v327, %v326
  %v329 = vrot.slane %v32, 3
  %v330 = vsel %vm237, %v329, %v328
  %v331 = vrot.slane %v33, 2
  %v332 = vsel %vm240, %v331, %v330
  %v333 = vrot.slane %v34, 1
  %v334 = vsel %vm243, %v333, %v332
  %v337 = vsel %vm265, %v311, 0
  %339 = vmatpush.msra.mxu0 0.0
  %340 = vmatpush.msra.mxu0 0.0
  %341 = vmatpush.msra.mxu0 0.0
  %342 = vmatpush.msra.mxu0 0.0
  %343 = vmatpush.msra.mxu0 0.0
  %344 = vmatpush.msra.mxu0 0.0
  %345 = vmatpush.msra.mxu0 0.0
  %346 = vmatpush.msra.mxu0 0.0
  %347 = vmatpush.msra.mxu0 0.0
  %348 = vmatpush.msra.mxu0 0.0
  %349 = vmatpush.msra.mxu0 0.0
  %350 = vmatpush.msra.mxu0 0.0
  %351 = vmatpush.msra.mxu0 0.0
  %352 = vmatpush.msra.mxu0 0.0
  %353 = vmatpush.msra.mxu0 0.0
  %354 = vmatpush.msra.mxu0 %v334
  %355 = vmatmul.f32.gmra.mxu0 %v337
  %v356 = vpop.f32.mrf.mxu0
  %v357 = vadd.f32 0.0, %v356
  %358 = vdwg.mxu0
  %vm359 = vcmask 122880
  %360 = vst.msk [vmem:[%s7] sm:$0x1] %vm359, %v357
  %v369 = vrot.slane %v36, 7
  %v370 = vsel %vm225, %v369, %v35
  %v371 = vrot.slane %v37, 6
  %v372 = vsel %vm228, %v371, %v370
  %v373 = vrot.slane %v38, 5
  %v374 = vsel %vm231, %v373, %v372
  %v375 = vrot.slane %v39, 4
  %v376 = vsel %vm234, %v375, %v374
  %v377 = vrot.slane %v40, 3
  %v378 = vsel %vm237, %v377, %v376
  %v379 = vrot.slane %v41, 2
  %v380 = vsel %vm240, %v379, %v378
  %v381 = vrot.slane %v42, 1
  %v382 = vsel %vm243, %v381, %v380
  %384 = vmatpush.msra.mxu0 0.0
  %385 = vmatpush.msra.mxu0 0.0
  %386 = vmatpush.msra.mxu0 0.0
  %387 = vmatpush.msra.mxu0 0.0
  %388 = vmatpush.msra.mxu0 0.0
  %389 = vmatpush.msra.mxu0 0.0
  %390 = vmatpush.msra.mxu0 0.0
  %391 = vmatpush.msra.mxu0 0.0
  %392 = vmatpush.msra.mxu0 0.0
  %393 = vmatpush.msra.mxu0 0.0
  %394 = vmatpush.msra.mxu0 0.0
  %395 = vmatpush.msra.mxu0 0.0
  %396 = vmatpush.msra.mxu0 0.0
  %397 = vmatpush.msra.mxu0 0.0
  %398 = vmatpush.msra.mxu0 0.0
  %399 = vmatpush.msra.mxu0 %v382
  %400 = vmatmul.f32.gmra.mxu0 %v337
  %v401 = vpop.f32.mrf.mxu0
  %v402 = vadd.f32 0.0, %v401
  %403 = vdwg.mxu0
  %405 = vrot.lane.b32.xlu0 %v402, 16
  %v406 = vpop.permute.xlu0 %405
  %vm408 = vcmask 254080
  %409 = vst.msk [vmem:[%s7] sm:$0x1] %vm408, %v406
  %v410 = vrot.slane %v216, 1
  %v411 = vsel %vm225, %v217, %v410
  %v412 = vrot.slane %v218, 7
  %v413 = vsel %vm228, %v412, %v411
  %v414 = vrot.slane %v219, 6
  %v415 = vsel %vm231, %v414, %v413
  %v416 = vrot.slane %v220, 5
  %v417 = vsel %vm234, %v416, %v415
  %v418 = vrot.slane %v221, 4
  %v419 = vsel %vm237, %v418, %v417
  %v420 = vrot.slane %v222, 3
  %v421 = vsel %vm240, %v420, %v419
  %v422 = vrot.slane %v223, 2
  %v423 = vsel %vm243, %v422, %v421
  %v424 = vpack.c.b16 %v423, %v423
  %v426 = vsel %vm92, %v424, 0
  %428 = vmatpush.bf16.xpose.msra.mxu0 0
  %429 = vmatpush.bf16.xpose.msra.mxu0 0
  %430 = vmatpush.bf16.xpose.msra.mxu0 0
  %431 = vmatpush.bf16.xpose.msra.mxu0 0
  %432 = vmatpush.bf16.xpose.msra.mxu0 0
  %433 = vmatpush.bf16.xpose.msra.mxu0 0
  %434 = vmatpush.bf16.xpose.msra.mxu0 0
  %435 = vmatpush.bf16.xpose.msra.mxu0 %v426
  %436 = vmatmul.bf16.gmra.mxu0 %v247
  %v437 = vpop.f32.mrf.mxu0
  %v438 = vadd.f32 0.0, %v437
  %v439 = vpop.f32.mrf.mxu0
  %440 = vdwg.mxu0
  %v441 = vsel %vm265, %v438, -inf
  %442 = vmax.xlane.f32.xlu0 %v441
  %v443 = vpop.xlane.xlu0 %442
  %v444 = vsub.f32 %v438, %v443
  %v445 = vmul.f32 %v444, 1.442695
  %v446 = vpow.pop %v445
  %v447 = vsel %vm265, %v446, 0.0
  %448 = vadd.xlane.f32.xlu0 %v447
  %v449 = vpop.xlane.xlu0 %448
  %v450 = vrcp.pop %v449
  %v451 = vmul.f32 %v449, %v450
  %v452 = vsub.f32 1.0, %v451
  %v453 = vmul.f32 %v450, %v452
  %v454 = vadd.f32 %v450, %v453
  %vm455 = vweird.f32 %v449
  %vm456 = vweird.f32 %v450
  %vm457 = vmor %vm455, %vm456
  %v458 = vsel %vm457, %v450, %v454
  %v459 = vand.u32 2147483647, %v449
  %vm460 = vcmp.eq.f32.partialorder %v459, 8.507059e+37
  %v461 = vand.u32 %v449, 2147483648
  %v462 = vor.u32 1.1754944e-38, %v461
  %v463 = vsel %vm460, %v462, %v458
  %v464 = vmul.f32 %v446, %v463
  %v465 = vrot.slane %v191, 1
  %v466 = vsel %vm265, %v465, 0
  %468 = vmatpush.msra.mxu0 0.0
  %469 = vmatpush.msra.mxu0 0.0
  %470 = vmatpush.msra.mxu0 0.0
  %471 = vmatpush.msra.mxu0 0.0
  %472 = vmatpush.msra.mxu0 0.0
  %473 = vmatpush.msra.mxu0 0.0
  %474 = vmatpush.msra.mxu0 0.0
  %475 = vmatpush.msra.mxu0 0.0
  %476 = vmatpush.msra.mxu0 0.0
  %477 = vmatpush.msra.mxu0 0.0
  %478 = vmatpush.msra.mxu0 0.0
  %479 = vmatpush.msra.mxu0 0.0
  %480 = vmatpush.msra.mxu0 0.0
  %481 = vmatpush.msra.mxu0 0.0
  %482 = vmatpush.msra.mxu0 0.0
  %483 = vmatpush.msra.mxu0 %v464
  %484 = vmatmul.f32.gmra.mxu0 %v466
  %v485 = vpop.f32.mrf.mxu0
  %v486 = vadd.f32 0.0, %v485
  %487 = vdwg.mxu0
  %v488 = vrot.slane %v27, 1
  %v489 = vsel %vm225, %v28, %v488
  %v490 = vrot.slane %v29, 7
  %v491 = vsel %vm228, %v490, %v489
  %v492 = vrot.slane %v30, 6
  %v493 = vsel %vm231, %v492, %v491
  %v494 = vrot.slane %v31, 5
  %v495 = vsel %vm234, %v494, %v493
  %v496 = vrot.slane %v32, 4
  %v497 = vsel %vm237, %v496, %v495
  %v498 = vrot.slane %v33, 3
  %v499 = vsel %vm240, %v498, %v497
  %v500 = vrot.slane %v34, 2
  %v501 = vsel %vm243, %v500, %v499
  %v504 = vsel %vm265, %v486, 0
  %506 = vmatpush.msra.mxu0 0.0
  %507 = vmatpush.msra.mxu0 0.0
  %508 = vmatpush.msra.mxu0 0.0
  %509 = vmatpush.msra.mxu0 0.0
  %510 = vmatpush.msra.mxu0 0.0
  %511 = vmatpush.msra.mxu0 0.0
  %512 = vmatpush.msra.mxu0 0.0
  %513 = vmatpush.msra.mxu0 0.0
  %514 = vmatpush.msra.mxu0 0.0
  %515 = vmatpush.msra.mxu0 0.0
  %516 = vmatpush.msra.mxu0 0.0
  %517 = vmatpush.msra.mxu0 0.0
  %518 = vmatpush.msra.mxu0 0.0
  %519 = vmatpush.msra.mxu0 0.0
  %520 = vmatpush.msra.mxu0 0.0
  %521 = vmatpush.msra.mxu0 %v501
  %522 = vmatmul.f32.gmra.mxu0 %v504
  %v523 = vpop.f32.mrf.mxu0
  %v524 = vadd.f32 0.0, %v523
  %525 = vdwg.mxu0
  %526 = vst.msk [vmem:[%s7 + $0x1] sm:$0x1] %vm359, %v524
  %v527 = vrot.slane %v35, 1
  %v528 = vsel %vm225, %v36, %v527
  %v529 = vrot.slane %v37, 7
  %v530 = vsel %vm228, %v529, %v528
  %v531 = vrot.slane %v38, 6
  %v532 = vsel %vm231, %v531, %v530
  %v533 = vrot.slane %v39, 5
  %v534 = vsel %vm234, %v533, %v532
  %v535 = vrot.slane %v40, 4
  %v536 = vsel %vm237, %v535, %v534
  %v537 = vrot.slane %v41, 3
  %v538 = vsel %vm240, %v537, %v536
  %v539 = vrot.slane %v42, 2
  %v540 = vsel %vm243, %v539, %v538
  %542 = vmatpush.msra.mxu0 0.0
  %543 = vmatpush.msra.mxu0 0.0
  %544 = vmatpush.msra.mxu0 0.0
  %545 = vmatpush.msra.mxu0 0.0
  %546 = vmatpush.msra.mxu0 0.0
  %547 = vmatpush.msra.mxu0 0.0
  %548 = vmatpush.msra.mxu0 0.0
  %549 = vmatpush.msra.mxu0 0.0
  %550 = vmatpush.msra.mxu0 0.0
  %551 = vmatpush.msra.mxu0 0.0
  %552 = vmatpush.msra.mxu0 0.0
  %553 = vmatpush.msra.mxu0 0.0
  %554 = vmatpush.msra.mxu0 0.0
  %555 = vmatpush.msra.mxu0 0.0
  %556 = vmatpush.msra.mxu0 0.0
  %557 = vmatpush.msra.mxu0 %v540
  %558 = vmatmul.f32.gmra.mxu0 %v504
  %v559 = vpop.f32.mrf.mxu0
  %v560 = vadd.f32 0.0, %v559
  %561 = vdwg.mxu0
  %563 = vrot.lane.b32.xlu0 %v560, 16
  %v564 = vpop.permute.xlu0 %563
  %566 = vst.msk [vmem:[%s7 + $0x1] sm:$0x1] %vm408, %v564
  // Predicated region
  $region30: #{topic_att_forward.8} parent=0 // pred_check
    _
  $region31: #{topic_att_forward.8} parent=0 // pred_check_branch
    %568 = sbr.rel (0) target = $region33
  $region32: #{topic_att_forward.8} parent=0 // pred_region
    _
  $region33: #{topic_att_forward.8} parent=0 // pred_fallthru
    _
  // Predicated region
  $region34: #{topic_att_forward.8} parent=0 // pred_check
    _
  $region35: #{topic_att_forward.8} parent=0 // pred_check_branch
    %570 = sbr.rel (0) target = $region37
  $region36: #{topic_att_forward.8} parent=0 // pred_region
    _
  $region37: #{topic_att_forward.8} parent=0 // pred_fallthru
    _

// kernel: topic_att_forward.7
$region0: #{topic_att_forward.7}
  #allocation0 [shape = 'u32[]', space=smem, size = 0x4, offset = 0x4, fixed_abs, tag = 'smem constant byte address 0x4 - core index']
  #allocation1 [shape = 'u32[72,128]{1,0:T(1,128)}', space=vmem, size = 0x9000, scoped, tag = 'internal scratch']
  #allocation2 [shape = 'f32[2,32]{1,0:T(2,128)}', space=vmem, size = 0x400, scoped, tag = 'scratch operand']
  #allocation3 [shape = 'f32[8,1]{1,0:T(8,128)}', space=vmem, size = 0x1000, scoped, tag = 'scratch operand']
  #allocation4 [shape = 'f32[8,1]{1,0:T(8,128)}', space=vmem, size = 0x1000, scoped, tag = 'scratch operand']
  #allocation5 [shape = 'f32[1,8,128]{2,1,0:T(8,128)}', space=vmem, size = 0x1000, scoped, tag = 'scratch operand']
  %s0 = inlined_call_operand.vmem [shape: bf16[2,128], index: 0, kind: input, shape index: {}]
  %s1 = inlined_call_operand.vmem [shape: bf16[32,128], index: 1, kind: input, shape index: {}]
  %s2 = inlined_call_operand.vmem [shape: f32[1,32], index: 2, kind: input, shape index: {}]
  %s3 = inlined_call_operand.vmem [shape: f32[16,32], index: 3, kind: input, shape index: {}]
  %s4 = inlined_call_operand.vmem [shape: f32[1,16], index: 4, kind: input, shape index: {}]
  %s5 = inlined_call_operand.vmem [shape: f32[16,16], index: 5, kind: input, shape index: {}]
  %s6 = inlined_call_operand.vmem [shape: f32[1,16], index: 6, kind: input, shape index: {}]
  %s7 = inlined_call_operand.vmem [shape: f32[8,8], index: 7, kind: input, shape index: {}]
  %s8 = inlined_call_operand.vmem [shape: f32[1,8], index: 8, kind: input, shape index: {}]
  %s9 = inlined_call_operand.vmem [shape: bf16[8,16], index: 9, kind: input, shape index: {}]
  %s10 = inlined_call_operand.vmem [shape: bf16[128,16], index: 10, kind: input, shape index: {}]
  %s11 = inlined_call_operand.vmem [shape: f32[2,8], index: 11, kind: output, shape index: {0}]
  %s12 = inlined_call_operand.vmem [shape: f32[2,1], index: 12, kind: output, shape index: {1}]
  %13 = xla_tuple %s11, %s12
  %s14 = sld [smem:[#allocation0]]
  $region101: #{topic_att_forward.7} parent=0
    _
  %s16 = ssub.s32 1, %s14
  %s17 = scalar_select 0, %s16, %s14
  loop: start=0, step=1, limit=4
  $region2: #{topic_att_forward.7} parent=0 // loop_pre_header
    _
  $region3: #{topic_att_forward.7} parent=0 // loop_header
    %s19 = sphi 0, %s23
    %p20 = scmp.ge.s32.totalorder %s19, 4
    %s26 = sphi 0, %s45
    %s27 = sphi 0, %s41
    %s28 = sphi 0, %s37
    %s29 = sphi 0, %s26
    %s30 = sphi 0, %s27
    %s31 = sphi 0, %s28
    %s32 = sphi 0, %s29
    %s33 = sphi 0, %s30
    %s34 = sphi 0, %s31
    %s50 = sphi 0, %s52
    %s53 = sphi 0, %s50
    %s54 = sphi 0, %s53
    %s70 = sphi 0, %s54
    %s80 = sphi 0, %s82
    %s83 = sphi 0, %s80
    %s84 = sphi 0, %s83
    %s100 = sphi 0, %s84
    %s104 = sphi 0, %s104
    %s106 = sphi 0, %s104
    %s107 = sphi 0, %s106
    %s121 = sphi 0, %s107
    %s125 = sphi 0, %s125
    %s127 = sphi 0, %s125
    %s128 = sphi 0, %s127
    %s142 = sphi 0, %s128
    %s146 = sphi 0, %s146
    %s148 = sphi 0, %s146
    %s149 = sphi 0, %s148
    %s163 = sphi 0, %s149
    %s167 = sphi 0, %s167
    %s169 = sphi 0, %s167
    %s170 = sphi 0, %s169
    %s184 = sphi 0, %s170
    %s188 = sphi 0, %s188
    %s190 = sphi 0, %s188
    %s191 = sphi 0, %s190
    %s205 = sphi 0, %s191
    %s209 = sphi 0, %s209
    %s211 = sphi 0, %s209
    %s212 = sphi 0, %s211
    %s226 = sphi 0, %s212
    %s230 = sphi 0, %s230
    %s232 = sphi 0, %s230
    %s233 = sphi 0, %s232
    %s247 = sphi 0, %s233
    %s251 = sphi 0, %s251
    %s253 = sphi 0, %s251
    %s254 = sphi 0, %s253
    %s268 = sphi 0, %s254
    %s278 = sphi 0, %s280
    %s281 = sphi 0, %s278
    %s282 = sphi 0, %s281
    %s298 = sphi 0, %s282
    %s304 = sphi 0, %s306
    %s307 = sphi 0, %s304
    %s308 = sphi 0, %s307
    %s324 = sphi 0, %s308
    %s330 = sphi 0, %s332
    %s333 = sphi 0, %s330
    %s334 = sphi 0, %s333
    %s350 = sphi 0, %s334
  $region4: #{topic_att_forward.7} parent=0 // loop_header_branch
    %22 = sbr.rel (%p20) target = $region8
  $region5: #{topic_att_forward.7} parent=0 // loop_body
    %s24 = ssub.s32 %s19, 1
    %s25 = ssub.s32 %s19, 2
    %s35 = sadd.s32 1, %s28
    %p36 = scmp.ge.s32.totalorder %s35, 1
    %s37 = scalar_select %p36, 0, %s35
    %s38 = sadd.s32 1, %s27
    %s39 = scalar_select %p36, %s38, %s27
    %p40 = scmp.ge.s32.totalorder %s39, 2
    %s41 = scalar_select %p40, 0, %s39
    %s42 = sadd.s32 1, %s26
    %s43 = scalar_select %p40, %s42, %s26
    %p44 = scmp.ge.s32.totalorder %s43, 1
    %s45 = scalar_select %p44, 0, %s43
    %s46 = ssub.s32 %s26, %s45
    %s47 = ssub.s32 %s28, %s37
    %s48 = sor.u32 %s46, %s47
    %p49 = scmp.eq.s32.totalorder %s48, 0
    %s51 = sadd.s32 %s50, 1
    %s52 = scalar_select %p49, %s50, %s51
    %p55 = pneg %p49
    %p56 = scmp.eq.s32.totalorder %s19, 1
    %p57 = por %p55, %p56
    %p58 = scmp.ne.s32.totalorder %s50, %s53
    %p59 = scmp.eq.s32.totalorder %s19, 0
    %p60 = por %p58, %p59
    %p61 = scmp.ne.s32.totalorder %s50, %s53
    %p62 = scmp.eq.s32.totalorder %s24, 1
    %p63 = por %p61, %p62
    %p64 = scmp.ne.s32.totalorder %s53, %s54
    %p65 = scmp.eq.s32.totalorder %s24, 0
    %p66 = por %p64, %p65
    %p67 = scmp.ne.s32.totalorder %s53, %s54
    %p68 = scmp.eq.s32.totalorder %s25, 1
    %p69 = por %p67, %p68
    %p71 = scmp.ne.s32.totalorder %s54, %s70
    %p72 = scmp.eq.s32.totalorder %s25, 0
    %p73 = por %p71, %p72
    %s74 = ssub.s32 1, %s27
    %s75 = smul.u32 %s28, %s74
    %s76 = ssub.s32 1, %s41
    %s77 = smul.u32 %s37, %s76
    %s78 = ssub.s32 %s75, %s77
    %p79 = scmp.eq.s32.totalorder %s78, 0
    %s81 = sadd.s32 %s80, 1
    %s82 = scalar_select %p79, %s80, %s81
    %p85 = pneg %p79
    %p86 = scmp.eq.s32.totalorder %s19, 1
    %p87 = por %p85, %p86
    %p88 = scmp.ne.s32.totalorder %s80, %s83
    %p89 = scmp.eq.s32.totalorder %s19, 0
    %p90 = por %p88, %p89
    %p91 = scmp.ne.s32.totalorder %s80, %s83
    %p92 = scmp.eq.s32.totalorder %s24, 1
    %p93 = por %p91, %p92
    %p94 = scmp.ne.s32.totalorder %s83, %s84
    %p95 = scmp.eq.s32.totalorder %s24, 0
    %p96 = por %p94, %p95
    %p97 = scmp.ne.s32.totalorder %s83, %s84
    %p98 = scmp.eq.s32.totalorder %s25, 1
    %p99 = por %p97, %p98
    %p101 = scmp.ne.s32.totalorder %s84, %s100
    %p102 = scmp.eq.s32.totalorder %s25, 0
    %p103 = por %p101, %p102
    %s105 = sadd.s32 %s104, 1
    %p108 = scmp.eq.s32.totalorder %s19, 1
    %p109 = scmp.ne.s32.totalorder %s104, %s106
    %p110 = scmp.eq.s32.totalorder %s19, 0
    %p111 = por %p109, %p110
    %p112 = scmp.ne.s32.totalorder %s104, %s106
    %p113 = scmp.eq.s32.totalorder %s24, 1
    %p114 = por %p112, %p113
    %p115 = scmp.ne.s32.totalorder %s106, %s107
    %p116 = scmp.eq.s32.totalorder %s24, 0
    %p117 = por %p115, %p116
    %p118 = scmp.ne.s32.totalorder %s106, %s107
    %p119 = scmp.eq.s32.totalorder %s25, 1
    %p120 = por %p118, %p119
    %p122 = scmp.ne.s32.totalorder %s107, %s121
    %p123 = scmp.eq.s32.totalorder %s25, 0
    %p124 = por %p122, %p123
    %s126 = sadd.s32 %s125, 1
    %p129 = scmp.eq.s32.totalorder %s19, 1
    %p130 = scmp.ne.s32.totalorder %s125, %s127
    %p131 = scmp.eq.s32.totalorder %s19, 0
    %p132 = por %p130, %p131
    %p133 = scmp.ne.s32.totalorder %s125, %s127
    %p134 = scmp.eq.s32.totalorder %s24, 1
    %p135 = por %p133, %p134
    %p136 = scmp.ne.s32.totalorder %s127, %s128
    %p137 = scmp.eq.s32.totalorder %s24, 0
    %p138 = por %p136, %p137
    %p139 = scmp.ne.s32.totalorder %s127, %s128
    %p140 = scmp.eq.s32.totalorder %s25, 1
    %p141 = por %p139, %p140
    %p143 = scmp.ne.s32.totalorder %s128, %s142
    %p144 = scmp.eq.s32.totalorder %s25, 0
    %p145 = por %p143, %p144
    %s147 = sadd.s32 %s146, 1
    %p150 = scmp.eq.s32.totalorder %s19, 1
    %p151 = scmp.ne.s32.totalorder %s146, %s148
    %p152 = scmp.eq.s32.totalorder %s19, 0
    %p153 = por %p151, %p152
    %p154 = scmp.ne.s32.totalorder %s146, %s148
    %p155 = scmp.eq.s32.totalorder %s24, 1
    %p156 = por %p154, %p155
    %p157 = scmp.ne.s32.totalorder %s148, %s149
    %p158 = scmp.eq.s32.totalorder %s24, 0
    %p159 = por %p157, %p158
    %p160 = scmp.ne.s32.totalorder %s148, %s149
    %p161 = scmp.eq.s32.totalorder %s25, 1
    %p162 = por %p160, %p161
    %p164 = scmp.ne.s32.totalorder %s149, %s163
    %p165 = scmp.eq.s32.totalorder %s25, 0
    %p166 = por %p164, %p165
    %s168 = sadd.s32 %s167, 1
    %p171 = scmp.eq.s32.totalorder %s19, 1
    %p172 = scmp.ne.s32.totalorder %s167, %s169
    %p173 = scmp.eq.s32.totalorder %s19, 0
    %p174 = por %p172, %p173
    %p175 = scmp.ne.s32.totalorder %s167, %s169
    %p176 = scmp.eq.s32.totalorder %s24, 1
    %p177 = por %p175, %p176
    %p178 = scmp.ne.s32.totalorder %s169, %s170
    %p179 = scmp.eq.s32.totalorder %s24, 0
    %p180 = por %p178, %p179
    %p181 = scmp.ne.s32.totalorder %s169, %s170
    %p182 = scmp.eq.s32.totalorder %s25, 1
    %p183 = por %p181, %p182
    %p185 = scmp.ne.s32.totalorder %s170, %s184
    %p186 = scmp.eq.s32.totalorder %s25, 0
    %p187 = por %p185, %p186
    %s189 = sadd.s32 %s188, 1
    %p192 = scmp.eq.s32.totalorder %s19, 1
    %p193 = scmp.ne.s32.totalorder %s188, %s190
    %p194 = scmp.eq.s32.totalorder %s19, 0
    %p195 = por %p193, %p194
    %p196 = scmp.ne.s32.totalorder %s188, %s190
    %p197 = scmp.eq.s32.totalorder %s24, 1
    %p198 = por %p196, %p197
    %p199 = scmp.ne.s32.totalorder %s190, %s191
    %p200 = scmp.eq.s32.totalorder %s24, 0
    %p201 = por %p199, %p200
    %p202 = scmp.ne.s32.totalorder %s190, %s191
    %p203 = scmp.eq.s32.totalorder %s25, 1
    %p204 = por %p202, %p203
    %p206 = scmp.ne.s32.totalorder %s191, %s205
    %p207 = scmp.eq.s32.totalorder %s25, 0
    %p208 = por %p206, %p207
    %s210 = sadd.s32 %s209, 1
    %p213 = scmp.eq.s32.totalorder %s19, 1
    %p214 = scmp.ne.s32.totalorder %s209, %s211
    %p215 = scmp.eq.s32.totalorder %s19, 0
    %p216 = por %p214, %p215
    %p217 = scmp.ne.s32.totalorder %s209, %s211
    %p218 = scmp.eq.s32.totalorder %s24, 1
    %p219 = por %p217, %p218
    %p220 = scmp.ne.s32.totalorder %s211, %s212
    %p221 = scmp.eq.s32.totalorder %s24, 0
    %p222 = por %p220, %p221
    %p223 = scmp.ne.s32.totalorder %s211, %s212
    %p224 = scmp.eq.s32.totalorder %s25, 1
    %p225 = por %p223, %p224
    %p227 = scmp.ne.s32.totalorder %s212, %s226
    %p228 = scmp.eq.s32.totalorder %s25, 0
    %p229 = por %p227, %p228
    %s231 = sadd.s32 %s230, 1
    %p234 = scmp.eq.s32.totalorder %s19, 1
    %p235 = scmp.ne.s32.totalorder %s230, %s232
    %p236 = scmp.eq.s32.totalorder %s19, 0
    %p237 = por %p235, %p236
    %p238 = scmp.ne.s32.totalorder %s230, %s232
    %p239 = scmp.eq.s32.totalorder %s24, 1
    %p240 = por %p238, %p239
    %p241 = scmp.ne.s32.totalorder %s232, %s233
    %p242 = scmp.eq.s32.totalorder %s24, 0
    %p243 = por %p241, %p242
    %p244 = scmp.ne.s32.totalorder %s232, %s233
    %p245 = scmp.eq.s32.totalorder %s25, 1
    %p246 = por %p244, %p245
    %p248 = scmp.ne.s32.totalorder %s233, %s247
    %p249 = scmp.eq.s32.totalorder %s25, 0
    %p250 = por %p248, %p249
    %s252 = sadd.s32 %s251, 1
    %p255 = scmp.eq.s32.totalorder %s19, 1
    %p256 = scmp.ne.s32.totalorder %s251, %s253
    %p257 = scmp.eq.s32.totalorder %s19, 0
    %p258 = por %p256, %p257
    %p259 = scmp.ne.s32.totalorder %s251, %s253
    %p260 = scmp.eq.s32.totalorder %s24, 1
    %p261 = por %p259, %p260
    %p262 = scmp.ne.s32.totalorder %s253, %s254
    %p263 = scmp.eq.s32.totalorder %s24, 0
    %p264 = por %p262, %p263
    %p265 = scmp.ne.s32.totalorder %s253, %s254
    %p266 = scmp.eq.s32.totalorder %s25, 1
    %p267 = por %p265, %p266
    %p269 = scmp.ne.s32.totalorder %s254, %s268
    %p270 = scmp.eq.s32.totalorder %s25, 0
    %p271 = por %p269, %p270
    %s272 = ssub.s32 1, %s27
    %s273 = smul.u32 %s28, %s272
    %s274 = ssub.s32 1, %s41
    %s275 = smul.u32 %s37, %s274
    %s276 = ssub.s32 %s273, %s275
    %p277 = scmp.eq.s32.totalorder %s276, 0
    %s279 = sadd.s32 %s278, 1
    %s280 = scalar_select %p277, %s278, %s279
    %p283 = pneg %p277
    %p284 = scmp.eq.s32.totalorder %s19, 1
    %p285 = por %p283, %p284
    %p286 = scmp.ne.s32.totalorder %s278, %s281
    %p287 = scmp.eq.s32.totalorder %s19, 0
    %p288 = por %p286, %p287
    %p289 = scmp.ne.s32.totalorder %s278, %s281
    %p290 = scmp.eq.s32.totalorder %s24, 1
    %p291 = por %p289, %p290
    %p292 = scmp.ne.s32.totalorder %s281, %s282
    %p293 = scmp.eq.s32.totalorder %s24, 0
    %p294 = por %p292, %p293
    %p295 = scmp.ne.s32.totalorder %s281, %s282
    %p296 = scmp.eq.s32.totalorder %s25, 1
    %p297 = por %p295, %p296
    %p299 = scmp.ne.s32.totalorder %s282, %s298
    %p300 = scmp.eq.s32.totalorder %s25, 0
    %p301 = por %p299, %p300
    %s302 = ssub.s32 %s26, %s45
    %p303 = scmp.eq.s32.totalorder %s302, 0
    %s305 = sadd.s32 %s304, 1
    %s306 = scalar_select %p303, %s304, %s305
    %p309 = pneg %p303
    %p310 = scmp.eq.s32.totalorder %s19, 1
    %p311 = por %p309, %p310
    %p312 = scmp.ne.s32.totalorder %s304, %s307
    %p313 = scmp.eq.s32.totalorder %s19, 0
    %p314 = por %p312, %p313
    %p315 = scmp.ne.s32.totalorder %s304, %s307
    %p316 = scmp.eq.s32.totalorder %s24, 1
    %p317 = por %p315, %p316
    %p318 = scmp.ne.s32.totalorder %s307, %s308
    %p319 = scmp.eq.s32.totalorder %s24, 0
    %p320 = por %p318, %p319
    %p321 = scmp.ne.s32.totalorder %s307, %s308
    %p322 = scmp.eq.s32.totalorder %s25, 1
    %p323 = por %p321, %p322
    %p325 = scmp.ne.s32.totalorder %s308, %s324
    %p326 = scmp.eq.s32.totalorder %s25, 0
    %p327 = por %p325, %p326
    %s328 = ssub.s32 %s26, %s45
    %p329 = scmp.eq.s32.totalorder %s328, 0
    %s331 = sadd.s32 %s330, 1
    %s332 = scalar_select %p329, %s330, %s331
    %p335 = pneg %p329
    %p336 = scmp.eq.s32.totalorder %s19, 1
    %p337 = por %p335, %p336
    %p338 = scmp.ne.s32.totalorder %s330, %s333
    %p339 = scmp.eq.s32.totalorder %s19, 0
    %p340 = por %p338, %p339
    %p341 = scmp.ne.s32.totalorder %s330, %s333
    %p342 = scmp.eq.s32.totalorder %s24, 1
    %p343 = por %p341, %p342
    %p344 = scmp.ne.s32.totalorder %s333, %s334
    %p345 = scmp.eq.s32.totalorder %s24, 0
    %p346 = por %p344, %p345
    %p347 = scmp.ne.s32.totalorder %s333, %s334
    %p348 = scmp.eq.s32.totalorder %s25, 1
    %p349 = por %p347, %p348
    %p351 = scmp.ne.s32.totalorder %s334, %s350
    %p352 = scmp.eq.s32.totalorder %s25, 0
    %p353 = por %p351, %p352
    %p354 = scmp.le.s32.totalorder 1, %s19
    %p355 = scmp.lt.s32.totalorder %s19, 3
    %p356 = pnand %p354, %p355
    %p357 = pneg %p356
    // Predicated region
    $region9: #{topic_att_forward.7} parent=5 // pred_check
      _
    $region10: #{topic_att_forward.7} parent=5 // pred_check_branch
      %359 = sbr.rel (%p356) target = $region12
    $region11: #{topic_att_forward.7} parent=5 // pred_region
      %s360 = ssub.s32 %s19, 1
      // Predicated region
      $region13: #{topic_att_forward.7} parent=11 // pred_check
        %p361 = pneg %p66
      $region14: #{topic_att_forward.7} parent=11 // pred_check_branch
        %363 = sbr.rel (%p361) target = $region16
      $region15: #{topic_att_forward.7} parent=11 // pred_region
        %p364 = scmp.lt.s32.totalorder %s29, 0
        %s365 = scalar_select %p364, %s29, 0
        %p366 = scmp.lt.s32.totalorder %s31, 0
        %s367 = scalar_select %p366, %s31, 0
        %s368 = sadd.s32 %s367, %s365
        %s369 = scalar_lea.vmem %s0, %s368
      $region16: #{topic_att_forward.7} parent=11 // pred_fallthru
        _
      // Predicated region
      $region17: #{topic_att_forward.7} parent=11 // pred_check
        %p370 = pneg %p117
      $region18: #{topic_att_forward.7} parent=11 // pred_check_branch
        %372 = sbr.rel (%p370) target = $region20
      $region19: #{topic_att_forward.7} parent=11 // pred_region
        _
      $region20: #{topic_att_forward.7} parent=11 // pred_fallthru
        _
      // Predicated region
      $region21: #{topic_att_forward.7} parent=11 // pred_check
        %p373 = pneg %p138
      $region22: #{topic_att_forward.7} parent=11 // pred_check_branch
        %375 = sbr.rel (%p373) target = $region24
      $region23: #{topic_att_forward.7} parent=11 // pred_region
        _
      $region24: #{topic_att_forward.7} parent=11 // pred_fallthru
        _
      // Predicated region
      $region25: #{topic_att_forward.7} parent=11 // pred_check
        %p376 = pneg %p159
      $region26: #{topic_att_forward.7} parent=11 // pred_check_branch
        %378 = sbr.rel (%p376) target = $region28
      $region27: #{topic_att_forward.7} parent=11 // pred_region
        _
      $region28: #{topic_att_forward.7} parent=11 // pred_fallthru
        _
      // Predicated region
      $region29: #{topic_att_forward.7} parent=11 // pred_check
        %p379 = pneg %p180
      $region30: #{topic_att_forward.7} parent=11 // pred_check_branch
        %381 = sbr.rel (%p379) target = $region32
      $region31: #{topic_att_forward.7} parent=11 // pred_region
        _
      $region32: #{topic_att_forward.7} parent=11 // pred_fallthru
        _
      // Predicated region
      $region33: #{topic_att_forward.7} parent=11 // pred_check
        %p382 = pneg %p201
      $region34: #{topic_att_forward.7} parent=11 // pred_check_branch
        %384 = sbr.rel (%p382) target = $region36
      $region35: #{topic_att_forward.7} parent=11 // pred_region
        _
      $region36: #{topic_att_forward.7} parent=11 // pred_fallthru
        _
      // Predicated region
      $region37: #{topic_att_forward.7} parent=11 // pred_check
        %p385 = pneg %p222
      $region38: #{topic_att_forward.7} parent=11 // pred_check_branch
        %387 = sbr.rel (%p385) target = $region40
      $region39: #{topic_att_forward.7} parent=11 // pred_region
        _
      $region40: #{topic_att_forward.7} parent=11 // pred_fallthru
        _
      // Predicated region
      $region41: #{topic_att_forward.7} parent=11 // pred_check
        %p388 = pneg %p243
      $region42: #{topic_att_forward.7} parent=11 // pred_check_branch
        %390 = sbr.rel (%p388) target = $region44
      $region43: #{topic_att_forward.7} parent=11 // pred_region
        _
      $region44: #{topic_att_forward.7} parent=11 // pred_fallthru
        _
      // Predicated region
      $region45: #{topic_att_forward.7} parent=11 // pred_check
        %p391 = pneg %p264
      $region46: #{topic_att_forward.7} parent=11 // pred_check_branch
        %393 = sbr.rel (%p391) target = $region48
      $region47: #{topic_att_forward.7} parent=11 // pred_region
        _
      $region48: #{topic_att_forward.7} parent=11 // pred_fallthru
        _
    $region12: #{topic_att_forward.7} parent=5 // pred_fallthru
      _
    %p394 = scmp.lt.s32.totalorder %s19, 2
    // Predicated region
    $region49: #{topic_att_forward.7} parent=5 // pred_check
      %p395 = pneg %p394
    $region50: #{topic_att_forward.7} parent=5 // pred_check_branch
      %397 = sbr.rel (%p395) target = $region52
    $region51: #{topic_att_forward.7} parent=5 // pred_region
      // Predicated region
      $region53: #{topic_att_forward.7} parent=51 // pred_check
        %p398 = pneg %p90
      $region54: #{topic_att_forward.7} parent=51 // pred_check_branch
        %400 = sbr.rel (%p398) target = $region56
      $region55: #{topic_att_forward.7} parent=51 // pred_region
        %s401 = ssub.s32 1, %s27
        %s402 = smul.u32 %s28, %s401
        %p403 = scmp.lt.s32.totalorder %s402, 0
        %s404 = scalar_select %p403, %s402, 0
        %s405 = smul.addr %s404, 4
        %s406 = scalar_lea.vmem %s1, %s405
        %s407 = ssub.s32 1, %s27
        %s408 = smul.u32 %s28, %s407
      $region56: #{topic_att_forward.7} parent=51 // pred_fallthru
        _
      // Predicated region
      $region57: #{topic_att_forward.7} parent=51 // pred_check
        %p409 = pneg %p288
      $region58: #{topic_att_forward.7} parent=51 // pred_check_branch
        %411 = sbr.rel (%p409) target = $region60
      $region59: #{topic_att_forward.7} parent=51 // pred_region
        %s412 = ssub.s32 1, %s27
        %s413 = smul.u32 %s28, %s412
        %s414 = smul.u32 16, %s413
        %p415 = scmp.lt.s32.totalorder %s414, 15
        %s416 = scalar_select %p415, %s414, 15
        %s417 = smul.addr %s416, 4
        %s418 = scalar_lea.vmem %s10, %s417
        %s419 = ssub.s32 1, %s27
        %s420 = smul.u32 %s28, %s419
        %s421 = smul.u32 16, %s420
      $region60: #{topic_att_forward.7} parent=51 // pred_fallthru
        _
    $region52: #{topic_att_forward.7} parent=5 // pred_fallthru
      _
    %p422 = scmp.le.s32.totalorder 1, %s19
    %p423 = scmp.lt.s32.totalorder %s19, 3
    %p424 = pnand %p422, %p423
    %p425 = pneg %p424
    // Predicated region
    $region61: #{topic_att_forward.7} parent=5 // pred_check
      _
    $region62: #{topic_att_forward.7} parent=5 // pred_check_branch
      %427 = sbr.rel (%p424) target = $region64
    $region63: #{topic_att_forward.7} parent=5 // pred_region
      %s428 = ssub.s32 %s19, 1
      %p429 = scmp.lt.s32.totalorder %s29, 0
      %s430 = scalar_select %p429, %s29, 0
      %p431 = scmp.lt.s32.totalorder %s31, 0
      %s432 = scalar_select %p431, %s31, 0
      %s433 = sadd.s32 %s432, %s430
      %s434 = scalar_lea.vmem %s0, %s433
      %p435 = pneg %p66
      %p436 = pneg %p63
      %s437 = ssub.s32 1, %s30
      %s438 = smul.u32 %s31, %s437
      %p439 = scmp.lt.s32.totalorder %s438, 0
      %s440 = scalar_select %p439, %s438, 0
      %s441 = smul.addr %s440, 4
      %s442 = scalar_lea.vmem %s1, %s441
      %p443 = pneg %p96
      %p444 = pneg %p93
      %p445 = pneg %p117
      %p446 = pneg %p114
      %p447 = pneg %p138
      %p448 = pneg %p135
      %p449 = pneg %p159
      %p450 = pneg %p156
      %p451 = pneg %p180
      %p452 = pneg %p177
      %p453 = pneg %p201
      %p454 = pneg %p198
      %p455 = pneg %p222
      %p456 = pneg %p219
      %p457 = pneg %p243
      %p458 = pneg %p240
      %p459 = pneg %p264
      %p460 = pneg %p261
      %s461 = ssub.s32 1, %s30
      %s462 = smul.u32 %s31, %s461
      %s463 = smul.u32 16, %s462
      %p464 = scmp.lt.s32.totalorder %s463, 15
      %s465 = scalar_select %p464, %s463, 15
      %s466 = smul.addr %s465, 4
      %s467 = scalar_lea.vmem %s10, %s466
      %p468 = pneg %p294
      %p469 = pneg %p291
      %p470 = pneg %p320
      %p471 = pneg %p317
      %p472 = scmp.lt.s32.totalorder %s29, 0
      %s473 = scalar_select %p472, %s29, 0
      %s474 = smul.addr %s473, 2
      %s475 = scalar_lea.vmem %s11, %s474
      %p476 = pneg %p346
      %p477 = pneg %p343
      %p478 = scmp.lt.s32.totalorder %s29, 0
      %s479 = scalar_select %p478, %s29, 0
      %s480 = smul.addr %s479, 2
      %s481 = scalar_lea.vmem %s12, %s480
      %p482 = scmp.lt.s32.totalorder %s29, 0
      %s483 = scalar_select %p482, %s29, 0
      %p484 = scmp.lt.s32.totalorder %s31, 0
      %s485 = scalar_select %p484, %s31, 0
      %s486 = sadd.s32 %s485, %s483
      %s487 = scalar_lea.vmem %s0, %s486
      %s488 = ssub.s32 1, %s30
      %s489 = smul.u32 %s31, %s488
      %p490 = scmp.lt.s32.totalorder %s489, 0
      %s491 = scalar_select %p490, %s489, 0
      %s492 = smul.addr %s491, 4
      %s493 = scalar_lea.vmem %s1, %s492
      %s494 = ssub.s32 1, %s30
      %s495 = smul.u32 %s31, %s494
      %s496 = ssub.s32 1, %s30
      %s497 = smul.u32 %s31, %s496
      %s498 = smul.u32 16, %s497
      %p499 = scmp.lt.s32.totalorder %s498, 15
      %s500 = scalar_select %p499, %s498, 15
      %s501 = smul.addr %s500, 4
      %s502 = scalar_lea.vmem %s10, %s501
      %s503 = ssub.s32 1, %s30
      %s504 = smul.u32 %s31, %s503
      %s505 = smul.u32 16, %s504
      %p506 = scmp.lt.s32.totalorder %s29, 0
      %s507 = scalar_select %p506, %s29, 0
      %s508 = smul.addr %s507, 2
      %s509 = scalar_lea.vmem %s11, %s508
      %p510 = scmp.lt.s32.totalorder %s29, 0
      %s511 = scalar_select %p510, %s29, 0
      %s512 = smul.addr %s511, 2
      %s513 = scalar_lea.vmem %s12, %s512
      %p515 = scmp.eq.s32.totalorder %s30, 0
      %p516 = scmp.eq.s32.totalorder %s31, 0
      %p517 = pnand %p515, %p516
      %p518 = pneg %p517
      // Predicated region
      $region65: #{topic_att_forward.7} parent=63 // pred_check
        _
      $region66: #{topic_att_forward.7} parent=63 // pred_check_branch
        %520 = sbr.rel (%p517) target = $region68
      $region67: #{topic_att_forward.7} parent=63 // pred_region
        %vm521 = vcmask 254976
        %522 = vst.msk [vmem:[#allocation2] sm:$0x3] %vm521, 0.0
        %vm523 = vcmask 7168
        %524 = vst.msk [vmem:[#allocation3] sm:$0xff] %vm523, -inf
        %525 = vst.msk [vmem:[#allocation4] sm:$0xff] %vm523, 0.0
      $region68: #{topic_att_forward.7} parent=63 // pred_fallthru
        _
      // Predicated region
      $region69: #{topic_att_forward.7} parent=63 // pred_check
        %p526 = pneg %p515
      $region70: #{topic_att_forward.7} parent=63 // pred_check_branch
        %528 = sbr.rel (%p526) target = $region72
      $region71: #{topic_att_forward.7} parent=63 // pred_region
        %v529 = vld [vmem:[#allocation2] sm:$0x3]
        %v530 = vld [vmem:[%s487] sm:$0x1]
        %v531 = vld [vmem:[%s493] sm:$0xf]
        %v532 = vld [vmem:[%s493 + $0x4] sm:$0xf]
        %v533 = vld [vmem:[%s493 + $0x8] sm:$0xf]
        %v534 = vld [vmem:[%s493 + $0xc] sm:$0xf]
        %v539 = vunpack.c.l.b16 %v531
        %v540 = vunpack.c.l.b16 %v532
        %v541 = vunpack.c.l.b16 %v533
        %v542 = vunpack.c.l.b16 %v534
        %v543 = vpack.c.b16 %v540, %v539
        %v544 = vpack.c.b16 %v542, %v541
        %547 = vmatpush.bf16.xpose.msra.mxu0 0
        %548 = vmatpush.bf16.xpose.msra.mxu0 0
        %549 = vmatpush.bf16.xpose.msra.mxu0 0
        %550 = vmatpush.bf16.xpose.msra.mxu0 0
        %551 = vmatpush.bf16.xpose.msra.mxu0 0
        %552 = vmatpush.bf16.xpose.msra.mxu0 0
        %553 = vmatpush.bf16.xpose.msra.mxu0 %v544
        %554 = vmatpush.bf16.xpose.msra.mxu0 %v543
        %555 = vmatmul.bf16.gmra.mxu0 %v530
        %v556 = vpop.f32.mrf.mxu0
        %v557 = vadd.f32 0.0, %v556
        %v558 = vpop.f32.mrf.mxu0
        %559 = vdwg.mxu0
        %v560 = vadd.f32 %v529, %v557
        %vm561 = vcmask 254976
        %562 = vst.msk [vmem:[#allocation2] sm:$0x3] %vm561, %v560
        %v563 = vld [vmem:[%s9] sm:$0xf]
        %v564 = vld [vmem:[%s502] sm:$0xf]
        %v565 = vld [vmem:[%s502 + $0x4] sm:$0xf]
        %v566 = vld [vmem:[%s502 + $0x8] sm:$0xf]
        %v567 = vld [vmem:[%s502 + $0xc] sm:$0xf]
        %v568 = vld [vmem:[%s502 + $0x10] sm:$0xf]
        %v569 = vld [vmem:[%s502 + $0x14] sm:$0xf]
        %v570 = vld [vmem:[%s502 + $0x18] sm:$0xf]
        %v571 = vld [vmem:[%s502 + $0x1c] sm:$0xf]
        %v572 = vld [vmem:[%s502 + $0x20] sm:$0xf]
        %v573 = vld [vmem:[%s502 + $0x24] sm:$0xf]
        %v574 = vld [vmem:[%s502 + $0x28] sm:$0xf]
        %v575 = vld [vmem:[%s502 + $0x2c] sm:$0xf]
        %v576 = vld [vmem:[%s502 + $0x30] sm:$0xf]
        %v577 = vld [vmem:[%s502 + $0x34] sm:$0xf]
        %v578 = vld [vmem:[%s502 + $0x38] sm:$0xf]
        %v579 = vld [vmem:[%s502 + $0x3c] sm:$0xf]
        %v596 = vunpack.c.l.b16 %v564
        %v597 = vunpack.c.l.b16 %v565
        %v598 = vunpack.c.l.b16 %v566
        %v599 = vunpack.c.l.b16 %v567
        %v600 = vunpack.c.l.b16 %v568
        %v601 = vunpack.c.l.b16 %v569
        %v602 = vunpack.c.l.b16 %v570
        %v603 = vunpack.c.l.b16 %v571
        %v604 = vunpack.c.l.b16 %v572
        %v605 = vunpack.c.l.b16 %v573
        %v606 = vunpack.c.l.b16 %v574
        %v607 = vunpack.c.l.b16 %v575
        %v608 = vunpack.c.l.b16 %v576
        %v609 = vunpack.c.l.b16 %v577
        %v610 = vunpack.c.l.b16 %v578
        %v611 = vunpack.c.l.b16 %v579
        %v612 = vpack.c.b16 %v597, %v596
        %v613 = vpack.c.b16 %v599, %v598
        %v614 = vpack.c.b16 %v601, %v600
        %v615 = vpack.c.b16 %v603, %v602
        %v616 = vpack.c.b16 %v605, %v604
        %v617 = vpack.c.b16 %v607, %v606
        %v618 = vpack.c.b16 %v609, %v608
        %v619 = vpack.c.b16 %v611, %v610
        %vm620 = vcmask 130048
        %v622 = vsel %vm620, %v563, 0
        %v625 = vsel %vm620, %v612, 0
        %v628 = vsel %vm620, %v613, 0
        %v631 = vsel %vm620, %v614, 0
        %v634 = vsel %vm620, %v615, 0
        %v637 = vsel %vm620, %v616, 0
        %v640 = vsel %vm620, %v617, 0
        %v643 = vsel %vm620, %v618, 0
        %v646 = vsel %vm620, %v619, 0
        %648 = vmatpush.bf16.xpose.msra.mxu0 %v646
        %649 = vmatpush.bf16.xpose.msra.mxu0 %v643
        %650 = vmatpush.bf16.xpose.msra.mxu0 %v640
        %651 = vmatpush.bf16.xpose.msra.mxu0 %v637
        %652 = vmatpush.bf16.xpose.msra.mxu0 %v634
        %653 = vmatpush.bf16.xpose.msra.mxu0 %v631
        %654 = vmatpush.bf16.xpose.msra.mxu0 %v628
        %655 = vmatpush.bf16.xpose.msra.mxu0 %v625
        %656 = vmatmul.bf16.gmra.mxu0 %v622
        %v657 = vpop.f32.mrf.mxu0
        %v658 = vadd.f32 0.0, %v657
        %v659 = vpop.f32.mrf.mxu0
        %660 = vdwg.mxu0
        %v661 = vlaneseq
        %v662 = vand.u32 %v661, 127
        %s663 = smul.u32 %s31, 128
        %v664 = vstv %s663
        %v665 = vadd.s32 %v662, %v664
        %vm666 = vcmp.lt.s32.totalorder %v665, 32
        %v667 = vsel %vm666, %v658, -1e+30
        %s668 = smul.u32 %s31, 8
        %s669 = scalar_lea.vmem [#allocation5], %s668
        %670 = vst [vmem:[%s669] sm:$0xff] %v667
        %v671 = vld [vmem:[#allocation3] sm:$0xff]
        %672 = vmax.xlane.f32.xlu0 %v667
        %v673 = vpop.xlane.xlu0 %672
        %v674 = vmax.f32 %v671, %v673
        %v675 = vld [vmem:[#allocation4] sm:$0xff]
        %v676 = vsub.f32 %v671, %v674
        %v677 = vmul.f32 %v676, 1.442695
        %v678 = vpow.pop %v677
        %v679 = vmul.f32 %v675, %v678
        %681 = vset.pattern.permute.xlu0 0
        %682 = vperm.xlu0 %681, %v674
        %v683 = vpop.permute.xlu0 %682
        %v685 = vsub.f32 %v667, %v683
        %v686 = vmul.f32 %v685, 1.442695
        %v687 = vpow.pop %v686
        %688 = vadd.xlane.f32.xlu0 %v687
        %v689 = vpop.xlane.xlu0 %688
        %v690 = vadd.f32 %v679, %v689
        %vm691 = vcmask 7168
        %692 = vst.msk [vmem:[#allocation4] sm:$0xff] %vm691, %v690
        %693 = vst.msk [vmem:[#allocation3] sm:$0xff] %vm691, %v674
      $region72: #{topic_att_forward.7} parent=63 // pred_fallthru
        _
      %p694 = scmp.eq.s32.totalorder %s30, 1
      %p695 = pnand %p694, %p516
      %p696 = pneg %p695
      // Predicated region
      $region73: #{topic_att_forward.7} parent=63 // pred_check
        _
      $region74: #{topic_att_forward.7} parent=63 // pred_check_branch
        %698 = sbr.rel (%p695) target = $region76
      $region75: #{topic_att_forward.7} parent=63 // pred_region
        %v699 = vld [vmem:[#allocation2] sm:$0x3]
        %v700 = vld [vmem:[%s2] sm:$0x1]
        %v702 = vperm.slane %v700, 0
        %v704 = vadd.f32 %v699, %v702
        %v705 = vtanh.pop %v704
        %v706 = vld [vmem:[%s3] sm:$0xff]
        %v707 = vld [vmem:[%s3 + $0x8] sm:$0xff]
        %v708 = vld [vmem:[%s4] sm:$0x1]
        %v710 = vperm.slane %v708, 0
        %vm712 = vcmask 261120
        %v714 = vsel %vm712, %v705, 0
        %v717 = vsel %vm712, %v706, 0
        %v720 = vsel %vm712, %v707, 0
        %722 = vmatpush.xpose.msra.mxu0 0.0
        %723 = vmatpush.xpose.msra.mxu0 0.0
        %724 = vmatpush.xpose.msra.mxu0 0.0
        %725 = vmatpush.xpose.msra.mxu0 0.0
        %726 = vmatpush.xpose.msra.mxu0 0.0
        %727 = vmatpush.xpose.msra.mxu0 0.0
        %728 = vmatpush.xpose.msra.mxu0 0.0
        %729 = vmatpush.xpose.msra.mxu0 0.0
        %730 = vmatpush.xpose.msra.mxu0 0.0
        %731 = vmatpush.xpose.msra.mxu0 0.0
        %732 = vmatpush.xpose.msra.mxu0 0.0
        %733 = vmatpush.xpose.msra.mxu0 0.0
        %734 = vmatpush.xpose.msra.mxu0 0.0
        %735 = vmatpush.xpose.msra.mxu0 0.0
        %736 = vmatpush.xpose.msra.mxu0 %v720
        %737 = vmatpush.xpose.msra.mxu0 %v717
        %738 = vmatmul.f32.gmra.mxu0 %v714
        %v739 = vpop.f32.mrf.mxu0
        %v740 = vadd.f32 %v710, %v739
        %741 = vdwg.mxu0
        %v742 = vtanh.pop %v740
        %v743 = vld [vmem:[%s5] sm:$0xff]
        %v744 = vld [vmem:[%s5 + $0x8] sm:$0xff]
        %v745 = vld [vmem:[%s6] sm:$0x1]
        %v747 = vperm.slane %v745, 0
        %vm749 = vcmask 130048
        %v751 = vsel %vm749, %v742, 0
        %v754 = vsel %vm749, %v743, 0
        %v757 = vsel %vm749, %v744, 0
        %759 = vmatpush.xpose.msra.mxu0 0.0
        %760 = vmatpush.xpose.msra.mxu0 0.0
        %761 = vmatpush.xpose.msra.mxu0 0.0
        %762 = vmatpush.xpose.msra.mxu0 0.0
        %763 = vmatpush.xpose.msra.mxu0 0.0
        %764 = vmatpush.xpose.msra.mxu0 0.0
        %765 = vmatpush.xpose.msra.mxu0 0.0
        %766 = vmatpush.xpose.msra.mxu0 0.0
        %767 = vmatpush.xpose.msra.mxu0 0.0
        %768 = vmatpush.xpose.msra.mxu0 0.0
        %769 = vmatpush.xpose.msra.mxu0 0.0
        %770 = vmatpush.xpose.msra.mxu0 0.0
        %771 = vmatpush.xpose.msra.mxu0 0.0
        %772 = vmatpush.xpose.msra.mxu0 0.0
        %773 = vmatpush.xpose.msra.mxu0 %v757
        %774 = vmatpush.xpose.msra.mxu0 %v754
        %775 = vmatmul.f32.gmra.mxu0 %v751
        %v776 = vpop.f32.mrf.mxu0
        %v777 = vadd.f32 %v747, %v776
        %778 = vdwg.mxu0
        %v779 = vld [vmem:[%s7] sm:$0xff]
        %v780 = vld [vmem:[%s8] sm:$0x1]
        %v782 = vperm.slane %v780, 0
        %vm784 = vcmask 64512
        %v786 = vsel %vm784, %v777, 0
        %v789 = vsel %vm784, %v779, 0
        %791 = vmatpush.xpose.msra.mxu0 0.0
        %792 = vmatpush.xpose.msra.mxu0 0.0
        %793 = vmatpush.xpose.msra.mxu0 0.0
        %794 = vmatpush.xpose.msra.mxu0 0.0
        %795 = vmatpush.xpose.msra.mxu0 0.0
        %796 = vmatpush.xpose.msra.mxu0 0.0
        %797 = vmatpush.xpose.msra.mxu0 0.0
        %798 = vmatpush.xpose.msra.mxu0 0.0
        %799 = vmatpush.xpose.msra.mxu0 0.0
        %800 = vmatpush.xpose.msra.mxu0 0.0
        %801 = vmatpush.xpose.msra.mxu0 0.0
        %802 = vmatpush.xpose.msra.mxu0 0.0
        %803 = vmatpush.xpose.msra.mxu0 0.0
        %804 = vmatpush.xpose.msra.mxu0 0.0
        %805 = vmatpush.xpose.msra.mxu0 0.0
        %806 = vmatpush.xpose.msra.mxu0 %v789
        %807 = vmatmul.f32.gmra.mxu0 %v786
        %v808 = vpop.f32.mrf.mxu0
        %v809 = vadd.f32 %v782, %v808
        %810 = vdwg.mxu0
        %vm811 = vcmask 58368
        %v812 = vsel %vm811, %v809, -inf
        %813 = vmax.xlane.f32.xlu0 %v812
        %v814 = vpop.xlane.xlu0 %813
        %v815 = vsub.f32 %v809, %v814
        %v816 = vmul.f32 %v815, 1.442695
        %v817 = vpow.pop %v816
        %v818 = vsel %vm811, %v817, 0.0
        %819 = vadd.xlane.f32.xlu0 %v818
        %v820 = vpop.xlane.xlu0 %819
        %v821 = vrcp.pop %v820
        %v822 = vmul.f32 %v820, %v821
        %v823 = vsub.f32 1.0, %v822
        %v824 = vmul.f32 %v821, %v823
        %v825 = vadd.f32 %v821, %v824
        %vm826 = vweird.f32 %v820
        %vm827 = vweird.f32 %v821
        %vm828 = vmor %vm826, %vm827
        %v829 = vsel %vm828, %v821, %v825
        %v830 = vand.u32 2147483647, %v820
        %vm831 = vcmp.eq.f32.partialorder %v830, 8.507059e+37
        %v832 = vand.u32 %v820, 2147483648
        %v833 = vor.u32 1.1754944e-38, %v832
        %v834 = vsel %vm831, %v833, %v829
        %v835 = vmul.f32 %v817, %v834
        %836 = vst.msk [vmem:[%s509] sm:$0x3] %vm811, %v835
        %v837 = vmul.f32 %v777, %v777
        %v838 = vsub.f32 1.0, %v837
        %839 = vrot.lane.b32.xlu0 %v777, 120
        %v840 = vpop.permute.xlu0 %839
        %v842 = vadd.f32 %v838, %v840
        %v843 = vmul.f32 %v777, 1.442695
        %v844 = vpow.pop %v843
        %846 = vrot.lane.b32.xlu0 %v844, 120
        %v847 = vpop.permute.xlu0 %846
        %v849 = vsub.f32 %v842, %v847
        %v850 = vsel %vm811, %v849, 0.0
        %851 = vadd.xlane.f32.xlu0 %v850
        %v852 = vpop.xlane.xlu0 %851
        %v853 = vmul.f32 %v852, -0.5
        %vm854 = vcmask 1024
        %855 = vst.msk [vmem:[%s513] sm:$0x3] %vm854, %v853
      $region76: #{topic_att_forward.7} parent=63 // pred_fallthru
        _
      // Predicated region
      $region77: #{topic_att_forward.7} parent=63 // pred_check
        %p856 = pneg %p694
      $region78: #{topic_att_forward.7} parent=63 // pred_check_branch
        %858 = sbr.rel (%p856) target = $region80
      $region79: #{topic_att_forward.7} parent=63 // pred_region
        %s859 = smul.u32 %s31, 8
        %s860 = scalar_lea.vmem [#allocation5], %s859
        %v861 = vld [vmem:[%s860] sm:$0xff]
        %v862 = vld [vmem:[#allocation3] sm:$0xff]
        %864 = vset.pattern.permute.xlu0 0
        %865 = vperm.xlu0 %864, %v862
        %v866 = vpop.permute.xlu0 %865
        %v868 = vsub.f32 %v861, %v866
        %v869 = vmul.f32 %v868, 1.442695
        %v870 = vpow.pop %v869
        %v871 = vld [vmem:[#allocation4] sm:$0xff]
        %873 = vset.pattern.permute.xlu0 0
        %874 = vperm.xlu0 %873, %v871
        %v875 = vpop.permute.xlu0 %874
        %v877 = vrcp.pop %v875
        %v878 = vmul.f32 %v875, %v877
        %v879 = vsub.f32 1.0, %v878
        %v880 = vmul.f32 %v877, %v879
        %v881 = vadd.f32 %v877, %v880
        %vm882 = vweird.f32 %v875
        %vm883 = vweird.f32 %v877
        %vm884 = vmor %vm882, %vm883
        %v885 = vsel %vm884, %v877, %v881
        %v886 = vand.u32 2147483647, %v875
        %vm887 = vcmp.eq.f32.partialorder %v886, 8.507059e+37
        %v888 = vand.u32 %v875, 2147483648
        %v889 = vor.u32 1.1754944e-38, %v888
        %v890 = vsel %vm887, %v889, %v885
        %v891 = vmul.f32 %v870, %v890
        %v892 = vld [vmem:[%s509] sm:$0x3]
        %v893 = vld [vmem:[%s487] sm:$0x1]
        %v894 = vunpack.c.l.bf16 %v893
        %v895 = vld [vmem:[%s513] sm:$0x3]
        %vm896 = vcmask 64512
        %v898 = vsel %vm896, %v892, 0
        %900 = vmatpush.msra.mxu0 0.0
        %901 = vmatpush.msra.mxu0 0.0
        %902 = vmatpush.msra.mxu0 0.0
        %903 = vmatpush.msra.mxu0 0.0
        %904 = vmatpush.msra.mxu0 0.0
        %905 = vmatpush.msra.mxu0 0.0
        %906 = vmatpush.msra.mxu0 0.0
        %907 = vmatpush.msra.mxu0 0.0
        %908 = vmatpush.msra.mxu0 0.0
        %909 = vmatpush.msra.mxu0 0.0
        %910 = vmatpush.msra.mxu0 0.0
        %911 = vmatpush.msra.mxu0 0.0
        %912 = vmatpush.msra.mxu0 0.0
        %913 = vmatpush.msra.mxu0 0.0
        %914 = vmatpush.msra.mxu0 0.0
        %915 = vmatpush.msra.mxu0 %v891
        %916 = vmatmul.f32.gmra.mxu0 %v898
        %v917 = vpop.f32.mrf.mxu0
        %v918 = vadd.f32 1e-10, %v917
        %919 = vdwg.mxu0
        %v920 = vlog2.pop %v918
        %v921 = vmul.f32 %v920, 0.6931472
        %v922 = vmul.f32 %v894, %v921
        %vm923 = vcmask 1041408
        %v924 = vsel %vm923, %v922, 0.0
        %925 = vadd.xlane.f32.xlu0 %v924
        %v926 = vpop.xlane.xlu0 %925
        %v927 = vsub.f32 0.0, %v926
        %v928 = vadd.f32 %v895, %v927
        %vm929 = vcmask 1024
        %930 = vst.msk [vmem:[%s513] sm:$0x3] %vm929, %v928
      $region80: #{topic_att_forward.7} parent=63 // pred_fallthru
        _
      %p931 = scmp.lt.s32.totalorder %s29, 0
      %s932 = scalar_select %p931, %s29, 0
      %s933 = smul.addr %s932, 2
      %s934 = scalar_lea.vmem %s11, %s933
      %p935 = scmp.lt.s32.totalorder %s29, 0
      %s936 = scalar_select %p935, %s29, 0
      %s937 = smul.addr %s936, 2
      %s938 = scalar_lea.vmem %s12, %s937
      // Predicated region
      $region81: #{topic_att_forward.7} parent=63 // pred_check
        %p939 = pneg %p317
      $region82: #{topic_att_forward.7} parent=63 // pred_check_branch
        %941 = sbr.rel (%p939) target = $region84
      $region83: #{topic_att_forward.7} parent=63 // pred_region
        _
      $region84: #{topic_att_forward.7} parent=63 // pred_fallthru
        _
      // Predicated region
      $region85: #{topic_att_forward.7} parent=63 // pred_check
        %p942 = pneg %p343
      $region86: #{topic_att_forward.7} parent=63 // pred_check_branch
        %944 = sbr.rel (%p942) target = $region88
      $region87: #{topic_att_forward.7} parent=63 // pred_region
        _
      $region88: #{topic_att_forward.7} parent=63 // pred_fallthru
        _
      // Predicated region
      $region89: #{topic_att_forward.7} parent=63 // pred_check
        %p945 = pneg %p317
      $region90: #{topic_att_forward.7} parent=63 // pred_check_branch
        %947 = sbr.rel (%p945) target = $region92
      $region91: #{topic_att_forward.7} parent=63 // pred_region
        %p948 = scmp.lt.s32.totalorder %s29, 0
        %s949 = scalar_select %p948, %s29, 0
        %s950 = smul.addr %s949, 2
        %s951 = scalar_lea.vmem %s11, %s950
      $region92: #{topic_att_forward.7} parent=63 // pred_fallthru
        _
      // Predicated region
      $region93: #{topic_att_forward.7} parent=63 // pred_check
        %p952 = pneg %p343
      $region94: #{topic_att_forward.7} parent=63 // pred_check_branch
        %954 = sbr.rel (%p952) target = $region96
      $region95: #{topic_att_forward.7} parent=63 // pred_region
        %p955 = scmp.lt.s32.totalorder %s29, 0
        %s956 = scalar_select %p955, %s29, 0
        %s957 = smul.addr %s956, 2
        %s958 = scalar_lea.vmem %s12, %s957
      $region96: #{topic_att_forward.7} parent=63 // pred_fallthru
        _
    $region64: #{topic_att_forward.7} parent=5 // pred_fallthru
      _
    %p959 = scmp.le.s32.totalorder 2, %s19
    // Predicated region
    $region97: #{topic_att_forward.7} parent=5 // pred_check
      %p960 = pneg %p959
    $region98: #{topic_att_forward.7} parent=5 // pred_check_branch
      %962 = sbr.rel (%p960) target = $region100
    $region99: #{topic_att_forward.7} parent=5 // pred_region
      %s963 = ssub.s32 %s19, 2
    $region100: #{topic_att_forward.7} parent=5 // pred_fallthru
      _
  $region6: #{topic_att_forward.7} parent=0 // loop_footer
    %s23 = sadd.s32 1, %s19
  $region7: #{topic_att_forward.7} parent=0 // loop_footer_branch
    %18 = sbr.rel target = $region3
  $region8: #{topic_att_forward.7} parent=0 // loop_exit
    _

// kernel: topic_att_forward.6
$region0: #{topic_att_forward.6}
  #allocation0 [shape = 'u32[]', space=smem, size = 0x4, offset = 0x4, fixed_abs, tag = 'smem constant byte address 0x4 - core index']
  #allocation1 [shape = 'u32[72,128]{1,0:T(1,128)}', space=vmem, size = 0x9000, scoped, tag = 'internal scratch']
  #allocation2 [shape = 'f32[2,16]{1,0:T(2,128)}', space=vmem, size = 0x400, scoped, tag = 'scratch operand']
  #allocation3 [shape = 'f32[2,16]{1,0:T(2,128)}', space=vmem, size = 0x400, scoped, tag = 'scratch operand']
  #allocation4 [shape = 'f32[2,16]{1,0:T(2,128)}', space=vmem, size = 0x400, scoped, tag = 'scratch operand']
  #allocation5 [shape = 'f32[2,16]{1,0:T(2,128)}', space=vmem, size = 0x400, scoped, tag = 'scratch operand']
  %s0 = inlined_call_operand.vmem [shape: bf16[8,2,64], index: 0, kind: input, shape index: {}]
  %s1 = inlined_call_operand.vmem [shape: bf16[8,2,64], index: 1, kind: input, shape index: {}]
  %s2 = inlined_call_operand.vmem [shape: bf16[64,16], index: 2, kind: input, shape index: {}]
  %s3 = inlined_call_operand.vmem [shape: bf16[64,16], index: 3, kind: input, shape index: {}]
  %s4 = inlined_call_operand.vmem [shape: f32[8,2,16], index: 4, kind: output, shape index: {0}]
  %s5 = inlined_call_operand.vmem [shape: f32[8,2,16], index: 5, kind: output, shape index: {1}]
  %6 = xla_tuple %s4, %s5
  %s7 = sld [smem:[#allocation0]]
  $region38: #{topic_att_forward.6} parent=0
    _
  %s9 = ssub.s32 1, %s7
  %s10 = scalar_select 0, %s9, %s7
  // Predicated region
  $region2: #{topic_att_forward.6} parent=0 // pred_check
    _
  $region3: #{topic_att_forward.6} parent=0 // pred_check_branch
    %12 = sbr.rel (0) target = $region5
  $region4: #{topic_att_forward.6} parent=0 // pred_region
    _
  $region5: #{topic_att_forward.6} parent=0 // pred_fallthru
    _
  // Predicated region
  $region6: #{topic_att_forward.6} parent=0 // pred_check
    _
  $region7: #{topic_att_forward.6} parent=0 // pred_check_branch
    %14 = sbr.rel (0) target = $region9
  $region8: #{topic_att_forward.6} parent=0 // pred_region
    %s15 = ssub.s32 0, 0
    %s16 = smul.u32 8, %s15
    %p17 = scmp.lt.s32.totalorder %s16, 7
    %s18 = scalar_select %p17, %s16, 7
    %s19 = scalar_lea.vmem %s1, %s18
    %s20 = ssub.s32 0, 0
    %s21 = smul.u32 8, %s20
  $region9: #{topic_att_forward.6} parent=0 // pred_fallthru
    _
  // Predicated region
  $region10: #{topic_att_forward.6} parent=0 // pred_check
    _
  $region11: #{topic_att_forward.6} parent=0 // pred_check_branch
    %23 = sbr.rel (0) target = $region13
  $region12: #{topic_att_forward.6} parent=0 // pred_region
    _
  $region13: #{topic_att_forward.6} parent=0 // pred_fallthru
    _
  // Predicated region
  $region14: #{topic_att_forward.6} parent=0 // pred_check
    _
  $region15: #{topic_att_forward.6} parent=0 // pred_check_branch
    %25 = sbr.rel (0) target = $region17
  $region16: #{topic_att_forward.6} parent=0 // pred_region
    _
  $region17: #{topic_att_forward.6} parent=0 // pred_fallthru
    _
  %s26 = ssub.s32 0, 0
  %s27 = smul.u32 8, %s26
  %p28 = scmp.lt.s32.totalorder %s27, 7
  %s29 = scalar_select %p28, %s27, 7
  %s30 = scalar_lea.vmem %s1, %s29
  %s31 = ssub.s32 0, 0
  %s32 = smul.u32 8, %s31
  %p33 = scmp.lt.s32.totalorder %s32, 7
  %s34 = scalar_select %p33, %s32, 7
  %s35 = smul.addr %s34, 2
  %s36 = scalar_lea.vmem %s5, %s35
  %s37 = ssub.s32 0, 0
  %s38 = smul.u32 8, %s37
  %p39 = scmp.lt.s32.totalorder %s38, 7
  %s40 = scalar_select %p39, %s38, 7
  %s41 = scalar_lea.vmem %s1, %s40
  %s42 = ssub.s32 0, 0
  %s43 = smul.u32 8, %s42
  %s44 = ssub.s32 0, 0
  %s45 = smul.u32 8, %s44
  %p46 = scmp.lt.s32.totalorder %s45, 7
  %s47 = scalar_select %p46, %s45, 7
  %s48 = smul.addr %s47, 2
  %s49 = scalar_lea.vmem %s5, %s48
  %s50 = ssub.s32 0, 0
  %s51 = smul.u32 8, %s50
  %p53 = scmp.eq.s32.totalorder 0, 0
  // Predicated region
  $region18: #{topic_att_forward.6} parent=0 // pred_check
    %p54 = pneg %p53
  $region19: #{topic_att_forward.6} parent=0 // pred_check_branch
    %56 = sbr.rel (%p54) target = $region21
  $region20: #{topic_att_forward.6} parent=0 // pred_region
    %vm57 = vcmask 123904
    %58 = vst.msk [vmem:[#allocation2] sm:$0x3] %vm57, 0.0
    %59 = vst.msk [vmem:[#allocation3] sm:$0x3] %vm57, 0.0
    %60 = vst.msk [vmem:[#allocation4] sm:$0x3] %vm57, 0.0
    %61 = vst.msk [vmem:[#allocation5] sm:$0x3] %vm57, 0.0
  $region21: #{topic_att_forward.6} parent=0 // pred_fallthru
    _
  %v62 = vld [vmem:[%s2] sm:$0xf]
  %v63 = vld [vmem:[%s2 + $0x4] sm:$0xf]
  %v64 = vld [vmem:[%s2 + $0x8] sm:$0xf]
  %v65 = vld [vmem:[%s2 + $0xc] sm:$0xf]
  %v66 = vld [vmem:[%s2 + $0x10] sm:$0xf]
  %v67 = vld [vmem:[%s2 + $0x14] sm:$0xf]
  %v68 = vld [vmem:[%s2 + $0x18] sm:$0xf]
  %v69 = vld [vmem:[%s2 + $0x1c] sm:$0xf]
  %v70 = vld [vmem:[%s3] sm:$0xf]
  %v71 = vld [vmem:[%s3 + $0x4] sm:$0xf]
  %v72 = vld [vmem:[%s3 + $0x8] sm:$0xf]
  %v73 = vld [vmem:[%s3 + $0xc] sm:$0xf]
  %v74 = vld [vmem:[%s3 + $0x10] sm:$0xf]
  %v75 = vld [vmem:[%s3 + $0x14] sm:$0xf]
  %v76 = vld [vmem:[%s3 + $0x18] sm:$0xf]
  %v77 = vld [vmem:[%s3 + $0x1c] sm:$0xf]
  %v78 = vld [vmem:[#allocation2] sm:$0x3]
  %v79 = vld [vmem:[#allocation3] sm:$0x3]
  %v80 = vld [vmem:[#allocation4] sm:$0x3]
  %v81 = vld [vmem:[#allocation5] sm:$0x3]
  %v82 = vld [vmem:[%s0] sm:$0x1]
  %v83 = vunpack.c.l.bf16 %v82
  %v84 = vpack.c.bf16 %v78, %v78
  %v93 = vunpack.c.l.b16 %v62
  %v94 = vunpack.c.l.b16 %v63
  %v95 = vunpack.c.l.b16 %v64
  %v96 = vunpack.c.l.b16 %v65
  %v97 = vunpack.c.l.b16 %v66
  %v98 = vunpack.c.l.b16 %v67
  %v99 = vunpack.c.l.b16 %v68
  %v100 = vunpack.c.l.b16 %v69
  %v101 = vpack.c.b16 %v94, %v93
  %v102 = vpack.c.b16 %v96, %v95
  %v103 = vpack.c.b16 %v98, %v97
  %v104 = vpack.c.b16 %v100, %v99
  %vm105 = vcmask 130048
  %v107 = vsel %vm105, %v84, 0
  %v110 = vsel %vm105, %v101, 0
  %v113 = vsel %vm105, %v102, 0
  %v116 = vsel %vm105, %v103, 0
  %v119 = vsel %vm105, %v104, 0
  %121 = vmatpush.bf16.xpose.msra.mxu0 0
  %122 = vmatpush.bf16.xpose.msra.mxu0 0
  %123 = vmatpush.bf16.xpose.msra.mxu0 0
  %124 = vmatpush.bf16.xpose.msra.mxu0 0
  %125 = vmatpush.bf16.xpose.msra.mxu0 %v119
  %126 = vmatpush.bf16.xpose.msra.mxu0 %v116
  %127 = vmatpush.bf16.xpose.msra.mxu0 %v113
  %128 = vmatpush.bf16.xpose.msra.mxu0 %v110
  %129 = vmatmul.bf16.gmra.mxu0 %v107
  %v130 = vpop.f32.mrf.mxu0
  %v131 = vadd.f32 0.0, %v130
  %v132 = vpop.f32.mrf.mxu0
  %133 = vdwg.mxu0
  %v134 = vadd.f32 %v83, %v131
  %v135 = vmul.f32 %v134, 0.5
  %v136 = vtanh.pop %v135
  %v137 = vadd.f32 %v136, 1.0
  %v138 = vmul.f32 %v137, 0.5
  %v139 = vtanh.pop %v134
  %141 = vrot.lane.b32.xlu0 %v79, 16
  %v142 = vpop.permute.xlu0 %141
  %v144 = vmul.f32 %v138, %v142
  %146 = vrot.lane.b32.xlu0 %v139, 96
  %v147 = vpop.permute.xlu0 %146
  %v149 = vmul.f32 %v138, %v147
  %151 = vrot.lane.b32.xlu0 %v149, 16
  %v152 = vpop.permute.xlu0 %151
  %v154 = vadd.f32 %v144, %v152
  %v155 = vtanh.pop %v154
  %157 = vrot.lane.b32.xlu0 %v155, 32
  %v158 = vpop.permute.xlu0 %157
  %v160 = vmul.f32 %v138, %v158
  %162 = vst [vmem:[#allocation1] ss:$4 sm:$0xff] %v160
  %v163 = vld.sshfl [vmem:[#allocation1] sm:$0xff pattern:$0x73625140]
  %164 = vrot.lane.b32.xlu0 %v163, 80
  %v165 = vpop.permute.xlu0 %164
  %vm167 = vcmask 123904
  %168 = vst.msk [vmem:[%s4] sm:$0x3] %vm167, %v165
  %s169 = scalar_lea.vmem %s41, 7
  %v170 = vld [vmem:[%s169] sm:$0x1]
  %v171 = vunpack.c.l.bf16 %v170
  %v172 = vpack.c.bf16 %v80, %v80
  %v181 = vunpack.c.l.b16 %v70
  %v182 = vunpack.c.l.b16 %v71
  %v183 = vunpack.c.l.b16 %v72
  %v184 = vunpack.c.l.b16 %v73
  %v185 = vunpack.c.l.b16 %v74
  %v186 = vunpack.c.l.b16 %v75
  %v187 = vunpack.c.l.b16 %v76
  %v188 = vunpack.c.l.b16 %v77
  %v189 = vpack.c.b16 %v182, %v181
  %v190 = vpack.c.b16 %v184, %v183
  %v191 = vpack.c.b16 %v186, %v185
  %v192 = vpack.c.b16 %v188, %v187
  %v194 = vsel %vm105, %v172, 0
  %v197 = vsel %vm105, %v189, 0
  %v200 = vsel %vm105, %v190, 0
  %v203 = vsel %vm105, %v191, 0
  %v206 = vsel %vm105, %v192, 0
  %208 = vmatpush.bf16.xpose.msra.mxu0 0
  %209 = vmatpush.bf16.xpose.msra.mxu0 0
  %210 = vmatpush.bf16.xpose.msra.mxu0 0
  %211 = vmatpush.bf16.xpose.msra.mxu0 0
  %212 = vmatpush.bf16.xpose.msra.mxu0 %v206
  %213 = vmatpush.bf16.xpose.msra.mxu0 %v203
  %214 = vmatpush.bf16.xpose.msra.mxu0 %v200
  %215 = vmatpush.bf16.xpose.msra.mxu0 %v197
  %216 = vmatmul.bf16.gmra.mxu0 %v194
  %v217 = vpop.f32.mrf.mxu0
  %v218 = vadd.f32 0.0, %v217
  %v219 = vpop.f32.mrf.mxu0
  %220 = vdwg.mxu0
  %v221 = vadd.f32 %v171, %v218
  %v222 = vmul.f32 %v221, 0.5
  %v223 = vtanh.pop %v222
  %v224 = vadd.f32 %v223, 1.0
  %v225 = vmul.f32 %v224, 0.5
  %v226 = vtanh.pop %v221
  %228 = vrot.lane.b32.xlu0 %v81, 16
  %v229 = vpop.permute.xlu0 %228
  %v231 = vmul.f32 %v225, %v229
  %233 = vrot.lane.b32.xlu0 %v226, 96
  %v234 = vpop.permute.xlu0 %233
  %v236 = vmul.f32 %v225, %v234
  %238 = vrot.lane.b32.xlu0 %v236, 16
  %v239 = vpop.permute.xlu0 %238
  %v241 = vadd.f32 %v231, %v239
  %v242 = vtanh.pop %v241
  %244 = vrot.lane.b32.xlu0 %v242, 32
  %v245 = vpop.permute.xlu0 %244
  %v247 = vmul.f32 %v225, %v245
  %249 = vst [vmem:[#allocation1] ss:$4 sm:$0xff] %v247
  %v250 = vld.sshfl [vmem:[#allocation1] sm:$0xff pattern:$0x73625140]
  %251 = vrot.lane.b32.xlu0 %v250, 80
  %v252 = vpop.permute.xlu0 %251
  %s254 = scalar_lea.vmem %s49, 14
  %255 = vst.msk [vmem:[%s254] sm:$0x3] %vm167, %v252
  %s256 = scalar_lea.vmem %s0, 1
  %v257 = vld [vmem:[%s256] sm:$0x1]
  %v258 = vunpack.c.l.bf16 %v257
  %v259 = vpack.c.bf16 %v160, %v160
  %261 = vrot.lane.b32.xlu0 %v259, 80
  %v262 = vpop.permute.xlu0 %261
  %v264 = vsel %vm105, %v262, 0
  %266 = vmatpush.bf16.xpose.msra.mxu0 0
  %267 = vmatpush.bf16.xpose.msra.mxu0 0
  %268 = vmatpush.bf16.xpose.msra.mxu0 0
  %269 = vmatpush.bf16.xpose.msra.mxu0 0
  %270 = vmatpush.bf16.xpose.msra.mxu0 %v119
  %271 = vmatpush.bf16.xpose.msra.mxu0 %v116
  %272 = vmatpush.bf16.xpose.msra.mxu0 %v113
  %273 = vmatpush.bf16.xpose.msra.mxu0 %v110
  %274 = vmatmul.bf16.gmra.mxu0 %v264
  %v275 = vpop.f32.mrf.mxu0
  %v276 = vadd.f32 0.0, %v275
  %v277 = vpop.f32.mrf.mxu0
  %278 = vdwg.mxu0
  %v279 = vadd.f32 %v258, %v276
  %v280 = vmul.f32 %v279, 0.5
  %v281 = vtanh.pop %v280
  %v282 = vadd.f32 %v281, 1.0
  %v283 = vmul.f32 %v282, 0.5
  %v284 = vtanh.pop %v279
  %v285 = vmul.f32 %v283, %v154
  %287 = vrot.lane.b32.xlu0 %v284, 96
  %v288 = vpop.permute.xlu0 %287
  %v290 = vmul.f32 %v283, %v288
  %292 = vrot.lane.b32.xlu0 %v290, 16
  %v293 = vpop.permute.xlu0 %292
  %v295 = vadd.f32 %v285, %v293
  %v296 = vtanh.pop %v295
  %298 = vrot.lane.b32.xlu0 %v296, 32
  %v299 = vpop.permute.xlu0 %298
  %v301 = vmul.f32 %v283, %v299
  %303 = vst [vmem:[#allocation1] ss:$4 sm:$0xff] %v301
  %v304 = vld.sshfl [vmem:[#allocation1] sm:$0xff pattern:$0x73625140]
  %305 = vrot.lane.b32.xlu0 %v304, 80
  %v306 = vpop.permute.xlu0 %305
  %s308 = scalar_lea.vmem %s4, 2
  %309 = vst.msk [vmem:[%s308] sm:$0x3] %vm167, %v306
  %s310 = scalar_lea.vmem %s41, 6
  %v311 = vld [vmem:[%s310] sm:$0x1]
  %v312 = vunpack.c.l.bf16 %v311
  %v313 = vpack.c.bf16 %v247, %v247
  %315 = vrot.lane.b32.xlu0 %v313, 80
  %v316 = vpop.permute.xlu0 %315
  %v318 = vsel %vm105, %v316, 0
  %320 = vmatpush.bf16.xpose.msra.mxu0 0
  %321 = vmatpush.bf16.xpose.msra.mxu0 0
  %322 = vmatpush.bf16.xpose.msra.mxu0 0
  %323 = vmatpush.bf16.xpose.msra.mxu0 0
  %324 = vmatpush.bf16.xpose.msra.mxu0 %v206
  %325 = vmatpush.bf16.xpose.msra.mxu0 %v203
  %326 = vmatpush.bf16.xpose.msra.mxu0 %v200
  %327 = vmatpush.bf16.xpose.msra.mxu0 %v197
  %328 = vmatmul.bf16.gmra.mxu0 %v318
  %v329 = vpop.f32.mrf.mxu0
  %v330 = vadd.f32 0.0, %v329
  %v331 = vpop.f32.mrf.mxu0
  %332 = vdwg.mxu0
  %v333 = vadd.f32 %v312, %v330
  %v334 = vmul.f32 %v333, 0.5
  %v335 = vtanh.pop %v334
  %v336 = vadd.f32 %v335, 1.0
  %v337 = vmul.f32 %v336, 0.5
  %v338 = vtanh.pop %v333
  %v339 = vmul.f32 %v337, %v241
  %341 = vrot.lane.b32.xlu0 %v338, 96
  %v342 = vpop.permute.xlu0 %341
  %v344 = vmul.f32 %v337, %v342
  %346 = vrot.lane.b32.xlu0 %v344, 16
  %v347 = vpop.permute.xlu0 %346
  %v349 = vadd.f32 %v339, %v347
  %v350 = vtanh.pop %v349
  %352 = vrot.lane.b32.xlu0 %v350, 32
  %v353 = vpop.permute.xlu0 %352
  %v355 = vmul.f32 %v337, %v353
  %357 = vst [vmem:[#allocation1] ss:$4 sm:$0xff] %v355
  %v358 = vld.sshfl [vmem:[#allocation1] sm:$0xff pattern:$0x73625140]
  %359 = vrot.lane.b32.xlu0 %v358, 80
  %v360 = vpop.permute.xlu0 %359
  %s362 = scalar_lea.vmem %s49, 12
  %363 = vst.msk [vmem:[%s362] sm:$0x3] %vm167, %v360
  %s364 = scalar_lea.vmem %s0, 2
  %v365 = vld [vmem:[%s364] sm:$0x1]
  %v366 = vunpack.c.l.bf16 %v365
  %v367 = vpack.c.bf16 %v301, %v301
  %369 = vrot.lane.b32.xlu0 %v367, 80
  %v370 = vpop.permute.xlu0 %369
  %v372 = vsel %vm105, %v370, 0
  %374 = vmatpush.bf16.xpose.msra.mxu0 0
  %375 = vmatpush.bf16.xpose.msra.mxu0 0
  %376 = vmatpush.bf16.xpose.msra.mxu0 0
  %377 = vmatpush.bf16.xpose.msra.mxu0 0
  %378 = vmatpush.bf16.xpose.msra.mxu0 %v119
  %379 = vmatpush.bf16.xpose.msra.mxu0 %v116
  %380 = vmatpush.bf16.xpose.msra.mxu0 %v113
  %381 = vmatpush.bf16.xpose.msra.mxu0 %v110
  %382 = vmatmul.bf16.gmra.mxu0 %v372
  %v383 = vpop.f32.mrf.mxu0
  %v384 = vadd.f32 0.0, %v383
  %v385 = vpop.f32.mrf.mxu0
  %386 = vdwg.mxu0
  %v387 = vadd.f32 %v366, %v384
  %v388 = vmul.f32 %v387, 0.5
  %v389 = vtanh.pop %v388
  %v390 = vadd.f32 %v389, 1.0
  %v391 = vmul.f32 %v390, 0.5
  %v392 = vtanh.pop %v387
  %v393 = vmul.f32 %v391, %v295
  %395 = vrot.lane.b32.xlu0 %v392, 96
  %v396 = vpop.permute.xlu0 %395
  %v398 = vmul.f32 %v391, %v396
  %400 = vrot.lane.b32.xlu0 %v398, 16
  %v401 = vpop.permute.xlu0 %400
  %v403 = vadd.f32 %v393, %v401
  %v404 = vtanh.pop %v403
  %406 = vrot.lane.b32.xlu0 %v404, 32
  %v407 = vpop.permute.xlu0 %406
  %v409 = vmul.f32 %v391, %v407
  %411 = vst [vmem:[#allocation1] ss:$4 sm:$0xff] %v409
  %v412 = vld.sshfl [vmem:[#allocation1] sm:$0xff pattern:$0x73625140]
  %413 = vrot.lane.b32.xlu0 %v412, 80
  %v414 = vpop.permute.xlu0 %413
  %s416 = scalar_lea.vmem %s4, 4
  %417 = vst.msk [vmem:[%s416] sm:$0x3] %vm167, %v414
  %s418 = scalar_lea.vmem %s41, 5
  %v419 = vld [vmem:[%s418] sm:$0x1]
  %v420 = vunpack.c.l.bf16 %v419
  %v421 = vpack.c.bf16 %v355, %v355
  %423 = vrot.lane.b32.xlu0 %v421, 80
  %v424 = vpop.permute.xlu0 %423
  %v426 = vsel %vm105, %v424, 0
  %428 = vmatpush.bf16.xpose.msra.mxu0 0
  %429 = vmatpush.bf16.xpose.msra.mxu0 0
  %430 = vmatpush.bf16.xpose.msra.mxu0 0
  %431 = vmatpush.bf16.xpose.msra.mxu0 0
  %432 = vmatpush.bf16.xpose.msra.mxu0 %v206
  %433 = vmatpush.bf16.xpose.msra.mxu0 %v203
  %434 = vmatpush.bf16.xpose.msra.mxu0 %v200
  %435 = vmatpush.bf16.xpose.msra.mxu0 %v197
  %436 = vmatmul.bf16.gmra.mxu0 %v426
  %v437 = vpop.f32.mrf.mxu0
  %v438 = vadd.f32 0.0, %v437
  %v439 = vpop.f32.mrf.mxu0
  %440 = vdwg.mxu0
  %v441 = vadd.f32 %v420, %v438
  %v442 = vmul.f32 %v441, 0.5
  %v443 = vtanh.pop %v442
  %v444 = vadd.f32 %v443, 1.0
  %v445 = vmul.f32 %v444, 0.5
  %v446 = vtanh.pop %v441
  %v447 = vmul.f32 %v445, %v349
  %449 = vrot.lane.b32.xlu0 %v446, 96
  %v450 = vpop.permute.xlu0 %449
  %v452 = vmul.f32 %v445, %v450
  %454 = vrot.lane.b32.xlu0 %v452, 16
  %v455 = vpop.permute.xlu0 %454
  %v457 = vadd.f32 %v447, %v455
  %v458 = vtanh.pop %v457
  %460 = vrot.lane.b32.xlu0 %v458, 32
  %v461 = vpop.permute.xlu0 %460
  %v463 = vmul.f32 %v445, %v461
  %465 = vst [vmem:[#allocation1] ss:$4 sm:$0xff] %v463
  %v466 = vld.sshfl [vmem:[#allocation1] sm:$0xff pattern:$0x73625140]
  %467 = vrot.lane.b32.xlu0 %v466, 80
  %v468 = vpop.permute.xlu0 %467
  %s470 = scalar_lea.vmem %s49, 10
  %471 = vst.msk [vmem:[%s470] sm:$0x3] %vm167, %v468
  %s472 = scalar_lea.vmem %s0, 3
  %v473 = vld [vmem:[%s472] sm:$0x1]
  %v474 = vunpack.c.l.bf16 %v473
  %v475 = vpack.c.bf16 %v409, %v409
  %477 = vrot.lane.b32.xlu0 %v475, 80
  %v478 = vpop.permute.xlu0 %477
  %v480 = vsel %vm105, %v478, 0
  %482 = vmatpush.bf16.xpose.msra.mxu0 0
  %483 = vmatpush.bf16.xpose.msra.mxu0 0
  %484 = vmatpush.bf16.xpose.msra.mxu0 0
  %485 = vmatpush.bf16.xpose.msra.mxu0 0
  %486 = vmatpush.bf16.xpose.msra.mxu0 %v119
  %487 = vmatpush.bf16.xpose.msra.mxu0 %v116
  %488 = vmatpush.bf16.xpose.msra.mxu0 %v113
  %489 = vmatpush.bf16.xpose.msra.mxu0 %v110
  %490 = vmatmul.bf16.gmra.mxu0 %v480
  %v491 = vpop.f32.mrf.mxu0
  %v492 = vadd.f32 0.0, %v491
  %v493 = vpop.f32.mrf.mxu0
  %494 = vdwg.mxu0
  %v495 = vadd.f32 %v474, %v492
  %v496 = vmul.f32 %v495, 0.5
  %v497 = vtanh.pop %v496
  %v498 = vadd.f32 %v497, 1.0
  %v499 = vmul.f32 %v498, 0.5
  %v500 = vtanh.pop %v495
  %v501 = vmul.f32 %v499, %v403
  %503 = vrot.lane.b32.xlu0 %v500, 96
  %v504 = vpop.permute.xlu0 %503
  %v506 = vmul.f32 %v499, %v504
  %508 = vrot.lane.b32.xlu0 %v506, 16
  %v509 = vpop.permute.xlu0 %508
  %v511 = vadd.f32 %v501, %v509
  %v512 = vtanh.pop %v511
  %514 = vrot.lane.b32.xlu0 %v512, 32
  %v515 = vpop.permute.xlu0 %514
  %v517 = vmul.f32 %v499, %v515
  %519 = vst [vmem:[#allocation1] ss:$4 sm:$0xff] %v517
  %v520 = vld.sshfl [vmem:[#allocation1] sm:$0xff pattern:$0x73625140]
  %521 = vrot.lane.b32.xlu0 %v520, 80
  %v522 = vpop.permute.xlu0 %521
  %s524 = scalar_lea.vmem %s4, 6
  %525 = vst.msk [vmem:[%s524] sm:$0x3] %vm167, %v522
  %s526 = scalar_lea.vmem %s41, 4
  %v527 = vld [vmem:[%s526] sm:$0x1]
  %v528 = vunpack.c.l.bf16 %v527
  %v529 = vpack.c.bf16 %v463, %v463
  %531 = vrot.lane.b32.xlu0 %v529, 80
  %v532 = vpop.permute.xlu0 %531
  %v534 = vsel %vm105, %v532, 0
  %536 = vmatpush.bf16.xpose.msra.mxu0 0
  %537 = vmatpush.bf16.xpose.msra.mxu0 0
  %538 = vmatpush.bf16.xpose.msra.mxu0 0
  %539 = vmatpush.bf16.xpose.msra.mxu0 0
  %540 = vmatpush.bf16.xpose.msra.mxu0 %v206
  %541 = vmatpush.bf16.xpose.msra.mxu0 %v203
  %542 = vmatpush.bf16.xpose.msra.mxu0 %v200
  %543 = vmatpush.bf16.xpose.msra.mxu0 %v197
  %544 = vmatmul.bf16.gmra.mxu0 %v534
  %v545 = vpop.f32.mrf.mxu0
  %v546 = vadd.f32 0.0, %v545
  %v547 = vpop.f32.mrf.mxu0
  %548 = vdwg.mxu0
  %v549 = vadd.f32 %v528, %v546
  %v550 = vmul.f32 %v549, 0.5
  %v551 = vtanh.pop %v550
  %v552 = vadd.f32 %v551, 1.0
  %v553 = vmul.f32 %v552, 0.5
  %v554 = vtanh.pop %v549
  %v555 = vmul.f32 %v553, %v457
  %557 = vrot.lane.b32.xlu0 %v554, 96
  %v558 = vpop.permute.xlu0 %557
  %v560 = vmul.f32 %v553, %v558
  %562 = vrot.lane.b32.xlu0 %v560, 16
  %v563 = vpop.permute.xlu0 %562
  %v565 = vadd.f32 %v555, %v563
  %v566 = vtanh.pop %v565
  %568 = vrot.lane.b32.xlu0 %v566, 32
  %v569 = vpop.permute.xlu0 %568
  %v571 = vmul.f32 %v553, %v569
  %573 = vst [vmem:[#allocation1] ss:$4 sm:$0xff] %v571
  %v574 = vld.sshfl [vmem:[#allocation1] sm:$0xff pattern:$0x73625140]
  %575 = vrot.lane.b32.xlu0 %v574, 80
  %v576 = vpop.permute.xlu0 %575
  %s578 = scalar_lea.vmem %s49, 8
  %579 = vst.msk [vmem:[%s578] sm:$0x3] %vm167, %v576
  %s580 = scalar_lea.vmem %s0, 4
  %v581 = vld [vmem:[%s580] sm:$0x1]
  %v582 = vunpack.c.l.bf16 %v581
  %v583 = vpack.c.bf16 %v517, %v517
  %585 = vrot.lane.b32.xlu0 %v583, 80
  %v586 = vpop.permute.xlu0 %585
  %v588 = vsel %vm105, %v586, 0
  %590 = vmatpush.bf16.xpose.msra.mxu0 0
  %591 = vmatpush.bf16.xpose.msra.mxu0 0
  %592 = vmatpush.bf16.xpose.msra.mxu0 0
  %593 = vmatpush.bf16.xpose.msra.mxu0 0
  %594 = vmatpush.bf16.xpose.msra.mxu0 %v119
  %595 = vmatpush.bf16.xpose.msra.mxu0 %v116
  %596 = vmatpush.bf16.xpose.msra.mxu0 %v113
  %597 = vmatpush.bf16.xpose.msra.mxu0 %v110
  %598 = vmatmul.bf16.gmra.mxu0 %v588
  %v599 = vpop.f32.mrf.mxu0
  %v600 = vadd.f32 0.0, %v599
  %v601 = vpop.f32.mrf.mxu0
  %602 = vdwg.mxu0
  %v603 = vadd.f32 %v582, %v600
  %v604 = vmul.f32 %v603, 0.5
  %v605 = vtanh.pop %v604
  %v606 = vadd.f32 %v605, 1.0
  %v607 = vmul.f32 %v606, 0.5
  %v608 = vtanh.pop %v603
  %v609 = vmul.f32 %v607, %v511
  %611 = vrot.lane.b32.xlu0 %v608, 96
  %v612 = vpop.permute.xlu0 %611
  %v614 = vmul.f32 %v607, %v612
  %616 = vrot.lane.b32.xlu0 %v614, 16
  %v617 = vpop.permute.xlu0 %616
  %v619 = vadd.f32 %v609, %v617
  %v620 = vtanh.pop %v619
  %622 = vrot.lane.b32.xlu0 %v620, 32
  %v623 = vpop.permute.xlu0 %622
  %v625 = vmul.f32 %v607, %v623
  %627 = vst [vmem:[#allocation1] ss:$4 sm:$0xff] %v625
  %v628 = vld.sshfl [vmem:[#allocation1] sm:$0xff pattern:$0x73625140]
  %629 = vrot.lane.b32.xlu0 %v628, 80
  %v630 = vpop.permute.xlu0 %629
  %s632 = scalar_lea.vmem %s4, 8
  %633 = vst.msk [vmem:[%s632] sm:$0x3] %vm167, %v630
  %s634 = scalar_lea.vmem %s41, 3
  %v635 = vld [vmem:[%s634] sm:$0x1]
  %v636 = vunpack.c.l.bf16 %v635
  %v637 = vpack.c.bf16 %v571, %v571
  %639 = vrot.lane.b32.xlu0 %v637, 80
  %v640 = vpop.permute.xlu0 %639
  %v642 = vsel %vm105, %v640, 0
  %644 = vmatpush.bf16.xpose.msra.mxu0 0
  %645 = vmatpush.bf16.xpose.msra.mxu0 0
  %646 = vmatpush.bf16.xpose.msra.mxu0 0
  %647 = vmatpush.bf16.xpose.msra.mxu0 0
  %648 = vmatpush.bf16.xpose.msra.mxu0 %v206
  %649 = vmatpush.bf16.xpose.msra.mxu0 %v203
  %650 = vmatpush.bf16.xpose.msra.mxu0 %v200
  %651 = vmatpush.bf16.xpose.msra.mxu0 %v197
  %652 = vmatmul.bf16.gmra.mxu0 %v642
  %v653 = vpop.f32.mrf.mxu0
  %v654 = vadd.f32 0.0, %v653
  %v655 = vpop.f32.mrf.mxu0
  %656 = vdwg.mxu0
  %v657 = vadd.f32 %v636, %v654
  %v658 = vmul.f32 %v657, 0.5
  %v659 = vtanh.pop %v658
  %v660 = vadd.f32 %v659, 1.0
  %v661 = vmul.f32 %v660, 0.5
  %v662 = vtanh.pop %v657
  %v663 = vmul.f32 %v661, %v565
  %665 = vrot.lane.b32.xlu0 %v662, 96
  %v666 = vpop.permute.xlu0 %665
  %v668 = vmul.f32 %v661, %v666
  %670 = vrot.lane.b32.xlu0 %v668, 16
  %v671 = vpop.permute.xlu0 %670
  %v673 = vadd.f32 %v663, %v671
  %v674 = vtanh.pop %v673
  %676 = vrot.lane.b32.xlu0 %v674, 32
  %v677 = vpop.permute.xlu0 %676
  %v679 = vmul.f32 %v661, %v677
  %681 = vst [vmem:[#allocation1] ss:$4 sm:$0xff] %v679
  %v682 = vld.sshfl [vmem:[#allocation1] sm:$0xff pattern:$0x73625140]
  %683 = vrot.lane.b32.xlu0 %v682, 80
  %v684 = vpop.permute.xlu0 %683
  %s686 = scalar_lea.vmem %s49, 6
  %687 = vst.msk [vmem:[%s686] sm:$0x3] %vm167, %v684
  %s688 = scalar_lea.vmem %s0, 5
  %v689 = vld [vmem:[%s688] sm:$0x1]
  %v690 = vunpack.c.l.bf16 %v689
  %v691 = vpack.c.bf16 %v625, %v625
  %693 = vrot.lane.b32.xlu0 %v691, 80
  %v694 = vpop.permute.xlu0 %693
  %v696 = vsel %vm105, %v694, 0
  %698 = vmatpush.bf16.xpose.msra.mxu0 0
  %699 = vmatpush.bf16.xpose.msra.mxu0 0
  %700 = vmatpush.bf16.xpose.msra.mxu0 0
  %701 = vmatpush.bf16.xpose.msra.mxu0 0
  %702 = vmatpush.bf16.xpose.msra.mxu0 %v119
  %703 = vmatpush.bf16.xpose.msra.mxu0 %v116
  %704 = vmatpush.bf16.xpose.msra.mxu0 %v113
  %705 = vmatpush.bf16.xpose.msra.mxu0 %v110
  %706 = vmatmul.bf16.gmra.mxu0 %v696
  %v707 = vpop.f32.mrf.mxu0
  %v708 = vadd.f32 0.0, %v707
  %v709 = vpop.f32.mrf.mxu0
  %710 = vdwg.mxu0
  %v711 = vadd.f32 %v690, %v708
  %v712 = vmul.f32 %v711, 0.5
  %v713 = vtanh.pop %v712
  %v714 = vadd.f32 %v713, 1.0
  %v715 = vmul.f32 %v714, 0.5
  %v716 = vtanh.pop %v711
  %v717 = vmul.f32 %v715, %v619
  %719 = vrot.lane.b32.xlu0 %v716, 96
  %v720 = vpop.permute.xlu0 %719
  %v722 = vmul.f32 %v715, %v720
  %724 = vrot.lane.b32.xlu0 %v722, 16
  %v725 = vpop.permute.xlu0 %724
  %v727 = vadd.f32 %v717, %v725
  %v728 = vtanh.pop %v727
  %730 = vrot.lane.b32.xlu0 %v728, 32
  %v731 = vpop.permute.xlu0 %730
  %v733 = vmul.f32 %v715, %v731
  %735 = vst [vmem:[#allocation1] ss:$4 sm:$0xff] %v733
  %v736 = vld.sshfl [vmem:[#allocation1] sm:$0xff pattern:$0x73625140]
  %737 = vrot.lane.b32.xlu0 %v736, 80
  %v738 = vpop.permute.xlu0 %737
  %s740 = scalar_lea.vmem %s4, 10
  %741 = vst.msk [vmem:[%s740] sm:$0x3] %vm167, %v738
  %s742 = scalar_lea.vmem %s41, 2
  %v743 = vld [vmem:[%s742] sm:$0x1]
  %v744 = vunpack.c.l.bf16 %v743
  %v745 = vpack.c.bf16 %v679, %v679
  %747 = vrot.lane.b32.xlu0 %v745, 80
  %v748 = vpop.permute.xlu0 %747
  %v750 = vsel %vm105, %v748, 0
  %752 = vmatpush.bf16.xpose.msra.mxu0 0
  %753 = vmatpush.bf16.xpose.msra.mxu0 0
  %754 = vmatpush.bf16.xpose.msra.mxu0 0
  %755 = vmatpush.bf16.xpose.msra.mxu0 0
  %756 = vmatpush.bf16.xpose.msra.mxu0 %v206
  %757 = vmatpush.bf16.xpose.msra.mxu0 %v203
  %758 = vmatpush.bf16.xpose.msra.mxu0 %v200
  %759 = vmatpush.bf16.xpose.msra.mxu0 %v197
  %760 = vmatmul.bf16.gmra.mxu0 %v750
  %v761 = vpop.f32.mrf.mxu0
  %v762 = vadd.f32 0.0, %v761
  %v763 = vpop.f32.mrf.mxu0
  %764 = vdwg.mxu0
  %v765 = vadd.f32 %v744, %v762
  %v766 = vmul.f32 %v765, 0.5
  %v767 = vtanh.pop %v766
  %v768 = vadd.f32 %v767, 1.0
  %v769 = vmul.f32 %v768, 0.5
  %v770 = vtanh.pop %v765
  %v771 = vmul.f32 %v769, %v673
  %773 = vrot.lane.b32.xlu0 %v770, 96
  %v774 = vpop.permute.xlu0 %773
  %v776 = vmul.f32 %v769, %v774
  %778 = vrot.lane.b32.xlu0 %v776, 16
  %v779 = vpop.permute.xlu0 %778
  %v781 = vadd.f32 %v771, %v779
  %v782 = vtanh.pop %v781
  %784 = vrot.lane.b32.xlu0 %v782, 32
  %v785 = vpop.permute.xlu0 %784
  %v787 = vmul.f32 %v769, %v785
  %789 = vst [vmem:[#allocation1] ss:$4 sm:$0xff] %v787
  %v790 = vld.sshfl [vmem:[#allocation1] sm:$0xff pattern:$0x73625140]
  %791 = vrot.lane.b32.xlu0 %v790, 80
  %v792 = vpop.permute.xlu0 %791
  %s794 = scalar_lea.vmem %s49, 4
  %795 = vst.msk [vmem:[%s794] sm:$0x3] %vm167, %v792
  %s796 = scalar_lea.vmem %s0, 6
  %v797 = vld [vmem:[%s796] sm:$0x1]
  %v798 = vunpack.c.l.bf16 %v797
  %v799 = vpack.c.bf16 %v733, %v733
  %801 = vrot.lane.b32.xlu0 %v799, 80
  %v802 = vpop.permute.xlu0 %801
  %v804 = vsel %vm105, %v802, 0
  %806 = vmatpush.bf16.xpose.msra.mxu0 0
  %807 = vmatpush.bf16.xpose.msra.mxu0 0
  %808 = vmatpush.bf16.xpose.msra.mxu0 0
  %809 = vmatpush.bf16.xpose.msra.mxu0 0
  %810 = vmatpush.bf16.xpose.msra.mxu0 %v119
  %811 = vmatpush.bf16.xpose.msra.mxu0 %v116
  %812 = vmatpush.bf16.xpose.msra.mxu0 %v113
  %813 = vmatpush.bf16.xpose.msra.mxu0 %v110
  %814 = vmatmul.bf16.gmra.mxu0 %v804
  %v815 = vpop.f32.mrf.mxu0
  %v816 = vadd.f32 0.0, %v815
  %v817 = vpop.f32.mrf.mxu0
  %818 = vdwg.mxu0
  %v819 = vadd.f32 %v798, %v816
  %v820 = vmul.f32 %v819, 0.5
  %v821 = vtanh.pop %v820
  %v822 = vadd.f32 %v821, 1.0
  %v823 = vmul.f32 %v822, 0.5
  %v824 = vtanh.pop %v819
  %v825 = vmul.f32 %v823, %v727
  %827 = vrot.lane.b32.xlu0 %v824, 96
  %v828 = vpop.permute.xlu0 %827
  %v830 = vmul.f32 %v823, %v828
  %832 = vrot.lane.b32.xlu0 %v830, 16
  %v833 = vpop.permute.xlu0 %832
  %v835 = vadd.f32 %v825, %v833
  %v836 = vtanh.pop %v835
  %838 = vrot.lane.b32.xlu0 %v836, 32
  %v839 = vpop.permute.xlu0 %838
  %v841 = vmul.f32 %v823, %v839
  %843 = vst [vmem:[#allocation1] ss:$4 sm:$0xff] %v841
  %v844 = vld.sshfl [vmem:[#allocation1] sm:$0xff pattern:$0x73625140]
  %845 = vrot.lane.b32.xlu0 %v844, 80
  %v846 = vpop.permute.xlu0 %845
  %s848 = scalar_lea.vmem %s4, 12
  %849 = vst.msk [vmem:[%s848] sm:$0x3] %vm167, %v846
  %s850 = scalar_lea.vmem %s41, 1
  %v851 = vld [vmem:[%s850] sm:$0x1]
  %v852 = vunpack.c.l.bf16 %v851
  %v853 = vpack.c.bf16 %v787, %v787
  %855 = vrot.lane.b32.xlu0 %v853, 80
  %v856 = vpop.permute.xlu0 %855
  %v858 = vsel %vm105, %v856, 0
  %860 = vmatpush.bf16.xpose.msra.mxu0 0
  %861 = vmatpush.bf16.xpose.msra.mxu0 0
  %862 = vmatpush.bf16.xpose.msra.mxu0 0
  %863 = vmatpush.bf16.xpose.msra.mxu0 0
  %864 = vmatpush.bf16.xpose.msra.mxu0 %v206
  %865 = vmatpush.bf16.xpose.msra.mxu0 %v203
  %866 = vmatpush.bf16.xpose.msra.mxu0 %v200
  %867 = vmatpush.bf16.xpose.msra.mxu0 %v197
  %868 = vmatmul.bf16.gmra.mxu0 %v858
  %v869 = vpop.f32.mrf.mxu0
  %v870 = vadd.f32 0.0, %v869
  %v871 = vpop.f32.mrf.mxu0
  %872 = vdwg.mxu0
  %v873 = vadd.f32 %v852, %v870
  %v874 = vmul.f32 %v873, 0.5
  %v875 = vtanh.pop %v874
  %v876 = vadd.f32 %v875, 1.0
  %v877 = vmul.f32 %v876, 0.5
  %v878 = vtanh.pop %v873
  %v879 = vmul.f32 %v877, %v781
  %881 = vrot.lane.b32.xlu0 %v878, 96
  %v882 = vpop.permute.xlu0 %881
  %v884 = vmul.f32 %v877, %v882
  %886 = vrot.lane.b32.xlu0 %v884, 16
  %v887 = vpop.permute.xlu0 %886
  %v889 = vadd.f32 %v879, %v887
  %v890 = vtanh.pop %v889
  %892 = vrot.lane.b32.xlu0 %v890, 32
  %v893 = vpop.permute.xlu0 %892
  %v895 = vmul.f32 %v877, %v893
  %897 = vst [vmem:[#allocation1] ss:$4 sm:$0xff] %v895
  %v898 = vld.sshfl [vmem:[#allocation1] sm:$0xff pattern:$0x73625140]
  %899 = vrot.lane.b32.xlu0 %v898, 80
  %v900 = vpop.permute.xlu0 %899
  %s902 = scalar_lea.vmem %s49, 2
  %903 = vst.msk [vmem:[%s902] sm:$0x3] %vm167, %v900
  %s904 = scalar_lea.vmem %s0, 7
  %v905 = vld [vmem:[%s904] sm:$0x1]
  %v906 = vunpack.c.l.bf16 %v905
  %v907 = vpack.c.bf16 %v841, %v841
  %909 = vrot.lane.b32.xlu0 %v907, 80
  %v910 = vpop.permute.xlu0 %909
  %v912 = vsel %vm105, %v910, 0
  %914 = vmatpush.bf16.xpose.msra.mxu0 0
  %915 = vmatpush.bf16.xpose.msra.mxu0 0
  %916 = vmatpush.bf16.xpose.msra.mxu0 0
  %917 = vmatpush.bf16.xpose.msra.mxu0 0
  %918 = vmatpush.bf16.xpose.msra.mxu0 %v119
  %919 = vmatpush.bf16.xpose.msra.mxu0 %v116
  %920 = vmatpush.bf16.xpose.msra.mxu0 %v113
  %921 = vmatpush.bf16.xpose.msra.mxu0 %v110
  %922 = vmatmul.bf16.gmra.mxu0 %v912
  %v923 = vpop.f32.mrf.mxu0
  %v924 = vadd.f32 0.0, %v923
  %v925 = vpop.f32.mrf.mxu0
  %926 = vdwg.mxu0
  %v927 = vadd.f32 %v906, %v924
  %v928 = vmul.f32 %v927, 0.5
  %v929 = vtanh.pop %v928
  %v930 = vadd.f32 %v929, 1.0
  %v931 = vmul.f32 %v930, 0.5
  %v932 = vtanh.pop %v927
  %v933 = vmul.f32 %v931, %v835
  %935 = vrot.lane.b32.xlu0 %v932, 96
  %v936 = vpop.permute.xlu0 %935
  %v938 = vmul.f32 %v931, %v936
  %940 = vrot.lane.b32.xlu0 %v938, 16
  %v941 = vpop.permute.xlu0 %940
  %v943 = vadd.f32 %v933, %v941
  %v944 = vtanh.pop %v943
  %946 = vrot.lane.b32.xlu0 %v944, 32
  %v947 = vpop.permute.xlu0 %946
  %v949 = vmul.f32 %v931, %v947
  %951 = vst [vmem:[#allocation1] ss:$4 sm:$0xff] %v949
  %v952 = vld.sshfl [vmem:[#allocation1] sm:$0xff pattern:$0x73625140]
  %953 = vrot.lane.b32.xlu0 %v952, 80
  %v954 = vpop.permute.xlu0 %953
  %s956 = scalar_lea.vmem %s4, 14
  %957 = vst.msk [vmem:[%s956] sm:$0x3] %vm167, %v954
  %v958 = vld [vmem:[%s41] sm:$0x1]
  %v959 = vunpack.c.l.bf16 %v958
  %v960 = vpack.c.bf16 %v895, %v895
  %962 = vrot.lane.b32.xlu0 %v960, 80
  %v963 = vpop.permute.xlu0 %962
  %v965 = vsel %vm105, %v963, 0
  %967 = vmatpush.bf16.xpose.msra.mxu0 0
  %968 = vmatpush.bf16.xpose.msra.mxu0 0
  %969 = vmatpush.bf16.xpose.msra.mxu0 0
  %970 = vmatpush.bf16.xpose.msra.mxu0 0
  %971 = vmatpush.bf16.xpose.msra.mxu0 %v206
  %972 = vmatpush.bf16.xpose.msra.mxu0 %v203
  %973 = vmatpush.bf16.xpose.msra.mxu0 %v200
  %974 = vmatpush.bf16.xpose.msra.mxu0 %v197
  %975 = vmatmul.bf16.gmra.mxu0 %v965
  %v976 = vpop.f32.mrf.mxu0
  %v977 = vadd.f32 0.0, %v976
  %v978 = vpop.f32.mrf.mxu0
  %979 = vdwg.mxu0
  %v980 = vadd.f32 %v959, %v977
  %v981 = vmul.f32 %v980, 0.5
  %v982 = vtanh.pop %v981
  %v983 = vadd.f32 %v982, 1.0
  %v984 = vmul.f32 %v983, 0.5
  %v985 = vtanh.pop %v980
  %v986 = vmul.f32 %v984, %v889
  %988 = vrot.lane.b32.xlu0 %v985, 96
  %v989 = vpop.permute.xlu0 %988
  %v991 = vmul.f32 %v984, %v989
  %993 = vrot.lane.b32.xlu0 %v991, 16
  %v994 = vpop.permute.xlu0 %993
  %v996 = vadd.f32 %v986, %v994
  %v997 = vtanh.pop %v996
  %999 = vrot.lane.b32.xlu0 %v997, 32
  %v1000 = vpop.permute.xlu0 %999
  %v1002 = vmul.f32 %v984, %v1000
  %1004 = vst [vmem:[#allocation1] ss:$4 sm:$0xff] %v1002
  %v1005 = vld.sshfl [vmem:[#allocation1] sm:$0xff pattern:$0x73625140]
  %1006 = vrot.lane.b32.xlu0 %v1005, 80
  %v1007 = vpop.permute.xlu0 %1006
  %1009 = vst.msk [vmem:[%s49] sm:$0x3] %vm167, %v1007
  %1010 = vst [vmem:[#allocation1] ss:$4 sm:$0xff] %v949
  %v1011 = vld.sshfl [vmem:[#allocation1] sm:$0xff pattern:$0x73625140]
  %1012 = vrot.lane.b32.xlu0 %v1011, 80
  %v1013 = vpop.permute.xlu0 %1012
  %1015 = vst.msk [vmem:[#allocation2] sm:$0x3] %vm167, %v1013
  %1017 = vst [vmem:[#allocation1] ss:$4 sm:$0xff] %v943
  %v1018 = vld.sshfl [vmem:[#allocation1] sm:$0xff pattern:$0x73625140]
  %1019 = vrot.lane.b32.xlu0 %v1018, 112
  %v1020 = vpop.permute.xlu0 %1019
  %1022 = vst.msk [vmem:[#allocation3] sm:$0x3] %vm167, %v1020
  %1023 = vst [vmem:[#allocation1] ss:$4 sm:$0xff] %v1002
  %v1024 = vld.sshfl [vmem:[#allocation1] sm:$0xff pattern:$0x73625140]
  %1025 = vrot.lane.b32.xlu0 %v1024, 80
  %v1026 = vpop.permute.xlu0 %1025
  %1028 = vst.msk [vmem:[#allocation4] sm:$0x3] %vm167, %v1026
  %1030 = vst [vmem:[#allocation1] ss:$4 sm:$0xff] %v996
  %v1031 = vld.sshfl [vmem:[#allocation1] sm:$0xff pattern:$0x73625140]
  %1032 = vrot.lane.b32.xlu0 %v1031, 112
  %v1033 = vpop.permute.xlu0 %1032
  %1035 = vst.msk [vmem:[#allocation5] sm:$0x3] %vm167, %v1033
  %s1036 = ssub.s32 0, 0
  %s1037 = smul.u32 8, %s1036
  %p1038 = scmp.lt.s32.totalorder %s1037, 7
  %s1039 = scalar_select %p1038, %s1037, 7
  %s1040 = smul.addr %s1039, 2
  %s1041 = scalar_lea.vmem %s5, %s1040
  // Predicated region
  $region22: #{topic_att_forward.6} parent=0 // pred_check
    _
  $region23: #{topic_att_forward.6} parent=0 // pred_check_branch
    %1043 = sbr.rel (0) target = $region25
  $region24: #{topic_att_forward.6} parent=0 // pred_region
    _
  $region25: #{topic_att_forward.6} parent=0 // pred_fallthru
    _
  // Predicated region
  $region26: #{topic_att_forward.6} parent=0 // pred_check
    _
  $region27: #{topic_att_forward.6} parent=0 // pred_check_branch
    %1045 = sbr.rel (0) target = $region29
  $region28: #{topic_att_forward.6} parent=0 // pred_region
    %s1046 = ssub.s32 0, 0
    %s1047 = smul.u32 8, %s1046
  $region29: #{topic_att_forward.6} parent=0 // pred_fallthru
    _
  // Predicated region
  $region30: #{topic_att_forward.6} parent=0 // pred_check
    _
  $region31: #{topic_att_forward.6} parent=0 // pred_check_branch
    %1049 = sbr.rel (0) target = $region33
  $region32: #{topic_att_forward.6} parent=0 // pred_region
    _
  $region33: #{topic_att_forward.6} parent=0 // pred_fallthru
    _
  // Predicated region
  $region34: #{topic_att_forward.6} parent=0 // pred_check
    _
  $region35: #{topic_att_forward.6} parent=0 // pred_check_branch
    %1051 = sbr.rel (0) target = $region37
  $region36: #{topic_att_forward.6} parent=0 // pred_region
    %s1052 = ssub.s32 0, 0
    %s1053 = smul.u32 8, %s1052
    %p1054 = scmp.lt.s32.totalorder %s1053, 7
    %s1055 = scalar_select %p1054, %s1053, 7
    %s1056 = smul.addr %s1055, 2
    %s1057 = scalar_lea.vmem %s5, %s1056
  $region37: #{topic_att_forward.6} parent=0 // pred_fallthru
    _

// kernel: topic_att_forward.9
$region0: #{topic_att_forward.9}
  #allocation0 [shape = 'u32[]', space=smem, size = 0x4, offset = 0x4, fixed_abs, tag = 'smem constant byte address 0x4 - core index']
  #allocation1 [shape = 'u32[72,128]{1,0:T(1,128)}', space=vmem, size = 0x9000, scoped, tag = 'internal scratch']
  %s0 = inlined_call_operand.vmem [shape: f32[2,32], index: 0, kind: input, shape index: {}]
  %s1 = inlined_call_operand.vmem [shape: f32[8,32], index: 1, kind: input, shape index: {}]
  %s2 = inlined_call_operand.vmem [shape: f32[1,8], index: 2, kind: input, shape index: {}]
  %s3 = inlined_call_operand.vmem [shape: f32[2,8], index: 3, kind: input, shape index: {}]
  %s4 = inlined_call_operand.vmem [shape: f32[2,1], index: 4, kind: input, shape index: {}]
  %s5 = inlined_call_operand.hbm [shape: f32[2,8], index: 5, kind: output, shape index: {0}]
  %s6 = inlined_call_operand.hbm [shape: f32[1,1], index: 6, kind: output, shape index: {1}]
  %7 = xla_tuple %s5, %s6
  %s8 = sld [smem:[#allocation0]]
  $region38: #{topic_att_forward.9} parent=0
    _
  %s10 = ssub.s32 1, %s8
  %s11 = scalar_select 0, %s10, %s8
  $region1: #{topic_att_forward.9} parent=0
    #allocation2 [shape = 'u8[1024]{0}', space=vmem, size = 0x400, scoped, tag = 'output window, operand 0, single buffered']
    #allocation3 [shape = 's32[1]{0}', space=sflag, size = 0x4, scoped, tag = 'scoped memory for topic_att_forward.9']
    #allocation4 [shape = 'u8[512]{0}', space=vmem, size = 0x400, scoped, tag = 'output window, operand 1, single buffered']
    #allocation5 [shape = 's32[1]{0}', space=sflag, size = 0x4, scoped, tag = 'scoped memory for topic_att_forward.9']
    %12 = vsyncpa [#allocation3], 0
    %13 = vsyncpa [#allocation5], 0
    // Predicated region
    $region2: #{topic_att_forward.9} parent=1 // pred_check
      _
    $region3: #{topic_att_forward.9} parent=1 // pred_check_branch
      %15 = sbr.rel (0) target = $region5
    $region4: #{topic_att_forward.9} parent=1 // pred_region
      _
    $region5: #{topic_att_forward.9} parent=1 // pred_fallthru
      _
    // Predicated region
    $region6: #{topic_att_forward.9} parent=1 // pred_check
      _
    $region7: #{topic_att_forward.9} parent=1 // pred_check_branch
      %17 = sbr.rel (0) target = $region9
    $region8: #{topic_att_forward.9} parent=1 // pred_region
      _
    $region9: #{topic_att_forward.9} parent=1 // pred_fallthru
      _
    // Predicated region
    $region10: #{topic_att_forward.9} parent=1 // pred_check
      _
    $region11: #{topic_att_forward.9} parent=1 // pred_check_branch
      %19 = sbr.rel (0) target = $region13
    $region12: #{topic_att_forward.9} parent=1 // pred_region
      _
    $region13: #{topic_att_forward.9} parent=1 // pred_fallthru
      _
    // Predicated region
    $region14: #{topic_att_forward.9} parent=1 // pred_check
      _
    $region15: #{topic_att_forward.9} parent=1 // pred_check_branch
      %21 = sbr.rel (0) target = $region17
    $region16: #{topic_att_forward.9} parent=1 // pred_region
      _
    $region17: #{topic_att_forward.9} parent=1 // pred_fallthru
      _
    // Predicated region
    $region18: #{topic_att_forward.9} parent=1 // pred_check
      _
    $region19: #{topic_att_forward.9} parent=1 // pred_check_branch
      %23 = sbr.rel (0) target = $region21
    $region20: #{topic_att_forward.9} parent=1 // pred_region
      _
    $region21: #{topic_att_forward.9} parent=1 // pred_fallthru
      _
    %v24 = vld [vmem:[%s0] sm:$0x3]
    %v25 = vld [vmem:[%s1] sm:$0xff]
    %v26 = vld [vmem:[%s2] sm:$0x1]
    %v28 = vperm.slane %v26, 0
    %vm30 = vcmask 261120
    %v32 = vsel %vm30, %v24, 0
    %v35 = vsel %vm30, %v25, 0
    %37 = vmatpush.xpose.msra.mxu0 0.0
    %38 = vmatpush.xpose.msra.mxu0 0.0
    %39 = vmatpush.xpose.msra.mxu0 0.0
    %40 = vmatpush.xpose.msra.mxu0 0.0
    %41 = vmatpush.xpose.msra.mxu0 0.0
    %42 = vmatpush.xpose.msra.mxu0 0.0
    %43 = vmatpush.xpose.msra.mxu0 0.0
    %44 = vmatpush.xpose.msra.mxu0 0.0
    %45 = vmatpush.xpose.msra.mxu0 0.0
    %46 = vmatpush.xpose.msra.mxu0 0.0
    %47 = vmatpush.xpose.msra.mxu0 0.0
    %48 = vmatpush.xpose.msra.mxu0 0.0
    %49 = vmatpush.xpose.msra.mxu0 0.0
    %50 = vmatpush.xpose.msra.mxu0 0.0
    %51 = vmatpush.xpose.msra.mxu0 0.0
    %52 = vmatpush.xpose.msra.mxu0 %v35
    %53 = vmatmul.f32.gmra.mxu0 %v32
    %v54 = vpop.f32.mrf.mxu0
    %v55 = vadd.f32 %v28, %v54
    %56 = vdwg.mxu0
    %v57 = vmul.f32 %v55, 0.5
    %v58 = vtanh.pop %v57
    %v59 = vadd.f32 %v58, 1.0
    %v60 = vmul.f32 %v59, 0.5
    %vm61 = vcmask 58368
    %62 = vst.msk [vmem:[#allocation2] sm:$0x3] %vm61, %v60
    %v63 = vld [vmem:[%s3] sm:$0x3]
    %v64 = vmax.f32 %v60, 1e-12
    %v65 = vmin.f32 %v64, 1.0
    %v66 = vlog2.pop %v65
    %v67 = vmul.f32 %v66, 0.6931472
    %v68 = vmul.f32 %v63, %v67
    %v69 = vsub.f32 1.0, %v63
    %v70 = vsub.f32 1.0, %v65
    %v71 = vlog2.pop %v70
    %v72 = vmul.f32 %v71, 0.6931472
    %v73 = vmul.f32 %v69, %v72
    %v74 = vadd.f32 %v68, %v73
    %v75 = vsel %vm61, %v74, 0.0
    %76 = vadd.xlane.f32.xlu0 %v75
    %v77 = vpop.xlane.xlu0 %76
    %v78 = vrot.slane %v77, 4
    %v79 = vadd.f32 %v77, %v78
    %v80 = vrot.slane %v79, 2
    %v81 = vadd.f32 %v79, %v80
    %v82 = vrot.slane %v81, 1
    %v83 = vadd.f32 %v81, %v82
    %s84 = vtos %v83
    %v85 = vrcp.pop 16.0
    %v86 = vmul.f32 16.0, %v85
    %v87 = vsub.f32 1.0, %v86
    %v88 = vmul.f32 %v85, %v87
    %v89 = vadd.f32 %v85, %v88
    %vm90 = vweird.f32 %v85
    %v91 = vsel %vm90, %v85, %v89
    %s92 = vtos %v91
    %s93 = smul.f32 %s84, %s92
    %s94 = ssub.f32 0.0, %s93
    %v95 = vld [vmem:[%s4] sm:$0x3]
    %vm96 = vcmask 1024
    %v97 = vsel %vm96, %v95, 0.0
    %98 = vadd.xlane.f32.xlu0 %v97
    %v99 = vpop.xlane.xlu0 %98
    %v100 = vrot.slane %v99, 4
    %v101 = vadd.f32 %v99, %v100
    %v102 = vrot.slane %v101, 2
    %v103 = vadd.f32 %v101, %v102
    %v104 = vrot.slane %v103, 1
    %v105 = vadd.f32 %v103, %v104
    %s106 = vtos %v105
    %v107 = vrcp.pop 2.0
    %v108 = vmul.f32 2.0, %v107
    %v109 = vsub.f32 1.0, %v108
    %v110 = vmul.f32 %v107, %v109
    %v111 = vadd.f32 %v107, %v110
    %vm112 = vweird.f32 %v107
    %v113 = vsel %vm112, %v107, %v111
    %s114 = vtos %v113
    %s115 = smul.f32 %s106, %s114
    %s116 = sadd.f32 %s115, %s94
    %v117 = vstv %s116
    %vm118 = vcmask 0
    %119 = vst.msk [vmem:[#allocation4] sm:$0x1] %vm118, %v117
    // Predicated region
    $region22: #{topic_att_forward.9} parent=1 // pred_check
      _
    $region23: #{topic_att_forward.9} parent=1 // pred_check_branch
      %121 = sbr.rel (0) target = $region25
    $region24: #{topic_att_forward.9} parent=1 // pred_region
      %123 = vsyncadd [#allocation3], 0
      %s125 = sshll.u32 [#allocation2], 4
      %s126 = int_to_ptr.vmem [resolvable:$true] %s125
      %s127 = sshll.u32 %s5, 4
      %s128 = int_to_ptr.hbm [resolvable:$true] %s127
      %130 = dma.vmem_to_hbm [thread:$0]  %s126, 32, %s128, [#allocation3]
    $region25: #{topic_att_forward.9} parent=1 // pred_fallthru
      _
    // Predicated region
    $region26: #{topic_att_forward.9} parent=1 // pred_check
      _
    $region27: #{topic_att_forward.9} parent=1 // pred_check_branch
      %132 = sbr.rel (0) target = $region29
    $region28: #{topic_att_forward.9} parent=1 // pred_region
      %134 = vsyncadd [#allocation5], 0
      %s136 = sshll.u32 [#allocation4], 4
      %s137 = int_to_ptr.vmem [resolvable:$true] %s136
      %s138 = sshll.u32 %s6, 4
      %s139 = int_to_ptr.hbm [resolvable:$true] %s138
      %141 = dma.vmem_to_hbm [thread:$0]  %s137, 16, %s139, [#allocation5]
    $region29: #{topic_att_forward.9} parent=1 // pred_fallthru
      _
    // Predicated region
    $region30: #{topic_att_forward.9} parent=1 // pred_check
      _
    $region31: #{topic_att_forward.9} parent=1 // pred_check_branch
      %143 = sbr.rel (0) target = $region33
    $region32: #{topic_att_forward.9} parent=1 // pred_region
      %145 = dma.done [#allocation3], 32
    $region33: #{topic_att_forward.9} parent=1 // pred_fallthru
      _
    // Predicated region
    $region34: #{topic_att_forward.9} parent=1 // pred_check
      _
    $region35: #{topic_att_forward.9} parent=1 // pred_check_branch
      %147 = sbr.rel (0) target = $region37
    $region36: #{topic_att_forward.9} parent=1 // pred_region
      %149 = dma.done [#allocation5], 16
    $region37: #{topic_att_forward.9} parent=1 // pred_fallthru
      _
    %150 = vsyncpa [#allocation3], 1
    %151 = vsyncpa [#allocation5], 1

</llo_original>
